<compile_context>
chip_gen: v7x
topology: tpu7x:2x2x1
jax: 0.10.0
libtpu: 0.0.40
codegen_flags: <defaults>
</compile_context>

<pallas_src>
import jax
import jax.numpy as jnp
from jax import lax
from jax.experimental import pallas as pl
from jax.experimental.pallas import tpu as pltpu


def _feature_kernel(x_ref, wt_ref, b_ref, pool_ref, o_ref, patches_ref):
    # x_ref:       (B, H+2, W+2, Cin) zero-padded NHWC input (VMEM)
    # wt_ref:      (Cout, K)  conv weight, K = 9*Cin (transposed -> lane-dense out)
    # b_ref:       (Cout, 1)  conv bias
    # pool_ref:    (B, B*HW)  per-batch mean-pool matrix (1/HW in batch b's block)
    # o_ref:       (B, Cout)  pooled / flattened feature vectors (output)
    # patches_ref: (B*HW, K)  im2col scratch (VMEM)
    B, HP, WP, Cin = x_ref.shape
    H, W = HP - 2, WP - 2
    HW = H * W

    # Fused im2col: each 3x3 tap is a shifted (B,H,W,Cin) window of the padded
    # image; drop it into its Cin-wide lane slice of the patch matrix.  Only
    # leading dims are merged by the reshape (minor dim Cin unchanged), so no
    # relayout is required; the 9x patch tensor never touches HBM.
    for kh in range(3):
        for kw in range(3):
            t = kh * 3 + kw
            slab = x_ref[:, kh:kh + H, kw:kw + W, :]             # (B,H,W,Cin)
            patches_ref[:, t * Cin:(t + 1) * Cin] = slab.reshape(B * HW, Cin)

    p = patches_ref[...]                                          # (B*HW, K)

    # Conv as a single K=36-deep contraction; result (Cout, B*HW) keeps the
    # spatial/batch axis in the 128-lane dimension (flash-attn style trans_b).
    y = lax.dot_general(wt_ref[...], p,
                        dimension_numbers=(((1,), (1,)), ((), ())),
                        preferred_element_type=jnp.float32)       # (Cout, B*HW)
    y = jnp.maximum(y + b_ref[...].astype(jnp.float32), 0.0)      # bias + ReLU

    # Global average pool per batch as a matmul: (B, B*HW) . (Cout, B*HW)^T,
    # producing the full (B, Cout) output directly (no transpose, one store).
    pooled = lax.dot_general(pool_ref[...], y,
                             dimension_numbers=(((1,), (1,)), ((), ())),
                             preferred_element_type=jnp.float32)  # (B, Cout)
    o_ref[...] = pooled.astype(o_ref.dtype)


@jax.jit
def feature_extractor(x_nchw, w_hwio, bias):
    """Pallas implementation of FeatureExtractor.forward.

    x_nchw: (B, Cin, H, W) float32   (PyTorch layout)
    w_hwio: (KH, KW, Cin, Cout) float32
    bias:   (Cout,) float32
    returns (B, Cout) float32
    """
    B, Cin, H, W = x_nchw.shape
    KH, KW, _, Cout = w_hwio.shape
    assert (KH, KW) == (3, 3)
    HW = H * W
    K = KH * KW * Cin

    # NCHW -> NHWC + SAME zero padding (one small fused XLA copy); this is the
    # only image-sized tensor that crosses HBM before the kernel.
    x = jnp.transpose(x_nchw, (0, 2, 3, 1))
    xpad = jnp.pad(x, ((0, 0), (1, 1), (1, 1), (0, 0)))           # (B,H+2,W+2,Cin)

    # Conv weight as (Cout, K); bias as (Cout, 1).
    wt = w_hwio.reshape(K, Cout).T                                # (Cout, K)
    b2 = bias.reshape(Cout, 1)

    # Constant per-batch mean-pool matrix (shape-only -> constant-folded by XLA).
    pool = jnp.repeat(jnp.eye(B, dtype=x_nchw.dtype), HW, axis=1) / HW  # (B, B*HW)

    vmem = pl.BlockSpec(memory_space=pltpu.MemorySpace.VMEM)
    return pl.pallas_call(
        _feature_kernel,
        out_shape=jax.ShapeDtypeStruct((B, Cout), x_nchw.dtype),
        in_specs=[vmem, vmem, vmem, vmem],
        out_specs=vmem,
        scratch_shapes=[pltpu.VMEM((B * HW, K), jnp.float32)],
    )(xpad, wt, b2, pool)


def _reference(x_nchw, w_hwio, bias):
    """Pure-JAX reference mirroring the PyTorch forward."""
    x = jnp.transpose(x_nchw, (0, 2, 3, 1))                       # NHWC
    y = lax.conv_general_dilated(
        x, w_hwio, window_strides=(1, 1), padding="SAME",
        dimension_numbers=("NHWC", "HWIO", "NHWC"))
    y = jnp.maximum(y + bias, 0.0)
    return jnp.mean(y, axis=(1, 2))                               # (B, Cout)


if __name__ == "__main__":
    B, Cin, H, W = 2, 4, 16, 16
    Cout = 8

    key = jax.random.PRNGKey(0)
    kx, kw, kb = jax.random.split(key, 3)
    x = jax.random.normal(kx, (B, Cin, H, W), dtype=jnp.float32)      # NCHW input
    w = 0.1 * jax.random.normal(kw, (3, 3, Cin, Cout), dtype=jnp.float32)
    b = 0.1 * jax.random.normal(kb, (Cout,), dtype=jnp.float32)

    out = jax.block_until_ready(feature_extractor(x, w, b))
    ref = jax.block_until_ready(_reference(x, w, b))

    assert out.shape == (B, Cout), out.shape
    assert jnp.allclose(out, ref, rtol=5e-5, atol=1e-5), (out, ref)

    print("KERNEL_OK")
</pallas_src>

<mosaic_0001>
module attributes {stable_mosaic.version = 11 : i64} {
  func.func @_feature_kernel(%arg0: memref<2x18x18x4xf32, #tpu.memory_space<vmem>>, %arg1: memref<8x36xf32, #tpu.memory_space<vmem>>, %arg2: memref<8x1xf32, #tpu.memory_space<vmem>>, %arg3: memref<2x512xf32, #tpu.memory_space<vmem>>, %arg4: memref<2x8xf32, #tpu.memory_space<vmem>>, %arg5: memref<512x36xf32, #tpu.memory_space<vmem>>) attributes {dimension_semantics = [], scalar_prefetch = 0 : i64, scratch_operands = 1 : i64, tpu.core_type = #tpu.core_type<tc>} {
    %c0 = arith.constant 0 : index
    %c0_0 = arith.constant 0 : index
    %c0_1 = arith.constant 0 : index
    %c0_2 = arith.constant 0 : index
    %0 = vector.load %arg0[%c0, %c0_0, %c0_1, %c0_2] : memref<2x18x18x4xf32, #tpu.memory_space<vmem>>, vector<2x16x16x4xf32>
    %1 = vector.shape_cast %0 : vector<2x16x16x4xf32> to vector<512x4xf32>
    %c0_3 = arith.constant 0 : index
    %c0_4 = arith.constant 0 : index
    %2 = vector.load %arg5[%c0_3, %c0_4] : memref<512x36xf32, #tpu.memory_space<vmem>>, vector<512x4xf32>
    tpu.vector_store %arg5[%c0_3, %c0_4], %1 {strides = array<i32>} : memref<512x36xf32, #tpu.memory_space<vmem>>, vector<512x4xf32>,
    %c0_5 = arith.constant 0 : index
    %c0_6 = arith.constant 0 : index
    %c1 = arith.constant 1 : index
    %c0_7 = arith.constant 0 : index
    %3 = vector.load %arg0[%c0_5, %c0_6, %c1, %c0_7] : memref<2x18x18x4xf32, #tpu.memory_space<vmem>>, vector<2x16x16x4xf32>
    %4 = vector.shape_cast %3 : vector<2x16x16x4xf32> to vector<512x4xf32>
    %c0_8 = arith.constant 0 : index
    %c4 = arith.constant 4 : index
    %5 = vector.load %arg5[%c0_8, %c4] : memref<512x36xf32, #tpu.memory_space<vmem>>, vector<512x4xf32>
    tpu.vector_store %arg5[%c0_8, %c4], %4 {strides = array<i32>} : memref<512x36xf32, #tpu.memory_space<vmem>>, vector<512x4xf32>,
    %c0_9 = arith.constant 0 : index
    %c0_10 = arith.constant 0 : index
    %c2 = arith.constant 2 : index
    %c0_11 = arith.constant 0 : index
    %6 = vector.load %arg0[%c0_9, %c0_10, %c2, %c0_11] : memref<2x18x18x4xf32, #tpu.memory_space<vmem>>, vector<2x16x16x4xf32>
    %7 = vector.shape_cast %6 : vector<2x16x16x4xf32> to vector<512x4xf32>
    %c0_12 = arith.constant 0 : index
    %c8 = arith.constant 8 : index
    %8 = vector.load %arg5[%c0_12, %c8] : memref<512x36xf32, #tpu.memory_space<vmem>>, vector<512x4xf32>
    tpu.vector_store %arg5[%c0_12, %c8], %7 {strides = array<i32>} : memref<512x36xf32, #tpu.memory_space<vmem>>, vector<512x4xf32>,
    %c0_13 = arith.constant 0 : index
    %c1_14 = arith.constant 1 : index
    %c0_15 = arith.constant 0 : index
    %c0_16 = arith.constant 0 : index
    %9 = vector.load %arg0[%c0_13, %c1_14, %c0_15, %c0_16] : memref<2x18x18x4xf32, #tpu.memory_space<vmem>>, vector<2x16x16x4xf32>
    %10 = vector.shape_cast %9 : vector<2x16x16x4xf32> to vector<512x4xf32>
    %c0_17 = arith.constant 0 : index
    %c12 = arith.constant 12 : index
    %11 = vector.load %arg5[%c0_17, %c12] : memref<512x36xf32, #tpu.memory_space<vmem>>, vector<512x4xf32>
    tpu.vector_store %arg5[%c0_17, %c12], %10 {strides = array<i32>} : memref<512x36xf32, #tpu.memory_space<vmem>>, vector<512x4xf32>,
    %c0_18 = arith.constant 0 : index
    %c1_19 = arith.constant 1 : index
    %c1_20 = arith.constant 1 : index
    %c0_21 = arith.constant 0 : index
    %12 = vector.load %arg0[%c0_18, %c1_19, %c1_20, %c0_21] : memref<2x18x18x4xf32, #tpu.memory_space<vmem>>, vector<2x16x16x4xf32>
    %13 = vector.shape_cast %12 : vector<2x16x16x4xf32> to vector<512x4xf32>
    %c0_22 = arith.constant 0 : index
    %c16 = arith.constant 16 : index
    %14 = vector.load %arg5[%c0_22, %c16] : memref<512x36xf32, #tpu.memory_space<vmem>>, vector<512x4xf32>
    tpu.vector_store %arg5[%c0_22, %c16], %13 {strides = array<i32>} : memref<512x36xf32, #tpu.memory_space<vmem>>, vector<512x4xf32>,
    %c0_23 = arith.constant 0 : index
    %c1_24 = arith.constant 1 : index
    %c2_25 = arith.constant 2 : index
    %c0_26 = arith.constant 0 : index
    %15 = vector.load %arg0[%c0_23, %c1_24, %c2_25, %c0_26] : memref<2x18x18x4xf32, #tpu.memory_space<vmem>>, vector<2x16x16x4xf32>
    %16 = vector.shape_cast %15 : vector<2x16x16x4xf32> to vector<512x4xf32>
    %c0_27 = arith.constant 0 : index
    %c20 = arith.constant 20 : index
    %17 = vector.load %arg5[%c0_27, %c20] : memref<512x36xf32, #tpu.memory_space<vmem>>, vector<512x4xf32>
    tpu.vector_store %arg5[%c0_27, %c20], %16 {strides = array<i32>} : memref<512x36xf32, #tpu.memory_space<vmem>>, vector<512x4xf32>,
    %c0_28 = arith.constant 0 : index
    %c2_29 = arith.constant 2 : index
    %c0_30 = arith.constant 0 : index
    %c0_31 = arith.constant 0 : index
    %18 = vector.load %arg0[%c0_28, %c2_29, %c0_30, %c0_31] : memref<2x18x18x4xf32, #tpu.memory_space<vmem>>, vector<2x16x16x4xf32>
    %19 = vector.shape_cast %18 : vector<2x16x16x4xf32> to vector<512x4xf32>
    %c0_32 = arith.constant 0 : index
    %c24 = arith.constant 24 : index
    %20 = vector.load %arg5[%c0_32, %c24] : memref<512x36xf32, #tpu.memory_space<vmem>>, vector<512x4xf32>
    tpu.vector_store %arg5[%c0_32, %c24], %19 {strides = array<i32>} : memref<512x36xf32, #tpu.memory_space<vmem>>, vector<512x4xf32>,
    %c0_33 = arith.constant 0 : index
    %c2_34 = arith.constant 2 : index
    %c1_35 = arith.constant 1 : index
    %c0_36 = arith.constant 0 : index
    %21 = vector.load %arg0[%c0_33, %c2_34, %c1_35, %c0_36] : memref<2x18x18x4xf32, #tpu.memory_space<vmem>>, vector<2x16x16x4xf32>
    %22 = vector.shape_cast %21 : vector<2x16x16x4xf32> to vector<512x4xf32>
    %c0_37 = arith.constant 0 : index
    %c28 = arith.constant 28 : index
    %23 = vector.load %arg5[%c0_37, %c28] : memref<512x36xf32, #tpu.memory_space<vmem>>, vector<512x4xf32>
    tpu.vector_store %arg5[%c0_37, %c28], %22 {strides = array<i32>} : memref<512x36xf32, #tpu.memory_space<vmem>>, vector<512x4xf32>,
    %c0_38 = arith.constant 0 : index
    %c2_39 = arith.constant 2 : index
    %c2_40 = arith.constant 2 : index
    %c0_41 = arith.constant 0 : index
    %24 = vector.load %arg0[%c0_38, %c2_39, %c2_40, %c0_41] : memref<2x18x18x4xf32, #tpu.memory_space<vmem>>, vector<2x16x16x4xf32>
    %25 = vector.shape_cast %24 : vector<2x16x16x4xf32> to vector<512x4xf32>
    %c0_42 = arith.constant 0 : index
    %c32 = arith.constant 32 : index
    %26 = vector.load %arg5[%c0_42, %c32] : memref<512x36xf32, #tpu.memory_space<vmem>>, vector<512x4xf32>
    tpu.vector_store %arg5[%c0_42, %c32], %25 {strides = array<i32>} : memref<512x36xf32, #tpu.memory_space<vmem>>, vector<512x4xf32>,
    %c0_43 = arith.constant 0 : index
    %c0_44 = arith.constant 0 : index
    %27 = vector.load %arg5[%c0_43, %c0_44] : memref<512x36xf32, #tpu.memory_space<vmem>>, vector<512x36xf32>
    %c0_45 = arith.constant 0 : index
    %c0_46 = arith.constant 0 : index
    %28 = vector.load %arg1[%c0_45, %c0_46] : memref<8x36xf32, #tpu.memory_space<vmem>>, vector<8x36xf32>
    %cst = arith.constant dense<0.000000e+00> : vector<8x512xf32>
    %29 = tpu.matmul %28, %27, %cst {dimension_numbers = #tpu.dot_dimension_numbers<[1], [1], [0], [0], [0, 0, 1, 0], [], []>} : vector<8x36xf32>, vector<512x36xf32>, vector<8x512xf32> -> vector<8x512xf32>
    %c0_47 = arith.constant 0 : index
    %c0_48 = arith.constant 0 : index
    %30 = vector.load %arg2[%c0_47, %c0_48] : memref<8x1xf32, #tpu.memory_space<vmem>>, vector<8x1xf32>
    %31 = vector.broadcast %30 : vector<8x1xf32> to vector<8x512xf32>
    %32 = arith.addf %29, %31 : vector<8x512xf32>
    %cst_49 = arith.constant 0.000000e+00 : f32
    %33 = vector.broadcast %cst_49 : f32 to vector<8x512xf32>
    %34 = arith.maximumf %32, %33 : vector<8x512xf32>
    %c0_50 = arith.constant 0 : index
    %c0_51 = arith.constant 0 : index
    %35 = vector.load %arg3[%c0_50, %c0_51] : memref<2x512xf32, #tpu.memory_space<vmem>>, vector<2x512xf32>
    %cst_52 = arith.constant dense<0.000000e+00> : vector<2x8xf32>
    %36 = tpu.matmul %35, %34, %cst_52 {dimension_numbers = #tpu.dot_dimension_numbers<[1], [1], [0], [0], [0, 0, 1, 0], [], []>} : vector<2x512xf32>, vector<8x512xf32>, vector<2x8xf32> -> vector<2x8xf32>
    %c0_53 = arith.constant 0 : index
    %c0_54 = arith.constant 0 : index
    %37 = vector.load %arg4[%c0_53, %c0_54] : memref<2x8xf32, #tpu.memory_space<vmem>>, vector<2x8xf32>
    tpu.vector_store %arg4[%c0_53, %c0_54], %36 {strides = array<i32>} : memref<2x8xf32, #tpu.memory_space<vmem>>, vector<2x8xf32>,
    return
  }
}

</mosaic_0001>

<llo_original>
// kernel: feature_extractor.1
$region0: #{feature_extractor.1}
  #allocation0 [shape = 'u32[]', space=smem, size = 0x4, offset = 0x4, fixed_abs, tag = 'smem constant byte address 0x4 - core index']
  #allocation1 [shape = 'u32[144,128]{1,0:T(1,128)}', space=vmem, size = 0x12000, scoped, tag = 'internal scratch']
  #allocation2 [shape = 'f32[512,36]{1,0:T(8,128)}', space=vmem, size = 0x40000, scoped, tag = 'scratch operand']
  %s0 = inlined_call_operand.vmem [shape: f32[2,18,18,4], index: 0, kind: input, shape index: {}]
  %s1 = inlined_call_operand.vmem [shape: f32[8,36], index: 1, kind: input, shape index: {}]
  %s2 = inlined_call_operand.vmem [shape: f32[8,1], index: 2, kind: input, shape index: {}]
  %s3 = inlined_call_operand.vmem [shape: f32[2,512], index: 3, kind: input, shape index: {}]
  %s4 = inlined_call_operand.hbm [shape: f32[2,8], index: 4, kind: output, shape index: {}]
  %s5 = sld [smem:[#allocation0]]
  $region26: #{feature_extractor.1} parent=0
    _
  %s7 = ssub.s32 1, %s5
  %s8 = scalar_select 0, %s7, %s5
  $region1: #{feature_extractor.1} parent=0
    #allocation3 [shape = 'u8[1024]{0}', space=vmem, size = 0x400, scoped, tag = 'output window, operand 0, single buffered']
    #allocation4 [shape = 's32[1]{0}', space=sflag, size = 0x4, scoped, tag = 'scoped memory for feature_extractor.1']
    %9 = vsyncpa [#allocation4], 0
    // Predicated region
    $region2: #{feature_extractor.1} parent=1 // pred_check
      _
    $region3: #{feature_extractor.1} parent=1 // pred_check_branch
      %11 = sbr.rel (0) target = $region5
    $region4: #{feature_extractor.1} parent=1 // pred_region
      _
    $region5: #{feature_extractor.1} parent=1 // pred_fallthru
      _
    // Predicated region
    $region6: #{feature_extractor.1} parent=1 // pred_check
      _
    $region7: #{feature_extractor.1} parent=1 // pred_check_branch
      %13 = sbr.rel (0) target = $region9
    $region8: #{feature_extractor.1} parent=1 // pred_region
      _
    $region9: #{feature_extractor.1} parent=1 // pred_fallthru
      _
    // Predicated region
    $region10: #{feature_extractor.1} parent=1 // pred_check
      _
    $region11: #{feature_extractor.1} parent=1 // pred_check_branch
      %15 = sbr.rel (0) target = $region13
    $region12: #{feature_extractor.1} parent=1 // pred_region
      _
    $region13: #{feature_extractor.1} parent=1 // pred_fallthru
      _
    // Predicated region
    $region14: #{feature_extractor.1} parent=1 // pred_check
      _
    $region15: #{feature_extractor.1} parent=1 // pred_check_branch
      %17 = sbr.rel (0) target = $region17
    $region16: #{feature_extractor.1} parent=1 // pred_region
      _
    $region17: #{feature_extractor.1} parent=1 // pred_fallthru
      _
    %v18 = vld [vmem:[%s0] sm:$0xff]
    %v19 = vld [vmem:[%s0 + $0x8] sm:$0xff]
    %v20 = vld [vmem:[%s0 + $0x18] sm:$0xff]
    %v21 = vld [vmem:[%s0 + $0x20] sm:$0xff]
    %v22 = vld [vmem:[%s0 + $0x30] sm:$0xff]
    %v23 = vld [vmem:[%s0 + $0x38] sm:$0xff]
    %v24 = vld [vmem:[%s0 + $0x48] sm:$0xff]
    %v25 = vld [vmem:[%s0 + $0x50] sm:$0xff]
    %v26 = vld [vmem:[%s0 + $0x60] sm:$0xff]
    %v27 = vld [vmem:[%s0 + $0x68] sm:$0xff]
    %v28 = vld [vmem:[%s0 + $0x78] sm:$0xff]
    %v29 = vld [vmem:[%s0 + $0x80] sm:$0xff]
    %v30 = vld [vmem:[%s0 + $0x90] sm:$0xff]
    %v31 = vld [vmem:[%s0 + $0x98] sm:$0xff]
    %v32 = vld [vmem:[%s0 + $0xa8] sm:$0xff]
    %v33 = vld [vmem:[%s0 + $0xb0] sm:$0xff]
    %v34 = vld [vmem:[%s0 + $0xc0] sm:$0xff]
    %v35 = vld [vmem:[%s0 + $0xc8] sm:$0xff]
    %v36 = vld [vmem:[%s0 + $0xd8] sm:$0xff]
    %v37 = vld [vmem:[%s0 + $0xe0] sm:$0xff]
    %v38 = vld [vmem:[%s0 + $0xf0] sm:$0xff]
    %v39 = vld [vmem:[%s0 + $0xf8] sm:$0xff]
    %v40 = vld [vmem:[%s0 + $0x108] sm:$0xff]
    %v41 = vld [vmem:[%s0 + $0x110] sm:$0xff]
    %v42 = vld [vmem:[%s0 + $0x120] sm:$0xff]
    %v43 = vld [vmem:[%s0 + $0x128] sm:$0xff]
    %v44 = vld [vmem:[%s0 + $0x138] sm:$0xff]
    %v45 = vld [vmem:[%s0 + $0x140] sm:$0xff]
    %v46 = vld [vmem:[%s0 + $0x150] sm:$0xff]
    %v47 = vld [vmem:[%s0 + $0x158] sm:$0xff]
    %v48 = vld [vmem:[%s0 + $0x168] sm:$0xff]
    %v49 = vld [vmem:[%s0 + $0x170] sm:$0xff]
    %v50 = vld [vmem:[%s0 + $0x1b0] sm:$0xff]
    %v51 = vld [vmem:[%s0 + $0x1b8] sm:$0xff]
    %v52 = vld [vmem:[%s0 + $0x1c8] sm:$0xff]
    %v53 = vld [vmem:[%s0 + $0x1d0] sm:$0xff]
    %v54 = vld [vmem:[%s0 + $0x1e0] sm:$0xff]
    %v55 = vld [vmem:[%s0 + $0x1e8] sm:$0xff]
    %v56 = vld [vmem:[%s0 + $0x1f8] sm:$0xff]
    %v57 = vld [vmem:[%s0 + $0x200] sm:$0xff]
    %v58 = vld [vmem:[%s0 + $0x210] sm:$0xff]
    %v59 = vld [vmem:[%s0 + $0x218] sm:$0xff]
    %v60 = vld [vmem:[%s0 + $0x228] sm:$0xff]
    %v61 = vld [vmem:[%s0 + $0x230] sm:$0xff]
    %v62 = vld [vmem:[%s0 + $0x240] sm:$0xff]
    %v63 = vld [vmem:[%s0 + $0x248] sm:$0xff]
    %v64 = vld [vmem:[%s0 + $0x258] sm:$0xff]
    %v65 = vld [vmem:[%s0 + $0x260] sm:$0xff]
    %v66 = vld [vmem:[%s0 + $0x270] sm:$0xff]
    %v67 = vld [vmem:[%s0 + $0x278] sm:$0xff]
    %v68 = vld [vmem:[%s0 + $0x288] sm:$0xff]
    %v69 = vld [vmem:[%s0 + $0x290] sm:$0xff]
    %v70 = vld [vmem:[%s0 + $0x2a0] sm:$0xff]
    %v71 = vld [vmem:[%s0 + $0x2a8] sm:$0xff]
    %v72 = vld [vmem:[%s0 + $0x2b8] sm:$0xff]
    %v73 = vld [vmem:[%s0 + $0x2c0] sm:$0xff]
    %v74 = vld [vmem:[%s0 + $0x2d0] sm:$0xff]
    %v75 = vld [vmem:[%s0 + $0x2d8] sm:$0xff]
    %v76 = vld [vmem:[%s0 + $0x2e8] sm:$0xff]
    %v77 = vld [vmem:[%s0 + $0x2f0] sm:$0xff]
    %v78 = vld [vmem:[%s0 + $0x300] sm:$0xff]
    %v79 = vld [vmem:[%s0 + $0x308] sm:$0xff]
    %v80 = vld [vmem:[%s0 + $0x318] sm:$0xff]
    %v81 = vld [vmem:[%s0 + $0x320] sm:$0xff]
    %vm82 = vcmask 31744
    %83 = vst.msk [vmem:[#allocation2] sm:$0xff] %vm82, %v18
    %84 = vst.msk [vmem:[#allocation2 + $0x8] sm:$0xff] %vm82, %v19
    %85 = vst.msk [vmem:[#allocation2 + $0x10] sm:$0xff] %vm82, %v20
    %86 = vst.msk [vmem:[#allocation2 + $0x18] sm:$0xff] %vm82, %v21
    %87 = vst.msk [vmem:[#allocation2 + $0x20] sm:$0xff] %vm82, %v22
    %88 = vst.msk [vmem:[#allocation2 + $0x28] sm:$0xff] %vm82, %v23
    %89 = vst.msk [vmem:[#allocation2 + $0x30] sm:$0xff] %vm82, %v24
    %90 = vst.msk [vmem:[#allocation2 + $0x38] sm:$0xff] %vm82, %v25
    %91 = vst.msk [vmem:[#allocation2 + $0x40] sm:$0xff] %vm82, %v26
    %92 = vst.msk [vmem:[#allocation2 + $0x48] sm:$0xff] %vm82, %v27
    %93 = vst.msk [vmem:[#allocation2 + $0x50] sm:$0xff] %vm82, %v28
    %94 = vst.msk [vmem:[#allocation2 + $0x58] sm:$0xff] %vm82, %v29
    %95 = vst.msk [vmem:[#allocation2 + $0x60] sm:$0xff] %vm82, %v30
    %96 = vst.msk [vmem:[#allocation2 + $0x68] sm:$0xff] %vm82, %v31
    %97 = vst.msk [vmem:[#allocation2 + $0x70] sm:$0xff] %vm82, %v32
    %98 = vst.msk [vmem:[#allocation2 + $0x78] sm:$0xff] %vm82, %v33
    %99 = vst.msk [vmem:[#allocation2 + $0x80] sm:$0xff] %vm82, %v34
    %100 = vst.msk [vmem:[#allocation2 + $0x88] sm:$0xff] %vm82, %v35
    %101 = vst.msk [vmem:[#allocation2 + $0x90] sm:$0xff] %vm82, %v36
    %102 = vst.msk [vmem:[#allocation2 + $0x98] sm:$0xff] %vm82, %v37
    %103 = vst.msk [vmem:[#allocation2 + $0xa0] sm:$0xff] %vm82, %v38
    %104 = vst.msk [vmem:[#allocation2 + $0xa8] sm:$0xff] %vm82, %v39
    %105 = vst.msk [vmem:[#allocation2 + $0xb0] sm:$0xff] %vm82, %v40
    %106 = vst.msk [vmem:[#allocation2 + $0xb8] sm:$0xff] %vm82, %v41
    %107 = vst.msk [vmem:[#allocation2 + $0xc0] sm:$0xff] %vm82, %v42
    %108 = vst.msk [vmem:[#allocation2 + $0xc8] sm:$0xff] %vm82, %v43
    %109 = vst.msk [vmem:[#allocation2 + $0xd0] sm:$0xff] %vm82, %v44
    %110 = vst.msk [vmem:[#allocation2 + $0xd8] sm:$0xff] %vm82, %v45
    %111 = vst.msk [vmem:[#allocation2 + $0xe0] sm:$0xff] %vm82, %v46
    %112 = vst.msk [vmem:[#allocation2 + $0xe8] sm:$0xff] %vm82, %v47
    %113 = vst.msk [vmem:[#allocation2 + $0xf0] sm:$0xff] %vm82, %v48
    %114 = vst.msk [vmem:[#allocation2 + $0xf8] sm:$0xff] %vm82, %v49
    %115 = vst.msk [vmem:[#allocation2 + $0x100] sm:$0xff] %vm82, %v50
    %116 = vst.msk [vmem:[#allocation2 + $0x108] sm:$0xff] %vm82, %v51
    %117 = vst.msk [vmem:[#allocation2 + $0x110] sm:$0xff] %vm82, %v52
    %118 = vst.msk [vmem:[#allocation2 + $0x118] sm:$0xff] %vm82, %v53
    %119 = vst.msk [vmem:[#allocation2 + $0x120] sm:$0xff] %vm82, %v54
    %120 = vst.msk [vmem:[#allocation2 + $0x128] sm:$0xff] %vm82, %v55
    %121 = vst.msk [vmem:[#allocation2 + $0x130] sm:$0xff] %vm82, %v56
    %122 = vst.msk [vmem:[#allocation2 + $0x138] sm:$0xff] %vm82, %v57
    %123 = vst.msk [vmem:[#allocation2 + $0x140] sm:$0xff] %vm82, %v58
    %124 = vst.msk [vmem:[#allocation2 + $0x148] sm:$0xff] %vm82, %v59
    %125 = vst.msk [vmem:[#allocation2 + $0x150] sm:$0xff] %vm82, %v60
    %126 = vst.msk [vmem:[#allocation2 + $0x158] sm:$0xff] %vm82, %v61
    %127 = vst.msk [vmem:[#allocation2 + $0x160] sm:$0xff] %vm82, %v62
    %128 = vst.msk [vmem:[#allocation2 + $0x168] sm:$0xff] %vm82, %v63
    %129 = vst.msk [vmem:[#allocation2 + $0x170] sm:$0xff] %vm82, %v64
    %130 = vst.msk [vmem:[#allocation2 + $0x178] sm:$0xff] %vm82, %v65
    %131 = vst.msk [vmem:[#allocation2 + $0x180] sm:$0xff] %vm82, %v66
    %132 = vst.msk [vmem:[#allocation2 + $0x188] sm:$0xff] %vm82, %v67
    %133 = vst.msk [vmem:[#allocation2 + $0x190] sm:$0xff] %vm82, %v68
    %134 = vst.msk [vmem:[#allocation2 + $0x198] sm:$0xff] %vm82, %v69
    %135 = vst.msk [vmem:[#allocation2 + $0x1a0] sm:$0xff] %vm82, %v70
    %136 = vst.msk [vmem:[#allocation2 + $0x1a8] sm:$0xff] %vm82, %v71
    %137 = vst.msk [vmem:[#allocation2 + $0x1b0] sm:$0xff] %vm82, %v72
    %138 = vst.msk [vmem:[#allocation2 + $0x1b8] sm:$0xff] %vm82, %v73
    %139 = vst.msk [vmem:[#allocation2 + $0x1c0] sm:$0xff] %vm82, %v74
    %140 = vst.msk [vmem:[#allocation2 + $0x1c8] sm:$0xff] %vm82, %v75
    %141 = vst.msk [vmem:[#allocation2 + $0x1d0] sm:$0xff] %vm82, %v76
    %142 = vst.msk [vmem:[#allocation2 + $0x1d8] sm:$0xff] %vm82, %v77
    %143 = vst.msk [vmem:[#allocation2 + $0x1e0] sm:$0xff] %vm82, %v78
    %144 = vst.msk [vmem:[#allocation2 + $0x1e8] sm:$0xff] %vm82, %v79
    %145 = vst.msk [vmem:[#allocation2 + $0x1f0] sm:$0xff] %vm82, %v80
    %146 = vst.msk [vmem:[#allocation2 + $0x1f8] sm:$0xff] %vm82, %v81
    %v147 = vld [vmem:[%s0 + $0x1] sm:$0xff]
    %v148 = vld [vmem:[%s0 + $0x9] sm:$0xff]
    %v149 = vld [vmem:[%s0 + $0x19] sm:$0xff]
    %v150 = vld [vmem:[%s0 + $0x21] sm:$0xff]
    %v151 = vld [vmem:[%s0 + $0x31] sm:$0xff]
    %v152 = vld [vmem:[%s0 + $0x39] sm:$0xff]
    %v153 = vld [vmem:[%s0 + $0x49] sm:$0xff]
    %v154 = vld [vmem:[%s0 + $0x51] sm:$0xff]
    %v155 = vld [vmem:[%s0 + $0x61] sm:$0xff]
    %v156 = vld [vmem:[%s0 + $0x69] sm:$0xff]
    %v157 = vld [vmem:[%s0 + $0x79] sm:$0xff]
    %v158 = vld [vmem:[%s0 + $0x81] sm:$0xff]
    %v159 = vld [vmem:[%s0 + $0x91] sm:$0xff]
    %v160 = vld [vmem:[%s0 + $0x99] sm:$0xff]
    %v161 = vld [vmem:[%s0 + $0xa9] sm:$0xff]
    %v162 = vld [vmem:[%s0 + $0xb1] sm:$0xff]
    %v163 = vld [vmem:[%s0 + $0xc1] sm:$0xff]
    %v164 = vld [vmem:[%s0 + $0xc9] sm:$0xff]
    %v165 = vld [vmem:[%s0 + $0xd9] sm:$0xff]
    %v166 = vld [vmem:[%s0 + $0xe1] sm:$0xff]
    %v167 = vld [vmem:[%s0 + $0xf1] sm:$0xff]
    %v168 = vld [vmem:[%s0 + $0xf9] sm:$0xff]
    %v169 = vld [vmem:[%s0 + $0x109] sm:$0xff]
    %v170 = vld [vmem:[%s0 + $0x111] sm:$0xff]
    %v171 = vld [vmem:[%s0 + $0x121] sm:$0xff]
    %v172 = vld [vmem:[%s0 + $0x129] sm:$0xff]
    %v173 = vld [vmem:[%s0 + $0x139] sm:$0xff]
    %v174 = vld [vmem:[%s0 + $0x141] sm:$0xff]
    %v175 = vld [vmem:[%s0 + $0x151] sm:$0xff]
    %v176 = vld [vmem:[%s0 + $0x159] sm:$0xff]
    %v177 = vld [vmem:[%s0 + $0x169] sm:$0xff]
    %v178 = vld [vmem:[%s0 + $0x171] sm:$0xff]
    %v179 = vld [vmem:[%s0 + $0x1b1] sm:$0xff]
    %v180 = vld [vmem:[%s0 + $0x1b9] sm:$0xff]
    %v181 = vld [vmem:[%s0 + $0x1c9] sm:$0xff]
    %v182 = vld [vmem:[%s0 + $0x1d1] sm:$0xff]
    %v183 = vld [vmem:[%s0 + $0x1e1] sm:$0xff]
    %v184 = vld [vmem:[%s0 + $0x1e9] sm:$0xff]
    %v185 = vld [vmem:[%s0 + $0x1f9] sm:$0xff]
    %v186 = vld [vmem:[%s0 + $0x201] sm:$0xff]
    %v187 = vld [vmem:[%s0 + $0x211] sm:$0xff]
    %v188 = vld [vmem:[%s0 + $0x219] sm:$0xff]
    %v189 = vld [vmem:[%s0 + $0x229] sm:$0xff]
    %v190 = vld [vmem:[%s0 + $0x231] sm:$0xff]
    %v191 = vld [vmem:[%s0 + $0x241] sm:$0xff]
    %v192 = vld [vmem:[%s0 + $0x249] sm:$0xff]
    %v193 = vld [vmem:[%s0 + $0x259] sm:$0xff]
    %v194 = vld [vmem:[%s0 + $0x261] sm:$0xff]
    %v195 = vld [vmem:[%s0 + $0x271] sm:$0xff]
    %v196 = vld [vmem:[%s0 + $0x279] sm:$0xff]
    %v197 = vld [vmem:[%s0 + $0x289] sm:$0xff]
    %v198 = vld [vmem:[%s0 + $0x291] sm:$0xff]
    %v199 = vld [vmem:[%s0 + $0x2a1] sm:$0xff]
    %v200 = vld [vmem:[%s0 + $0x2a9] sm:$0xff]
    %v201 = vld [vmem:[%s0 + $0x2b9] sm:$0xff]
    %v202 = vld [vmem:[%s0 + $0x2c1] sm:$0xff]
    %v203 = vld [vmem:[%s0 + $0x2d1] sm:$0xff]
    %v204 = vld [vmem:[%s0 + $0x2d9] sm:$0xff]
    %v205 = vld [vmem:[%s0 + $0x2e9] sm:$0xff]
    %v206 = vld [vmem:[%s0 + $0x2f1] sm:$0xff]
    %v207 = vld [vmem:[%s0 + $0x301] sm:$0xff]
    %v208 = vld [vmem:[%s0 + $0x309] sm:$0xff]
    %v209 = vld [vmem:[%s0 + $0x319] sm:$0xff]
    %v210 = vld [vmem:[%s0 + $0x321] sm:$0xff]
    %275 = vrot.lane.b32.xlu0 %v147, 4
    %v276 = vpop.permute.xlu0 %275
    %277 = vrot.lane.b32.xlu0 %v148, 4
    %v278 = vpop.permute.xlu0 %277
    %279 = vrot.lane.b32.xlu0 %v149, 4
    %v280 = vpop.permute.xlu0 %279
    %281 = vrot.lane.b32.xlu0 %v150, 4
    %v282 = vpop.permute.xlu0 %281
    %283 = vrot.lane.b32.xlu0 %v151, 4
    %v284 = vpop.permute.xlu0 %283
    %285 = vrot.lane.b32.xlu0 %v152, 4
    %v286 = vpop.permute.xlu0 %285
    %287 = vrot.lane.b32.xlu0 %v153, 4
    %v288 = vpop.permute.xlu0 %287
    %289 = vrot.lane.b32.xlu0 %v154, 4
    %v290 = vpop.permute.xlu0 %289
    %291 = vrot.lane.b32.xlu0 %v155, 4
    %v292 = vpop.permute.xlu0 %291
    %293 = vrot.lane.b32.xlu0 %v156, 4
    %v294 = vpop.permute.xlu0 %293
    %295 = vrot.lane.b32.xlu0 %v157, 4
    %v296 = vpop.permute.xlu0 %295
    %297 = vrot.lane.b32.xlu0 %v158, 4
    %v298 = vpop.permute.xlu0 %297
    %299 = vrot.lane.b32.xlu0 %v159, 4
    %v300 = vpop.permute.xlu0 %299
    %301 = vrot.lane.b32.xlu0 %v160, 4
    %v302 = vpop.permute.xlu0 %301
    %303 = vrot.lane.b32.xlu0 %v161, 4
    %v304 = vpop.permute.xlu0 %303
    %305 = vrot.lane.b32.xlu0 %v162, 4
    %v306 = vpop.permute.xlu0 %305
    %307 = vrot.lane.b32.xlu0 %v163, 4
    %v308 = vpop.permute.xlu0 %307
    %309 = vrot.lane.b32.xlu0 %v164, 4
    %v310 = vpop.permute.xlu0 %309
    %311 = vrot.lane.b32.xlu0 %v165, 4
    %v312 = vpop.permute.xlu0 %311
    %313 = vrot.lane.b32.xlu0 %v166, 4
    %v314 = vpop.permute.xlu0 %313
    %315 = vrot.lane.b32.xlu0 %v167, 4
    %v316 = vpop.permute.xlu0 %315
    %317 = vrot.lane.b32.xlu0 %v168, 4
    %v318 = vpop.permute.xlu0 %317
    %319 = vrot.lane.b32.xlu0 %v169, 4
    %v320 = vpop.permute.xlu0 %319
    %321 = vrot.lane.b32.xlu0 %v170, 4
    %v322 = vpop.permute.xlu0 %321
    %323 = vrot.lane.b32.xlu0 %v171, 4
    %v324 = vpop.permute.xlu0 %323
    %325 = vrot.lane.b32.xlu0 %v172, 4
    %v326 = vpop.permute.xlu0 %325
    %327 = vrot.lane.b32.xlu0 %v173, 4
    %v328 = vpop.permute.xlu0 %327
    %329 = vrot.lane.b32.xlu0 %v174, 4
    %v330 = vpop.permute.xlu0 %329
    %331 = vrot.lane.b32.xlu0 %v175, 4
    %v332 = vpop.permute.xlu0 %331
    %333 = vrot.lane.b32.xlu0 %v176, 4
    %v334 = vpop.permute.xlu0 %333
    %335 = vrot.lane.b32.xlu0 %v177, 4
    %v336 = vpop.permute.xlu0 %335
    %337 = vrot.lane.b32.xlu0 %v178, 4
    %v338 = vpop.permute.xlu0 %337
    %339 = vrot.lane.b32.xlu0 %v179, 4
    %v340 = vpop.permute.xlu0 %339
    %341 = vrot.lane.b32.xlu0 %v180, 4
    %v342 = vpop.permute.xlu0 %341
    %343 = vrot.lane.b32.xlu0 %v181, 4
    %v344 = vpop.permute.xlu0 %343
    %345 = vrot.lane.b32.xlu0 %v182, 4
    %v346 = vpop.permute.xlu0 %345
    %347 = vrot.lane.b32.xlu0 %v183, 4
    %v348 = vpop.permute.xlu0 %347
    %349 = vrot.lane.b32.xlu0 %v184, 4
    %v350 = vpop.permute.xlu0 %349
    %351 = vrot.lane.b32.xlu0 %v185, 4
    %v352 = vpop.permute.xlu0 %351
    %353 = vrot.lane.b32.xlu0 %v186, 4
    %v354 = vpop.permute.xlu0 %353
    %355 = vrot.lane.b32.xlu0 %v187, 4
    %v356 = vpop.permute.xlu0 %355
    %357 = vrot.lane.b32.xlu0 %v188, 4
    %v358 = vpop.permute.xlu0 %357
    %359 = vrot.lane.b32.xlu0 %v189, 4
    %v360 = vpop.permute.xlu0 %359
    %361 = vrot.lane.b32.xlu0 %v190, 4
    %v362 = vpop.permute.xlu0 %361
    %363 = vrot.lane.b32.xlu0 %v191, 4
    %v364 = vpop.permute.xlu0 %363
    %365 = vrot.lane.b32.xlu0 %v192, 4
    %v366 = vpop.permute.xlu0 %365
    %367 = vrot.lane.b32.xlu0 %v193, 4
    %v368 = vpop.permute.xlu0 %367
    %369 = vrot.lane.b32.xlu0 %v194, 4
    %v370 = vpop.permute.xlu0 %369
    %371 = vrot.lane.b32.xlu0 %v195, 4
    %v372 = vpop.permute.xlu0 %371
    %373 = vrot.lane.b32.xlu0 %v196, 4
    %v374 = vpop.permute.xlu0 %373
    %375 = vrot.lane.b32.xlu0 %v197, 4
    %v376 = vpop.permute.xlu0 %375
    %377 = vrot.lane.b32.xlu0 %v198, 4
    %v378 = vpop.permute.xlu0 %377
    %379 = vrot.lane.b32.xlu0 %v199, 4
    %v380 = vpop.permute.xlu0 %379
    %381 = vrot.lane.b32.xlu0 %v200, 4
    %v382 = vpop.permute.xlu0 %381
    %383 = vrot.lane.b32.xlu0 %v201, 4
    %v384 = vpop.permute.xlu0 %383
    %385 = vrot.lane.b32.xlu0 %v202, 4
    %v386 = vpop.permute.xlu0 %385
    %387 = vrot.lane.b32.xlu0 %v203, 4
    %v388 = vpop.permute.xlu0 %387
    %389 = vrot.lane.b32.xlu0 %v204, 4
    %v390 = vpop.permute.xlu0 %389
    %391 = vrot.lane.b32.xlu0 %v205, 4
    %v392 = vpop.permute.xlu0 %391
    %393 = vrot.lane.b32.xlu0 %v206, 4
    %v394 = vpop.permute.xlu0 %393
    %395 = vrot.lane.b32.xlu0 %v207, 4
    %v396 = vpop.permute.xlu0 %395
    %397 = vrot.lane.b32.xlu0 %v208, 4
    %v398 = vpop.permute.xlu0 %397
    %399 = vrot.lane.b32.xlu0 %v209, 4
    %v400 = vpop.permute.xlu0 %399
    %401 = vrot.lane.b32.xlu0 %v210, 4
    %v402 = vpop.permute.xlu0 %401
    %vm467 = vcmask 64544
    %468 = vst.msk [vmem:[#allocation2] sm:$0xff] %vm467, %v276
    %469 = vst.msk [vmem:[#allocation2 + $0x8] sm:$0xff] %vm467, %v278
    %470 = vst.msk [vmem:[#allocation2 + $0x10] sm:$0xff] %vm467, %v280
    %471 = vst.msk [vmem:[#allocation2 + $0x18] sm:$0xff] %vm467, %v282
    %472 = vst.msk [vmem:[#allocation2 + $0x20] sm:$0xff] %vm467, %v284
    %473 = vst.msk [vmem:[#allocation2 + $0x28] sm:$0xff] %vm467, %v286
    %474 = vst.msk [vmem:[#allocation2 + $0x30] sm:$0xff] %vm467, %v288
    %475 = vst.msk [vmem:[#allocation2 + $0x38] sm:$0xff] %vm467, %v290
    %476 = vst.msk [vmem:[#allocation2 + $0x40] sm:$0xff] %vm467, %v292
    %477 = vst.msk [vmem:[#allocation2 + $0x48] sm:$0xff] %vm467, %v294
    %478 = vst.msk [vmem:[#allocation2 + $0x50] sm:$0xff] %vm467, %v296
    %479 = vst.msk [vmem:[#allocation2 + $0x58] sm:$0xff] %vm467, %v298
    %480 = vst.msk [vmem:[#allocation2 + $0x60] sm:$0xff] %vm467, %v300
    %481 = vst.msk [vmem:[#allocation2 + $0x68] sm:$0xff] %vm467, %v302
    %482 = vst.msk [vmem:[#allocation2 + $0x70] sm:$0xff] %vm467, %v304
    %483 = vst.msk [vmem:[#allocation2 + $0x78] sm:$0xff] %vm467, %v306
    %484 = vst.msk [vmem:[#allocation2 + $0x80] sm:$0xff] %vm467, %v308
    %485 = vst.msk [vmem:[#allocation2 + $0x88] sm:$0xff] %vm467, %v310
    %486 = vst.msk [vmem:[#allocation2 + $0x90] sm:$0xff] %vm467, %v312
    %487 = vst.msk [vmem:[#allocation2 + $0x98] sm:$0xff] %vm467, %v314
    %488 = vst.msk [vmem:[#allocation2 + $0xa0] sm:$0xff] %vm467, %v316
    %489 = vst.msk [vmem:[#allocation2 + $0xa8] sm:$0xff] %vm467, %v318
    %490 = vst.msk [vmem:[#allocation2 + $0xb0] sm:$0xff] %vm467, %v320
    %491 = vst.msk [vmem:[#allocation2 + $0xb8] sm:$0xff] %vm467, %v322
    %492 = vst.msk [vmem:[#allocation2 + $0xc0] sm:$0xff] %vm467, %v324
    %493 = vst.msk [vmem:[#allocation2 + $0xc8] sm:$0xff] %vm467, %v326
    %494 = vst.msk [vmem:[#allocation2 + $0xd0] sm:$0xff] %vm467, %v328
    %495 = vst.msk [vmem:[#allocation2 + $0xd8] sm:$0xff] %vm467, %v330
    %496 = vst.msk [vmem:[#allocation2 + $0xe0] sm:$0xff] %vm467, %v332
    %497 = vst.msk [vmem:[#allocation2 + $0xe8] sm:$0xff] %vm467, %v334
    %498 = vst.msk [vmem:[#allocation2 + $0xf0] sm:$0xff] %vm467, %v336
    %499 = vst.msk [vmem:[#allocation2 + $0xf8] sm:$0xff] %vm467, %v338
    %500 = vst.msk [vmem:[#allocation2 + $0x100] sm:$0xff] %vm467, %v340
    %501 = vst.msk [vmem:[#allocation2 + $0x108] sm:$0xff] %vm467, %v342
    %502 = vst.msk [vmem:[#allocation2 + $0x110] sm:$0xff] %vm467, %v344
    %503 = vst.msk [vmem:[#allocation2 + $0x118] sm:$0xff] %vm467, %v346
    %504 = vst.msk [vmem:[#allocation2 + $0x120] sm:$0xff] %vm467, %v348
    %505 = vst.msk [vmem:[#allocation2 + $0x128] sm:$0xff] %vm467, %v350
    %506 = vst.msk [vmem:[#allocation2 + $0x130] sm:$0xff] %vm467, %v352
    %507 = vst.msk [vmem:[#allocation2 + $0x138] sm:$0xff] %vm467, %v354
    %508 = vst.msk [vmem:[#allocation2 + $0x140] sm:$0xff] %vm467, %v356
    %509 = vst.msk [vmem:[#allocation2 + $0x148] sm:$0xff] %vm467, %v358
    %510 = vst.msk [vmem:[#allocation2 + $0x150] sm:$0xff] %vm467, %v360
    %511 = vst.msk [vmem:[#allocation2 + $0x158] sm:$0xff] %vm467, %v362
    %512 = vst.msk [vmem:[#allocation2 + $0x160] sm:$0xff] %vm467, %v364
    %513 = vst.msk [vmem:[#allocation2 + $0x168] sm:$0xff] %vm467, %v366
    %514 = vst.msk [vmem:[#allocation2 + $0x170] sm:$0xff] %vm467, %v368
    %515 = vst.msk [vmem:[#allocation2 + $0x178] sm:$0xff] %vm467, %v370
    %516 = vst.msk [vmem:[#allocation2 + $0x180] sm:$0xff] %vm467, %v372
    %517 = vst.msk [vmem:[#allocation2 + $0x188] sm:$0xff] %vm467, %v374
    %518 = vst.msk [vmem:[#allocation2 + $0x190] sm:$0xff] %vm467, %v376
    %519 = vst.msk [vmem:[#allocation2 + $0x198] sm:$0xff] %vm467, %v378
    %520 = vst.msk [vmem:[#allocation2 + $0x1a0] sm:$0xff] %vm467, %v380
    %521 = vst.msk [vmem:[#allocation2 + $0x1a8] sm:$0xff] %vm467, %v382
    %522 = vst.msk [vmem:[#allocation2 + $0x1b0] sm:$0xff] %vm467, %v384
    %523 = vst.msk [vmem:[#allocation2 + $0x1b8] sm:$0xff] %vm467, %v386
    %524 = vst.msk [vmem:[#allocation2 + $0x1c0] sm:$0xff] %vm467, %v388
    %525 = vst.msk [vmem:[#allocation2 + $0x1c8] sm:$0xff] %vm467, %v390
    %526 = vst.msk [vmem:[#allocation2 + $0x1d0] sm:$0xff] %vm467, %v392
    %527 = vst.msk [vmem:[#allocation2 + $0x1d8] sm:$0xff] %vm467, %v394
    %528 = vst.msk [vmem:[#allocation2 + $0x1e0] sm:$0xff] %vm467, %v396
    %529 = vst.msk [vmem:[#allocation2 + $0x1e8] sm:$0xff] %vm467, %v398
    %530 = vst.msk [vmem:[#allocation2 + $0x1f0] sm:$0xff] %vm467, %v400
    %531 = vst.msk [vmem:[#allocation2 + $0x1f8] sm:$0xff] %vm467, %v402
    %v532 = vld [vmem:[%s0 + $0x2] sm:$0xff]
    %v533 = vld [vmem:[%s0 + $0xa] sm:$0xff]
    %v534 = vld [vmem:[%s0 + $0x1a] sm:$0xff]
    %v535 = vld [vmem:[%s0 + $0x22] sm:$0xff]
    %v536 = vld [vmem:[%s0 + $0x32] sm:$0xff]
    %v537 = vld [vmem:[%s0 + $0x3a] sm:$0xff]
    %v538 = vld [vmem:[%s0 + $0x4a] sm:$0xff]
    %v539 = vld [vmem:[%s0 + $0x52] sm:$0xff]
    %v540 = vld [vmem:[%s0 + $0x62] sm:$0xff]
    %v541 = vld [vmem:[%s0 + $0x6a] sm:$0xff]
    %v542 = vld [vmem:[%s0 + $0x7a] sm:$0xff]
    %v543 = vld [vmem:[%s0 + $0x82] sm:$0xff]
    %v544 = vld [vmem:[%s0 + $0x92] sm:$0xff]
    %v545 = vld [vmem:[%s0 + $0x9a] sm:$0xff]
    %v546 = vld [vmem:[%s0 + $0xaa] sm:$0xff]
    %v547 = vld [vmem:[%s0 + $0xb2] sm:$0xff]
    %v548 = vld [vmem:[%s0 + $0xc2] sm:$0xff]
    %v549 = vld [vmem:[%s0 + $0xca] sm:$0xff]
    %v550 = vld [vmem:[%s0 + $0xda] sm:$0xff]
    %v551 = vld [vmem:[%s0 + $0xe2] sm:$0xff]
    %v552 = vld [vmem:[%s0 + $0xf2] sm:$0xff]
    %v553 = vld [vmem:[%s0 + $0xfa] sm:$0xff]
    %v554 = vld [vmem:[%s0 + $0x10a] sm:$0xff]
    %v555 = vld [vmem:[%s0 + $0x112] sm:$0xff]
    %v556 = vld [vmem:[%s0 + $0x122] sm:$0xff]
    %v557 = vld [vmem:[%s0 + $0x12a] sm:$0xff]
    %v558 = vld [vmem:[%s0 + $0x13a] sm:$0xff]
    %v559 = vld [vmem:[%s0 + $0x142] sm:$0xff]
    %v560 = vld [vmem:[%s0 + $0x152] sm:$0xff]
    %v561 = vld [vmem:[%s0 + $0x15a] sm:$0xff]
    %v562 = vld [vmem:[%s0 + $0x16a] sm:$0xff]
    %v563 = vld [vmem:[%s0 + $0x172] sm:$0xff]
    %v564 = vld [vmem:[%s0 + $0x1b2] sm:$0xff]
    %v565 = vld [vmem:[%s0 + $0x1ba] sm:$0xff]
    %v566 = vld [vmem:[%s0 + $0x1ca] sm:$0xff]
    %v567 = vld [vmem:[%s0 + $0x1d2] sm:$0xff]
    %v568 = vld [vmem:[%s0 + $0x1e2] sm:$0xff]
    %v569 = vld [vmem:[%s0 + $0x1ea] sm:$0xff]
    %v570 = vld [vmem:[%s0 + $0x1fa] sm:$0xff]
    %v571 = vld [vmem:[%s0 + $0x202] sm:$0xff]
    %v572 = vld [vmem:[%s0 + $0x212] sm:$0xff]
    %v573 = vld [vmem:[%s0 + $0x21a] sm:$0xff]
    %v574 = vld [vmem:[%s0 + $0x22a] sm:$0xff]
    %v575 = vld [vmem:[%s0 + $0x232] sm:$0xff]
    %v576 = vld [vmem:[%s0 + $0x242] sm:$0xff]
    %v577 = vld [vmem:[%s0 + $0x24a] sm:$0xff]
    %v578 = vld [vmem:[%s0 + $0x25a] sm:$0xff]
    %v579 = vld [vmem:[%s0 + $0x262] sm:$0xff]
    %v580 = vld [vmem:[%s0 + $0x272] sm:$0xff]
    %v581 = vld [vmem:[%s0 + $0x27a] sm:$0xff]
    %v582 = vld [vmem:[%s0 + $0x28a] sm:$0xff]
    %v583 = vld [vmem:[%s0 + $0x292] sm:$0xff]
    %v584 = vld [vmem:[%s0 + $0x2a2] sm:$0xff]
    %v585 = vld [vmem:[%s0 + $0x2aa] sm:$0xff]
    %v586 = vld [vmem:[%s0 + $0x2ba] sm:$0xff]
    %v587 = vld [vmem:[%s0 + $0x2c2] sm:$0xff]
    %v588 = vld [vmem:[%s0 + $0x2d2] sm:$0xff]
    %v589 = vld [vmem:[%s0 + $0x2da] sm:$0xff]
    %v590 = vld [vmem:[%s0 + $0x2ea] sm:$0xff]
    %v591 = vld [vmem:[%s0 + $0x2f2] sm:$0xff]
    %v592 = vld [vmem:[%s0 + $0x302] sm:$0xff]
    %v593 = vld [vmem:[%s0 + $0x30a] sm:$0xff]
    %v594 = vld [vmem:[%s0 + $0x31a] sm:$0xff]
    %v595 = vld [vmem:[%s0 + $0x322] sm:$0xff]
    %660 = vrot.lane.b32.xlu0 %v532, 8
    %v661 = vpop.permute.xlu0 %660
    %662 = vrot.lane.b32.xlu0 %v533, 8
    %v663 = vpop.permute.xlu0 %662
    %664 = vrot.lane.b32.xlu0 %v534, 8
    %v665 = vpop.permute.xlu0 %664
    %666 = vrot.lane.b32.xlu0 %v535, 8
    %v667 = vpop.permute.xlu0 %666
    %668 = vrot.lane.b32.xlu0 %v536, 8
    %v669 = vpop.permute.xlu0 %668
    %670 = vrot.lane.b32.xlu0 %v537, 8
    %v671 = vpop.permute.xlu0 %670
    %672 = vrot.lane.b32.xlu0 %v538, 8
    %v673 = vpop.permute.xlu0 %672
    %674 = vrot.lane.b32.xlu0 %v539, 8
    %v675 = vpop.permute.xlu0 %674
    %676 = vrot.lane.b32.xlu0 %v540, 8
    %v677 = vpop.permute.xlu0 %676
    %678 = vrot.lane.b32.xlu0 %v541, 8
    %v679 = vpop.permute.xlu0 %678
    %680 = vrot.lane.b32.xlu0 %v542, 8
    %v681 = vpop.permute.xlu0 %680
    %682 = vrot.lane.b32.xlu0 %v543, 8
    %v683 = vpop.permute.xlu0 %682
    %684 = vrot.lane.b32.xlu0 %v544, 8
    %v685 = vpop.permute.xlu0 %684
    %686 = vrot.lane.b32.xlu0 %v545, 8
    %v687 = vpop.permute.xlu0 %686
    %688 = vrot.lane.b32.xlu0 %v546, 8
    %v689 = vpop.permute.xlu0 %688
    %690 = vrot.lane.b32.xlu0 %v547, 8
    %v691 = vpop.permute.xlu0 %690
    %692 = vrot.lane.b32.xlu0 %v548, 8
    %v693 = vpop.permute.xlu0 %692
    %694 = vrot.lane.b32.xlu0 %v549, 8
    %v695 = vpop.permute.xlu0 %694
    %696 = vrot.lane.b32.xlu0 %v550, 8
    %v697 = vpop.permute.xlu0 %696
    %698 = vrot.lane.b32.xlu0 %v551, 8
    %v699 = vpop.permute.xlu0 %698
    %700 = vrot.lane.b32.xlu0 %v552, 8
    %v701 = vpop.permute.xlu0 %700
    %702 = vrot.lane.b32.xlu0 %v553, 8
    %v703 = vpop.permute.xlu0 %702
    %704 = vrot.lane.b32.xlu0 %v554, 8
    %v705 = vpop.permute.xlu0 %704
    %706 = vrot.lane.b32.xlu0 %v555, 8
    %v707 = vpop.permute.xlu0 %706
    %708 = vrot.lane.b32.xlu0 %v556, 8
    %v709 = vpop.permute.xlu0 %708
    %710 = vrot.lane.b32.xlu0 %v557, 8
    %v711 = vpop.permute.xlu0 %710
    %712 = vrot.lane.b32.xlu0 %v558, 8
    %v713 = vpop.permute.xlu0 %712
    %714 = vrot.lane.b32.xlu0 %v559, 8
    %v715 = vpop.permute.xlu0 %714
    %716 = vrot.lane.b32.xlu0 %v560, 8
    %v717 = vpop.permute.xlu0 %716
    %718 = vrot.lane.b32.xlu0 %v561, 8
    %v719 = vpop.permute.xlu0 %718
    %720 = vrot.lane.b32.xlu0 %v562, 8
    %v721 = vpop.permute.xlu0 %720
    %722 = vrot.lane.b32.xlu0 %v563, 8
    %v723 = vpop.permute.xlu0 %722
    %724 = vrot.lane.b32.xlu0 %v564, 8
    %v725 = vpop.permute.xlu0 %724
    %726 = vrot.lane.b32.xlu0 %v565, 8
    %v727 = vpop.permute.xlu0 %726
    %728 = vrot.lane.b32.xlu0 %v566, 8
    %v729 = vpop.permute.xlu0 %728
    %730 = vrot.lane.b32.xlu0 %v567, 8
    %v731 = vpop.permute.xlu0 %730
    %732 = vrot.lane.b32.xlu0 %v568, 8
    %v733 = vpop.permute.xlu0 %732
    %734 = vrot.lane.b32.xlu0 %v569, 8
    %v735 = vpop.permute.xlu0 %734
    %736 = vrot.lane.b32.xlu0 %v570, 8
    %v737 = vpop.permute.xlu0 %736
    %738 = vrot.lane.b32.xlu0 %v571, 8
    %v739 = vpop.permute.xlu0 %738
    %740 = vrot.lane.b32.xlu0 %v572, 8
    %v741 = vpop.permute.xlu0 %740
    %742 = vrot.lane.b32.xlu0 %v573, 8
    %v743 = vpop.permute.xlu0 %742
    %744 = vrot.lane.b32.xlu0 %v574, 8
    %v745 = vpop.permute.xlu0 %744
    %746 = vrot.lane.b32.xlu0 %v575, 8
    %v747 = vpop.permute.xlu0 %746
    %748 = vrot.lane.b32.xlu0 %v576, 8
    %v749 = vpop.permute.xlu0 %748
    %750 = vrot.lane.b32.xlu0 %v577, 8
    %v751 = vpop.permute.xlu0 %750
    %752 = vrot.lane.b32.xlu0 %v578, 8
    %v753 = vpop.permute.xlu0 %752
    %754 = vrot.lane.b32.xlu0 %v579, 8
    %v755 = vpop.permute.xlu0 %754
    %756 = vrot.lane.b32.xlu0 %v580, 8
    %v757 = vpop.permute.xlu0 %756
    %758 = vrot.lane.b32.xlu0 %v581, 8
    %v759 = vpop.permute.xlu0 %758
    %760 = vrot.lane.b32.xlu0 %v582, 8
    %v761 = vpop.permute.xlu0 %760
    %762 = vrot.lane.b32.xlu0 %v583, 8
    %v763 = vpop.permute.xlu0 %762
    %764 = vrot.lane.b32.xlu0 %v584, 8
    %v765 = vpop.permute.xlu0 %764
    %766 = vrot.lane.b32.xlu0 %v585, 8
    %v767 = vpop.permute.xlu0 %766
    %768 = vrot.lane.b32.xlu0 %v586, 8
    %v769 = vpop.permute.xlu0 %768
    %770 = vrot.lane.b32.xlu0 %v587, 8
    %v771 = vpop.permute.xlu0 %770
    %772 = vrot.lane.b32.xlu0 %v588, 8
    %v773 = vpop.permute.xlu0 %772
    %774 = vrot.lane.b32.xlu0 %v589, 8
    %v775 = vpop.permute.xlu0 %774
    %776 = vrot.lane.b32.xlu0 %v590, 8
    %v777 = vpop.permute.xlu0 %776
    %778 = vrot.lane.b32.xlu0 %v591, 8
    %v779 = vpop.permute.xlu0 %778
    %780 = vrot.lane.b32.xlu0 %v592, 8
    %v781 = vpop.permute.xlu0 %780
    %782 = vrot.lane.b32.xlu0 %v593, 8
    %v783 = vpop.permute.xlu0 %782
    %784 = vrot.lane.b32.xlu0 %v594, 8
    %v785 = vpop.permute.xlu0 %784
    %786 = vrot.lane.b32.xlu0 %v595, 8
    %v787 = vpop.permute.xlu0 %786
    %vm852 = vcmask 97344
    %853 = vst.msk [vmem:[#allocation2] sm:$0xff] %vm852, %v661
    %854 = vst.msk [vmem:[#allocation2 + $0x8] sm:$0xff] %vm852, %v663
    %855 = vst.msk [vmem:[#allocation2 + $0x10] sm:$0xff] %vm852, %v665
    %856 = vst.msk [vmem:[#allocation2 + $0x18] sm:$0xff] %vm852, %v667
    %857 = vst.msk [vmem:[#allocation2 + $0x20] sm:$0xff] %vm852, %v669
    %858 = vst.msk [vmem:[#allocation2 + $0x28] sm:$0xff] %vm852, %v671
    %859 = vst.msk [vmem:[#allocation2 + $0x30] sm:$0xff] %vm852, %v673
    %860 = vst.msk [vmem:[#allocation2 + $0x38] sm:$0xff] %vm852, %v675
    %861 = vst.msk [vmem:[#allocation2 + $0x40] sm:$0xff] %vm852, %v677
    %862 = vst.msk [vmem:[#allocation2 + $0x48] sm:$0xff] %vm852, %v679
    %863 = vst.msk [vmem:[#allocation2 + $0x50] sm:$0xff] %vm852, %v681
    %864 = vst.msk [vmem:[#allocation2 + $0x58] sm:$0xff] %vm852, %v683
    %865 = vst.msk [vmem:[#allocation2 + $0x60] sm:$0xff] %vm852, %v685
    %866 = vst.msk [vmem:[#allocation2 + $0x68] sm:$0xff] %vm852, %v687
    %867 = vst.msk [vmem:[#allocation2 + $0x70] sm:$0xff] %vm852, %v689
    %868 = vst.msk [vmem:[#allocation2 + $0x78] sm:$0xff] %vm852, %v691
    %869 = vst.msk [vmem:[#allocation2 + $0x80] sm:$0xff] %vm852, %v693
    %870 = vst.msk [vmem:[#allocation2 + $0x88] sm:$0xff] %vm852, %v695
    %871 = vst.msk [vmem:[#allocation2 + $0x90] sm:$0xff] %vm852, %v697
    %872 = vst.msk [vmem:[#allocation2 + $0x98] sm:$0xff] %vm852, %v699
    %873 = vst.msk [vmem:[#allocation2 + $0xa0] sm:$0xff] %vm852, %v701
    %874 = vst.msk [vmem:[#allocation2 + $0xa8] sm:$0xff] %vm852, %v703
    %875 = vst.msk [vmem:[#allocation2 + $0xb0] sm:$0xff] %vm852, %v705
    %876 = vst.msk [vmem:[#allocation2 + $0xb8] sm:$0xff] %vm852, %v707
    %877 = vst.msk [vmem:[#allocation2 + $0xc0] sm:$0xff] %vm852, %v709
    %878 = vst.msk [vmem:[#allocation2 + $0xc8] sm:$0xff] %vm852, %v711
    %879 = vst.msk [vmem:[#allocation2 + $0xd0] sm:$0xff] %vm852, %v713
    %880 = vst.msk [vmem:[#allocation2 + $0xd8] sm:$0xff] %vm852, %v715
    %881 = vst.msk [vmem:[#allocation2 + $0xe0] sm:$0xff] %vm852, %v717
    %882 = vst.msk [vmem:[#allocation2 + $0xe8] sm:$0xff] %vm852, %v719
    %883 = vst.msk [vmem:[#allocation2 + $0xf0] sm:$0xff] %vm852, %v721
    %884 = vst.msk [vmem:[#allocation2 + $0xf8] sm:$0xff] %vm852, %v723
    %885 = vst.msk [vmem:[#allocation2 + $0x100] sm:$0xff] %vm852, %v725
    %886 = vst.msk [vmem:[#allocation2 + $0x108] sm:$0xff] %vm852, %v727
    %887 = vst.msk [vmem:[#allocation2 + $0x110] sm:$0xff] %vm852, %v729
    %888 = vst.msk [vmem:[#allocation2 + $0x118] sm:$0xff] %vm852, %v731
    %889 = vst.msk [vmem:[#allocation2 + $0x120] sm:$0xff] %vm852, %v733
    %890 = vst.msk [vmem:[#allocation2 + $0x128] sm:$0xff] %vm852, %v735
    %891 = vst.msk [vmem:[#allocation2 + $0x130] sm:$0xff] %vm852, %v737
    %892 = vst.msk [vmem:[#allocation2 + $0x138] sm:$0xff] %vm852, %v739
    %893 = vst.msk [vmem:[#allocation2 + $0x140] sm:$0xff] %vm852, %v741
    %894 = vst.msk [vmem:[#allocation2 + $0x148] sm:$0xff] %vm852, %v743
    %895 = vst.msk [vmem:[#allocation2 + $0x150] sm:$0xff] %vm852, %v745
    %896 = vst.msk [vmem:[#allocation2 + $0x158] sm:$0xff] %vm852, %v747
    %897 = vst.msk [vmem:[#allocation2 + $0x160] sm:$0xff] %vm852, %v749
    %898 = vst.msk [vmem:[#allocation2 + $0x168] sm:$0xff] %vm852, %v751
    %899 = vst.msk [vmem:[#allocation2 + $0x170] sm:$0xff] %vm852, %v753
    %900 = vst.msk [vmem:[#allocation2 + $0x178] sm:$0xff] %vm852, %v755
    %901 = vst.msk [vmem:[#allocation2 + $0x180] sm:$0xff] %vm852, %v757
    %902 = vst.msk [vmem:[#allocation2 + $0x188] sm:$0xff] %vm852, %v759
    %903 = vst.msk [vmem:[#allocation2 + $0x190] sm:$0xff] %vm852, %v761
    %904 = vst.msk [vmem:[#allocation2 + $0x198] sm:$0xff] %vm852, %v763
    %905 = vst.msk [vmem:[#allocation2 + $0x1a0] sm:$0xff] %vm852, %v765
    %906 = vst.msk [vmem:[#allocation2 + $0x1a8] sm:$0xff] %vm852, %v767
    %907 = vst.msk [vmem:[#allocation2 + $0x1b0] sm:$0xff] %vm852, %v769
    %908 = vst.msk [vmem:[#allocation2 + $0x1b8] sm:$0xff] %vm852, %v771
    %909 = vst.msk [vmem:[#allocation2 + $0x1c0] sm:$0xff] %vm852, %v773
    %910 = vst.msk [vmem:[#allocation2 + $0x1c8] sm:$0xff] %vm852, %v775
    %911 = vst.msk [vmem:[#allocation2 + $0x1d0] sm:$0xff] %vm852, %v777
    %912 = vst.msk [vmem:[#allocation2 + $0x1d8] sm:$0xff] %vm852, %v779
    %913 = vst.msk [vmem:[#allocation2 + $0x1e0] sm:$0xff] %vm852, %v781
    %914 = vst.msk [vmem:[#allocation2 + $0x1e8] sm:$0xff] %vm852, %v783
    %915 = vst.msk [vmem:[#allocation2 + $0x1f0] sm:$0xff] %vm852, %v785
    %916 = vst.msk [vmem:[#allocation2 + $0x1f8] sm:$0xff] %vm852, %v787
    %s917 = scalar_lea.vmem %s0, 24
    %v918 = vld [vmem:[%s917] sm:$0xff]
    %v919 = vld [vmem:[%s917 + $0x8] sm:$0xff]
    %v920 = vld [vmem:[%s917 + $0x18] sm:$0xff]
    %v921 = vld [vmem:[%s917 + $0x20] sm:$0xff]
    %v922 = vld [vmem:[%s917 + $0x30] sm:$0xff]
    %v923 = vld [vmem:[%s917 + $0x38] sm:$0xff]
    %v924 = vld [vmem:[%s917 + $0x48] sm:$0xff]
    %v925 = vld [vmem:[%s917 + $0x50] sm:$0xff]
    %v926 = vld [vmem:[%s917 + $0x60] sm:$0xff]
    %v927 = vld [vmem:[%s917 + $0x68] sm:$0xff]
    %v928 = vld [vmem:[%s917 + $0x78] sm:$0xff]
    %v929 = vld [vmem:[%s917 + $0x80] sm:$0xff]
    %v930 = vld [vmem:[%s917 + $0x90] sm:$0xff]
    %v931 = vld [vmem:[%s917 + $0x98] sm:$0xff]
    %v932 = vld [vmem:[%s917 + $0xa8] sm:$0xff]
    %v933 = vld [vmem:[%s917 + $0xb0] sm:$0xff]
    %v934 = vld [vmem:[%s917 + $0xc0] sm:$0xff]
    %v935 = vld [vmem:[%s917 + $0xc8] sm:$0xff]
    %v936 = vld [vmem:[%s917 + $0xd8] sm:$0xff]
    %v937 = vld [vmem:[%s917 + $0xe0] sm:$0xff]
    %v938 = vld [vmem:[%s917 + $0xf0] sm:$0xff]
    %v939 = vld [vmem:[%s917 + $0xf8] sm:$0xff]
    %v940 = vld [vmem:[%s917 + $0x108] sm:$0xff]
    %v941 = vld [vmem:[%s917 + $0x110] sm:$0xff]
    %v942 = vld [vmem:[%s917 + $0x120] sm:$0xff]
    %v943 = vld [vmem:[%s917 + $0x128] sm:$0xff]
    %v944 = vld [vmem:[%s917 + $0x138] sm:$0xff]
    %v945 = vld [vmem:[%s917 + $0x140] sm:$0xff]
    %v946 = vld [vmem:[%s917 + $0x150] sm:$0xff]
    %v947 = vld [vmem:[%s917 + $0x158] sm:$0xff]
    %v948 = vld [vmem:[%s917 + $0x168] sm:$0xff]
    %v949 = vld [vmem:[%s917 + $0x170] sm:$0xff]
    %v950 = vld [vmem:[%s917 + $0x1b0] sm:$0xff]
    %v951 = vld [vmem:[%s917 + $0x1b8] sm:$0xff]
    %v952 = vld [vmem:[%s917 + $0x1c8] sm:$0xff]
    %v953 = vld [vmem:[%s917 + $0x1d0] sm:$0xff]
    %v954 = vld [vmem:[%s917 + $0x1e0] sm:$0xff]
    %v955 = vld [vmem:[%s917 + $0x1e8] sm:$0xff]
    %v956 = vld [vmem:[%s917 + $0x1f8] sm:$0xff]
    %v957 = vld [vmem:[%s917 + $0x200] sm:$0xff]
    %v958 = vld [vmem:[%s917 + $0x210] sm:$0xff]
    %v959 = vld [vmem:[%s917 + $0x218] sm:$0xff]
    %v960 = vld [vmem:[%s917 + $0x228] sm:$0xff]
    %v961 = vld [vmem:[%s917 + $0x230] sm:$0xff]
    %v962 = vld [vmem:[%s917 + $0x240] sm:$0xff]
    %v963 = vld [vmem:[%s917 + $0x248] sm:$0xff]
    %v964 = vld [vmem:[%s917 + $0x258] sm:$0xff]
    %v965 = vld [vmem:[%s917 + $0x260] sm:$0xff]
    %v966 = vld [vmem:[%s917 + $0x270] sm:$0xff]
    %v967 = vld [vmem:[%s917 + $0x278] sm:$0xff]
    %v968 = vld [vmem:[%s917 + $0x288] sm:$0xff]
    %v969 = vld [vmem:[%s917 + $0x290] sm:$0xff]
    %v970 = vld [vmem:[%s917 + $0x2a0] sm:$0xff]
    %v971 = vld [vmem:[%s917 + $0x2a8] sm:$0xff]
    %v972 = vld [vmem:[%s917 + $0x2b8] sm:$0xff]
    %v973 = vld [vmem:[%s917 + $0x2c0] sm:$0xff]
    %v974 = vld [vmem:[%s917 + $0x2d0] sm:$0xff]
    %v975 = vld [vmem:[%s917 + $0x2d8] sm:$0xff]
    %v976 = vld [vmem:[%s917 + $0x2e8] sm:$0xff]
    %v977 = vld [vmem:[%s917 + $0x2f0] sm:$0xff]
    %v978 = vld [vmem:[%s917 + $0x300] sm:$0xff]
    %v979 = vld [vmem:[%s917 + $0x308] sm:$0xff]
    %v980 = vld [vmem:[%s917 + $0x318] sm:$0xff]
    %v981 = vld [vmem:[%s917 + $0x320] sm:$0xff]
    %1046 = vrot.lane.b32.xlu0 %v918, 12
    %v1047 = vpop.permute.xlu0 %1046
    %1048 = vrot.lane.b32.xlu0 %v919, 12
    %v1049 = vpop.permute.xlu0 %1048
    %1050 = vrot.lane.b32.xlu0 %v920, 12
    %v1051 = vpop.permute.xlu0 %1050
    %1052 = vrot.lane.b32.xlu0 %v921, 12
    %v1053 = vpop.permute.xlu0 %1052
    %1054 = vrot.lane.b32.xlu0 %v922, 12
    %v1055 = vpop.permute.xlu0 %1054
    %1056 = vrot.lane.b32.xlu0 %v923, 12
    %v1057 = vpop.permute.xlu0 %1056
    %1058 = vrot.lane.b32.xlu0 %v924, 12
    %v1059 = vpop.permute.xlu0 %1058
    %1060 = vrot.lane.b32.xlu0 %v925, 12
    %v1061 = vpop.permute.xlu0 %1060
    %1062 = vrot.lane.b32.xlu0 %v926, 12
    %v1063 = vpop.permute.xlu0 %1062
    %1064 = vrot.lane.b32.xlu0 %v927, 12
    %v1065 = vpop.permute.xlu0 %1064
    %1066 = vrot.lane.b32.xlu0 %v928, 12
    %v1067 = vpop.permute.xlu0 %1066
    %1068 = vrot.lane.b32.xlu0 %v929, 12
    %v1069 = vpop.permute.xlu0 %1068
    %1070 = vrot.lane.b32.xlu0 %v930, 12
    %v1071 = vpop.permute.xlu0 %1070
    %1072 = vrot.lane.b32.xlu0 %v931, 12
    %v1073 = vpop.permute.xlu0 %1072
    %1074 = vrot.lane.b32.xlu0 %v932, 12
    %v1075 = vpop.permute.xlu0 %1074
    %1076 = vrot.lane.b32.xlu0 %v933, 12
    %v1077 = vpop.permute.xlu0 %1076
    %1078 = vrot.lane.b32.xlu0 %v934, 12
    %v1079 = vpop.permute.xlu0 %1078
    %1080 = vrot.lane.b32.xlu0 %v935, 12
    %v1081 = vpop.permute.xlu0 %1080
    %1082 = vrot.lane.b32.xlu0 %v936, 12
    %v1083 = vpop.permute.xlu0 %1082
    %1084 = vrot.lane.b32.xlu0 %v937, 12
    %v1085 = vpop.permute.xlu0 %1084
    %1086 = vrot.lane.b32.xlu0 %v938, 12
    %v1087 = vpop.permute.xlu0 %1086
    %1088 = vrot.lane.b32.xlu0 %v939, 12
    %v1089 = vpop.permute.xlu0 %1088
    %1090 = vrot.lane.b32.xlu0 %v940, 12
    %v1091 = vpop.permute.xlu0 %1090
    %1092 = vrot.lane.b32.xlu0 %v941, 12
    %v1093 = vpop.permute.xlu0 %1092
    %1094 = vrot.lane.b32.xlu0 %v942, 12
    %v1095 = vpop.permute.xlu0 %1094
    %1096 = vrot.lane.b32.xlu0 %v943, 12
    %v1097 = vpop.permute.xlu0 %1096
    %1098 = vrot.lane.b32.xlu0 %v944, 12
    %v1099 = vpop.permute.xlu0 %1098
    %1100 = vrot.lane.b32.xlu0 %v945, 12
    %v1101 = vpop.permute.xlu0 %1100
    %1102 = vrot.lane.b32.xlu0 %v946, 12
    %v1103 = vpop.permute.xlu0 %1102
    %1104 = vrot.lane.b32.xlu0 %v947, 12
    %v1105 = vpop.permute.xlu0 %1104
    %1106 = vrot.lane.b32.xlu0 %v948, 12
    %v1107 = vpop.permute.xlu0 %1106
    %1108 = vrot.lane.b32.xlu0 %v949, 12
    %v1109 = vpop.permute.xlu0 %1108
    %1110 = vrot.lane.b32.xlu0 %v950, 12
    %v1111 = vpop.permute.xlu0 %1110
    %1112 = vrot.lane.b32.xlu0 %v951, 12
    %v1113 = vpop.permute.xlu0 %1112
    %1114 = vrot.lane.b32.xlu0 %v952, 12
    %v1115 = vpop.permute.xlu0 %1114
    %1116 = vrot.lane.b32.xlu0 %v953, 12
    %v1117 = vpop.permute.xlu0 %1116
    %1118 = vrot.lane.b32.xlu0 %v954, 12
    %v1119 = vpop.permute.xlu0 %1118
    %1120 = vrot.lane.b32.xlu0 %v955, 12
    %v1121 = vpop.permute.xlu0 %1120
    %1122 = vrot.lane.b32.xlu0 %v956, 12
    %v1123 = vpop.permute.xlu0 %1122
    %1124 = vrot.lane.b32.xlu0 %v957, 12
    %v1125 = vpop.permute.xlu0 %1124
    %1126 = vrot.lane.b32.xlu0 %v958, 12
    %v1127 = vpop.permute.xlu0 %1126
    %1128 = vrot.lane.b32.xlu0 %v959, 12
    %v1129 = vpop.permute.xlu0 %1128
    %1130 = vrot.lane.b32.xlu0 %v960, 12
    %v1131 = vpop.permute.xlu0 %1130
    %1132 = vrot.lane.b32.xlu0 %v961, 12
    %v1133 = vpop.permute.xlu0 %1132
    %1134 = vrot.lane.b32.xlu0 %v962, 12
    %v1135 = vpop.permute.xlu0 %1134
    %1136 = vrot.lane.b32.xlu0 %v963, 12
    %v1137 = vpop.permute.xlu0 %1136
    %1138 = vrot.lane.b32.xlu0 %v964, 12
    %v1139 = vpop.permute.xlu0 %1138
    %1140 = vrot.lane.b32.xlu0 %v965, 12
    %v1141 = vpop.permute.xlu0 %1140
    %1142 = vrot.lane.b32.xlu0 %v966, 12
    %v1143 = vpop.permute.xlu0 %1142
    %1144 = vrot.lane.b32.xlu0 %v967, 12
    %v1145 = vpop.permute.xlu0 %1144
    %1146 = vrot.lane.b32.xlu0 %v968, 12
    %v1147 = vpop.permute.xlu0 %1146
    %1148 = vrot.lane.b32.xlu0 %v969, 12
    %v1149 = vpop.permute.xlu0 %1148
    %1150 = vrot.lane.b32.xlu0 %v970, 12
    %v1151 = vpop.permute.xlu0 %1150
    %1152 = vrot.lane.b32.xlu0 %v971, 12
    %v1153 = vpop.permute.xlu0 %1152
    %1154 = vrot.lane.b32.xlu0 %v972, 12
    %v1155 = vpop.permute.xlu0 %1154
    %1156 = vrot.lane.b32.xlu0 %v973, 12
    %v1157 = vpop.permute.xlu0 %1156
    %1158 = vrot.lane.b32.xlu0 %v974, 12
    %v1159 = vpop.permute.xlu0 %1158
    %1160 = vrot.lane.b32.xlu0 %v975, 12
    %v1161 = vpop.permute.xlu0 %1160
    %1162 = vrot.lane.b32.xlu0 %v976, 12
    %v1163 = vpop.permute.xlu0 %1162
    %1164 = vrot.lane.b32.xlu0 %v977, 12
    %v1165 = vpop.permute.xlu0 %1164
    %1166 = vrot.lane.b32.xlu0 %v978, 12
    %v1167 = vpop.permute.xlu0 %1166
    %1168 = vrot.lane.b32.xlu0 %v979, 12
    %v1169 = vpop.permute.xlu0 %1168
    %1170 = vrot.lane.b32.xlu0 %v980, 12
    %v1171 = vpop.permute.xlu0 %1170
    %1172 = vrot.lane.b32.xlu0 %v981, 12
    %v1173 = vpop.permute.xlu0 %1172
    %vm1238 = vcmask 130144
    %1239 = vst.msk [vmem:[#allocation2] sm:$0xff] %vm1238, %v1047
    %1240 = vst.msk [vmem:[#allocation2 + $0x8] sm:$0xff] %vm1238, %v1049
    %1241 = vst.msk [vmem:[#allocation2 + $0x10] sm:$0xff] %vm1238, %v1051
    %1242 = vst.msk [vmem:[#allocation2 + $0x18] sm:$0xff] %vm1238, %v1053
    %1243 = vst.msk [vmem:[#allocation2 + $0x20] sm:$0xff] %vm1238, %v1055
    %1244 = vst.msk [vmem:[#allocation2 + $0x28] sm:$0xff] %vm1238, %v1057
    %1245 = vst.msk [vmem:[#allocation2 + $0x30] sm:$0xff] %vm1238, %v1059
    %1246 = vst.msk [vmem:[#allocation2 + $0x38] sm:$0xff] %vm1238, %v1061
    %1247 = vst.msk [vmem:[#allocation2 + $0x40] sm:$0xff] %vm1238, %v1063
    %1248 = vst.msk [vmem:[#allocation2 + $0x48] sm:$0xff] %vm1238, %v1065
    %1249 = vst.msk [vmem:[#allocation2 + $0x50] sm:$0xff] %vm1238, %v1067
    %1250 = vst.msk [vmem:[#allocation2 + $0x58] sm:$0xff] %vm1238, %v1069
    %1251 = vst.msk [vmem:[#allocation2 + $0x60] sm:$0xff] %vm1238, %v1071
    %1252 = vst.msk [vmem:[#allocation2 + $0x68] sm:$0xff] %vm1238, %v1073
    %1253 = vst.msk [vmem:[#allocation2 + $0x70] sm:$0xff] %vm1238, %v1075
    %1254 = vst.msk [vmem:[#allocation2 + $0x78] sm:$0xff] %vm1238, %v1077
    %1255 = vst.msk [vmem:[#allocation2 + $0x80] sm:$0xff] %vm1238, %v1079
    %1256 = vst.msk [vmem:[#allocation2 + $0x88] sm:$0xff] %vm1238, %v1081
    %1257 = vst.msk [vmem:[#allocation2 + $0x90] sm:$0xff] %vm1238, %v1083
    %1258 = vst.msk [vmem:[#allocation2 + $0x98] sm:$0xff] %vm1238, %v1085
    %1259 = vst.msk [vmem:[#allocation2 + $0xa0] sm:$0xff] %vm1238, %v1087
    %1260 = vst.msk [vmem:[#allocation2 + $0xa8] sm:$0xff] %vm1238, %v1089
    %1261 = vst.msk [vmem:[#allocation2 + $0xb0] sm:$0xff] %vm1238, %v1091
    %1262 = vst.msk [vmem:[#allocation2 + $0xb8] sm:$0xff] %vm1238, %v1093
    %1263 = vst.msk [vmem:[#allocation2 + $0xc0] sm:$0xff] %vm1238, %v1095
    %1264 = vst.msk [vmem:[#allocation2 + $0xc8] sm:$0xff] %vm1238, %v1097
    %1265 = vst.msk [vmem:[#allocation2 + $0xd0] sm:$0xff] %vm1238, %v1099
    %1266 = vst.msk [vmem:[#allocation2 + $0xd8] sm:$0xff] %vm1238, %v1101
    %1267 = vst.msk [vmem:[#allocation2 + $0xe0] sm:$0xff] %vm1238, %v1103
    %1268 = vst.msk [vmem:[#allocation2 + $0xe8] sm:$0xff] %vm1238, %v1105
    %1269 = vst.msk [vmem:[#allocation2 + $0xf0] sm:$0xff] %vm1238, %v1107
    %1270 = vst.msk [vmem:[#allocation2 + $0xf8] sm:$0xff] %vm1238, %v1109
    %1271 = vst.msk [vmem:[#allocation2 + $0x100] sm:$0xff] %vm1238, %v1111
    %1272 = vst.msk [vmem:[#allocation2 + $0x108] sm:$0xff] %vm1238, %v1113
    %1273 = vst.msk [vmem:[#allocation2 + $0x110] sm:$0xff] %vm1238, %v1115
    %1274 = vst.msk [vmem:[#allocation2 + $0x118] sm:$0xff] %vm1238, %v1117
    %1275 = vst.msk [vmem:[#allocation2 + $0x120] sm:$0xff] %vm1238, %v1119
    %1276 = vst.msk [vmem:[#allocation2 + $0x128] sm:$0xff] %vm1238, %v1121
    %1277 = vst.msk [vmem:[#allocation2 + $0x130] sm:$0xff] %vm1238, %v1123
    %1278 = vst.msk [vmem:[#allocation2 + $0x138] sm:$0xff] %vm1238, %v1125
    %1279 = vst.msk [vmem:[#allocation2 + $0x140] sm:$0xff] %vm1238, %v1127
    %1280 = vst.msk [vmem:[#allocation2 + $0x148] sm:$0xff] %vm1238, %v1129
    %1281 = vst.msk [vmem:[#allocation2 + $0x150] sm:$0xff] %vm1238, %v1131
    %1282 = vst.msk [vmem:[#allocation2 + $0x158] sm:$0xff] %vm1238, %v1133
    %1283 = vst.msk [vmem:[#allocation2 + $0x160] sm:$0xff] %vm1238, %v1135
    %1284 = vst.msk [vmem:[#allocation2 + $0x168] sm:$0xff] %vm1238, %v1137
    %1285 = vst.msk [vmem:[#allocation2 + $0x170] sm:$0xff] %vm1238, %v1139
    %1286 = vst.msk [vmem:[#allocation2 + $0x178] sm:$0xff] %vm1238, %v1141
    %1287 = vst.msk [vmem:[#allocation2 + $0x180] sm:$0xff] %vm1238, %v1143
    %1288 = vst.msk [vmem:[#allocation2 + $0x188] sm:$0xff] %vm1238, %v1145
    %1289 = vst.msk [vmem:[#allocation2 + $0x190] sm:$0xff] %vm1238, %v1147
    %1290 = vst.msk [vmem:[#allocation2 + $0x198] sm:$0xff] %vm1238, %v1149
    %1291 = vst.msk [vmem:[#allocation2 + $0x1a0] sm:$0xff] %vm1238, %v1151
    %1292 = vst.msk [vmem:[#allocation2 + $0x1a8] sm:$0xff] %vm1238, %v1153
    %1293 = vst.msk [vmem:[#allocation2 + $0x1b0] sm:$0xff] %vm1238, %v1155
    %1294 = vst.msk [vmem:[#allocation2 + $0x1b8] sm:$0xff] %vm1238, %v1157
    %1295 = vst.msk [vmem:[#allocation2 + $0x1c0] sm:$0xff] %vm1238, %v1159
    %1296 = vst.msk [vmem:[#allocation2 + $0x1c8] sm:$0xff] %vm1238, %v1161
    %1297 = vst.msk [vmem:[#allocation2 + $0x1d0] sm:$0xff] %vm1238, %v1163
    %1298 = vst.msk [vmem:[#allocation2 + $0x1d8] sm:$0xff] %vm1238, %v1165
    %1299 = vst.msk [vmem:[#allocation2 + $0x1e0] sm:$0xff] %vm1238, %v1167
    %1300 = vst.msk [vmem:[#allocation2 + $0x1e8] sm:$0xff] %vm1238, %v1169
    %1301 = vst.msk [vmem:[#allocation2 + $0x1f0] sm:$0xff] %vm1238, %v1171
    %1302 = vst.msk [vmem:[#allocation2 + $0x1f8] sm:$0xff] %vm1238, %v1173
    %v1303 = vld [vmem:[%s917 + $0x1] sm:$0xff]
    %v1304 = vld [vmem:[%s917 + $0x9] sm:$0xff]
    %v1305 = vld [vmem:[%s917 + $0x19] sm:$0xff]
    %v1306 = vld [vmem:[%s917 + $0x21] sm:$0xff]
    %v1307 = vld [vmem:[%s917 + $0x31] sm:$0xff]
    %v1308 = vld [vmem:[%s917 + $0x39] sm:$0xff]
    %v1309 = vld [vmem:[%s917 + $0x49] sm:$0xff]
    %v1310 = vld [vmem:[%s917 + $0x51] sm:$0xff]
    %v1311 = vld [vmem:[%s917 + $0x61] sm:$0xff]
    %v1312 = vld [vmem:[%s917 + $0x69] sm:$0xff]
    %v1313 = vld [vmem:[%s917 + $0x79] sm:$0xff]
    %v1314 = vld [vmem:[%s917 + $0x81] sm:$0xff]
    %v1315 = vld [vmem:[%s917 + $0x91] sm:$0xff]
    %v1316 = vld [vmem:[%s917 + $0x99] sm:$0xff]
    %v1317 = vld [vmem:[%s917 + $0xa9] sm:$0xff]
    %v1318 = vld [vmem:[%s917 + $0xb1] sm:$0xff]
    %v1319 = vld [vmem:[%s917 + $0xc1] sm:$0xff]
    %v1320 = vld [vmem:[%s917 + $0xc9] sm:$0xff]
    %v1321 = vld [vmem:[%s917 + $0xd9] sm:$0xff]
    %v1322 = vld [vmem:[%s917 + $0xe1] sm:$0xff]
    %v1323 = vld [vmem:[%s917 + $0xf1] sm:$0xff]
    %v1324 = vld [vmem:[%s917 + $0xf9] sm:$0xff]
    %v1325 = vld [vmem:[%s917 + $0x109] sm:$0xff]
    %v1326 = vld [vmem:[%s917 + $0x111] sm:$0xff]
    %v1327 = vld [vmem:[%s917 + $0x121] sm:$0xff]
    %v1328 = vld [vmem:[%s917 + $0x129] sm:$0xff]
    %v1329 = vld [vmem:[%s917 + $0x139] sm:$0xff]
    %v1330 = vld [vmem:[%s917 + $0x141] sm:$0xff]
    %v1331 = vld [vmem:[%s917 + $0x151] sm:$0xff]
    %v1332 = vld [vmem:[%s917 + $0x159] sm:$0xff]
    %v1333 = vld [vmem:[%s917 + $0x169] sm:$0xff]
    %v1334 = vld [vmem:[%s917 + $0x171] sm:$0xff]
    %v1335 = vld [vmem:[%s917 + $0x1b1] sm:$0xff]
    %v1336 = vld [vmem:[%s917 + $0x1b9] sm:$0xff]
    %v1337 = vld [vmem:[%s917 + $0x1c9] sm:$0xff]
    %v1338 = vld [vmem:[%s917 + $0x1d1] sm:$0xff]
    %v1339 = vld [vmem:[%s917 + $0x1e1] sm:$0xff]
    %v1340 = vld [vmem:[%s917 + $0x1e9] sm:$0xff]
    %v1341 = vld [vmem:[%s917 + $0x1f9] sm:$0xff]
    %v1342 = vld [vmem:[%s917 + $0x201] sm:$0xff]
    %v1343 = vld [vmem:[%s917 + $0x211] sm:$0xff]
    %v1344 = vld [vmem:[%s917 + $0x219] sm:$0xff]
    %v1345 = vld [vmem:[%s917 + $0x229] sm:$0xff]
    %v1346 = vld [vmem:[%s917 + $0x231] sm:$0xff]
    %v1347 = vld [vmem:[%s917 + $0x241] sm:$0xff]
    %v1348 = vld [vmem:[%s917 + $0x249] sm:$0xff]
    %v1349 = vld [vmem:[%s917 + $0x259] sm:$0xff]
    %v1350 = vld [vmem:[%s917 + $0x261] sm:$0xff]
    %v1351 = vld [vmem:[%s917 + $0x271] sm:$0xff]
    %v1352 = vld [vmem:[%s917 + $0x279] sm:$0xff]
    %v1353 = vld [vmem:[%s917 + $0x289] sm:$0xff]
    %v1354 = vld [vmem:[%s917 + $0x291] sm:$0xff]
    %v1355 = vld [vmem:[%s917 + $0x2a1] sm:$0xff]
    %v1356 = vld [vmem:[%s917 + $0x2a9] sm:$0xff]
    %v1357 = vld [vmem:[%s917 + $0x2b9] sm:$0xff]
    %v1358 = vld [vmem:[%s917 + $0x2c1] sm:$0xff]
    %v1359 = vld [vmem:[%s917 + $0x2d1] sm:$0xff]
    %v1360 = vld [vmem:[%s917 + $0x2d9] sm:$0xff]
    %v1361 = vld [vmem:[%s917 + $0x2e9] sm:$0xff]
    %v1362 = vld [vmem:[%s917 + $0x2f1] sm:$0xff]
    %v1363 = vld [vmem:[%s917 + $0x301] sm:$0xff]
    %v1364 = vld [vmem:[%s917 + $0x309] sm:$0xff]
    %v1365 = vld [vmem:[%s917 + $0x319] sm:$0xff]
    %v1366 = vld [vmem:[%s917 + $0x321] sm:$0xff]
    %1431 = vrot.lane.b32.xlu0 %v1303, 16
    %v1432 = vpop.permute.xlu0 %1431
    %1433 = vrot.lane.b32.xlu0 %v1304, 16
    %v1434 = vpop.permute.xlu0 %1433
    %1435 = vrot.lane.b32.xlu0 %v1305, 16
    %v1436 = vpop.permute.xlu0 %1435
    %1437 = vrot.lane.b32.xlu0 %v1306, 16
    %v1438 = vpop.permute.xlu0 %1437
    %1439 = vrot.lane.b32.xlu0 %v1307, 16
    %v1440 = vpop.permute.xlu0 %1439
    %1441 = vrot.lane.b32.xlu0 %v1308, 16
    %v1442 = vpop.permute.xlu0 %1441
    %1443 = vrot.lane.b32.xlu0 %v1309, 16
    %v1444 = vpop.permute.xlu0 %1443
    %1445 = vrot.lane.b32.xlu0 %v1310, 16
    %v1446 = vpop.permute.xlu0 %1445
    %1447 = vrot.lane.b32.xlu0 %v1311, 16
    %v1448 = vpop.permute.xlu0 %1447
    %1449 = vrot.lane.b32.xlu0 %v1312, 16
    %v1450 = vpop.permute.xlu0 %1449
    %1451 = vrot.lane.b32.xlu0 %v1313, 16
    %v1452 = vpop.permute.xlu0 %1451
    %1453 = vrot.lane.b32.xlu0 %v1314, 16
    %v1454 = vpop.permute.xlu0 %1453
    %1455 = vrot.lane.b32.xlu0 %v1315, 16
    %v1456 = vpop.permute.xlu0 %1455
    %1457 = vrot.lane.b32.xlu0 %v1316, 16
    %v1458 = vpop.permute.xlu0 %1457
    %1459 = vrot.lane.b32.xlu0 %v1317, 16
    %v1460 = vpop.permute.xlu0 %1459
    %1461 = vrot.lane.b32.xlu0 %v1318, 16
    %v1462 = vpop.permute.xlu0 %1461
    %1463 = vrot.lane.b32.xlu0 %v1319, 16
    %v1464 = vpop.permute.xlu0 %1463
    %1465 = vrot.lane.b32.xlu0 %v1320, 16
    %v1466 = vpop.permute.xlu0 %1465
    %1467 = vrot.lane.b32.xlu0 %v1321, 16
    %v1468 = vpop.permute.xlu0 %1467
    %1469 = vrot.lane.b32.xlu0 %v1322, 16
    %v1470 = vpop.permute.xlu0 %1469
    %1471 = vrot.lane.b32.xlu0 %v1323, 16
    %v1472 = vpop.permute.xlu0 %1471
    %1473 = vrot.lane.b32.xlu0 %v1324, 16
    %v1474 = vpop.permute.xlu0 %1473
    %1475 = vrot.lane.b32.xlu0 %v1325, 16
    %v1476 = vpop.permute.xlu0 %1475
    %1477 = vrot.lane.b32.xlu0 %v1326, 16
    %v1478 = vpop.permute.xlu0 %1477
    %1479 = vrot.lane.b32.xlu0 %v1327, 16
    %v1480 = vpop.permute.xlu0 %1479
    %1481 = vrot.lane.b32.xlu0 %v1328, 16
    %v1482 = vpop.permute.xlu0 %1481
    %1483 = vrot.lane.b32.xlu0 %v1329, 16
    %v1484 = vpop.permute.xlu0 %1483
    %1485 = vrot.lane.b32.xlu0 %v1330, 16
    %v1486 = vpop.permute.xlu0 %1485
    %1487 = vrot.lane.b32.xlu0 %v1331, 16
    %v1488 = vpop.permute.xlu0 %1487
    %1489 = vrot.lane.b32.xlu0 %v1332, 16
    %v1490 = vpop.permute.xlu0 %1489
    %1491 = vrot.lane.b32.xlu0 %v1333, 16
    %v1492 = vpop.permute.xlu0 %1491
    %1493 = vrot.lane.b32.xlu0 %v1334, 16
    %v1494 = vpop.permute.xlu0 %1493
    %1495 = vrot.lane.b32.xlu0 %v1335, 16
    %v1496 = vpop.permute.xlu0 %1495
    %1497 = vrot.lane.b32.xlu0 %v1336, 16
    %v1498 = vpop.permute.xlu0 %1497
    %1499 = vrot.lane.b32.xlu0 %v1337, 16
    %v1500 = vpop.permute.xlu0 %1499
    %1501 = vrot.lane.b32.xlu0 %v1338, 16
    %v1502 = vpop.permute.xlu0 %1501
    %1503 = vrot.lane.b32.xlu0 %v1339, 16
    %v1504 = vpop.permute.xlu0 %1503
    %1505 = vrot.lane.b32.xlu0 %v1340, 16
    %v1506 = vpop.permute.xlu0 %1505
    %1507 = vrot.lane.b32.xlu0 %v1341, 16
    %v1508 = vpop.permute.xlu0 %1507
    %1509 = vrot.lane.b32.xlu0 %v1342, 16
    %v1510 = vpop.permute.xlu0 %1509
    %1511 = vrot.lane.b32.xlu0 %v1343, 16
    %v1512 = vpop.permute.xlu0 %1511
    %1513 = vrot.lane.b32.xlu0 %v1344, 16
    %v1514 = vpop.permute.xlu0 %1513
    %1515 = vrot.lane.b32.xlu0 %v1345, 16
    %v1516 = vpop.permute.xlu0 %1515
    %1517 = vrot.lane.b32.xlu0 %v1346, 16
    %v1518 = vpop.permute.xlu0 %1517
    %1519 = vrot.lane.b32.xlu0 %v1347, 16
    %v1520 = vpop.permute.xlu0 %1519
    %1521 = vrot.lane.b32.xlu0 %v1348, 16
    %v1522 = vpop.permute.xlu0 %1521
    %1523 = vrot.lane.b32.xlu0 %v1349, 16
    %v1524 = vpop.permute.xlu0 %1523
    %1525 = vrot.lane.b32.xlu0 %v1350, 16
    %v1526 = vpop.permute.xlu0 %1525
    %1527 = vrot.lane.b32.xlu0 %v1351, 16
    %v1528 = vpop.permute.xlu0 %1527
    %1529 = vrot.lane.b32.xlu0 %v1352, 16
    %v1530 = vpop.permute.xlu0 %1529
    %1531 = vrot.lane.b32.xlu0 %v1353, 16
    %v1532 = vpop.permute.xlu0 %1531
    %1533 = vrot.lane.b32.xlu0 %v1354, 16
    %v1534 = vpop.permute.xlu0 %1533
    %1535 = vrot.lane.b32.xlu0 %v1355, 16
    %v1536 = vpop.permute.xlu0 %1535
    %1537 = vrot.lane.b32.xlu0 %v1356, 16
    %v1538 = vpop.permute.xlu0 %1537
    %1539 = vrot.lane.b32.xlu0 %v1357, 16
    %v1540 = vpop.permute.xlu0 %1539
    %1541 = vrot.lane.b32.xlu0 %v1358, 16
    %v1542 = vpop.permute.xlu0 %1541
    %1543 = vrot.lane.b32.xlu0 %v1359, 16
    %v1544 = vpop.permute.xlu0 %1543
    %1545 = vrot.lane.b32.xlu0 %v1360, 16
    %v1546 = vpop.permute.xlu0 %1545
    %1547 = vrot.lane.b32.xlu0 %v1361, 16
    %v1548 = vpop.permute.xlu0 %1547
    %1549 = vrot.lane.b32.xlu0 %v1362, 16
    %v1550 = vpop.permute.xlu0 %1549
    %1551 = vrot.lane.b32.xlu0 %v1363, 16
    %v1552 = vpop.permute.xlu0 %1551
    %1553 = vrot.lane.b32.xlu0 %v1364, 16
    %v1554 = vpop.permute.xlu0 %1553
    %1555 = vrot.lane.b32.xlu0 %v1365, 16
    %v1556 = vpop.permute.xlu0 %1555
    %1557 = vrot.lane.b32.xlu0 %v1366, 16
    %v1558 = vpop.permute.xlu0 %1557
    %vm1623 = vcmask 162944
    %1624 = vst.msk [vmem:[#allocation2] sm:$0xff] %vm1623, %v1432
    %1625 = vst.msk [vmem:[#allocation2 + $0x8] sm:$0xff] %vm1623, %v1434
    %1626 = vst.msk [vmem:[#allocation2 + $0x10] sm:$0xff] %vm1623, %v1436
    %1627 = vst.msk [vmem:[#allocation2 + $0x18] sm:$0xff] %vm1623, %v1438
    %1628 = vst.msk [vmem:[#allocation2 + $0x20] sm:$0xff] %vm1623, %v1440
    %1629 = vst.msk [vmem:[#allocation2 + $0x28] sm:$0xff] %vm1623, %v1442
    %1630 = vst.msk [vmem:[#allocation2 + $0x30] sm:$0xff] %vm1623, %v1444
    %1631 = vst.msk [vmem:[#allocation2 + $0x38] sm:$0xff] %vm1623, %v1446
    %1632 = vst.msk [vmem:[#allocation2 + $0x40] sm:$0xff] %vm1623, %v1448
    %1633 = vst.msk [vmem:[#allocation2 + $0x48] sm:$0xff] %vm1623, %v1450
    %1634 = vst.msk [vmem:[#allocation2 + $0x50] sm:$0xff] %vm1623, %v1452
    %1635 = vst.msk [vmem:[#allocation2 + $0x58] sm:$0xff] %vm1623, %v1454
    %1636 = vst.msk [vmem:[#allocation2 + $0x60] sm:$0xff] %vm1623, %v1456
    %1637 = vst.msk [vmem:[#allocation2 + $0x68] sm:$0xff] %vm1623, %v1458
    %1638 = vst.msk [vmem:[#allocation2 + $0x70] sm:$0xff] %vm1623, %v1460
    %1639 = vst.msk [vmem:[#allocation2 + $0x78] sm:$0xff] %vm1623, %v1462
    %1640 = vst.msk [vmem:[#allocation2 + $0x80] sm:$0xff] %vm1623, %v1464
    %1641 = vst.msk [vmem:[#allocation2 + $0x88] sm:$0xff] %vm1623, %v1466
    %1642 = vst.msk [vmem:[#allocation2 + $0x90] sm:$0xff] %vm1623, %v1468
    %1643 = vst.msk [vmem:[#allocation2 + $0x98] sm:$0xff] %vm1623, %v1470
    %1644 = vst.msk [vmem:[#allocation2 + $0xa0] sm:$0xff] %vm1623, %v1472
    %1645 = vst.msk [vmem:[#allocation2 + $0xa8] sm:$0xff] %vm1623, %v1474
    %1646 = vst.msk [vmem:[#allocation2 + $0xb0] sm:$0xff] %vm1623, %v1476
    %1647 = vst.msk [vmem:[#allocation2 + $0xb8] sm:$0xff] %vm1623, %v1478
    %1648 = vst.msk [vmem:[#allocation2 + $0xc0] sm:$0xff] %vm1623, %v1480
    %1649 = vst.msk [vmem:[#allocation2 + $0xc8] sm:$0xff] %vm1623, %v1482
    %1650 = vst.msk [vmem:[#allocation2 + $0xd0] sm:$0xff] %vm1623, %v1484
    %1651 = vst.msk [vmem:[#allocation2 + $0xd8] sm:$0xff] %vm1623, %v1486
    %1652 = vst.msk [vmem:[#allocation2 + $0xe0] sm:$0xff] %vm1623, %v1488
    %1653 = vst.msk [vmem:[#allocation2 + $0xe8] sm:$0xff] %vm1623, %v1490
    %1654 = vst.msk [vmem:[#allocation2 + $0xf0] sm:$0xff] %vm1623, %v1492
    %1655 = vst.msk [vmem:[#allocation2 + $0xf8] sm:$0xff] %vm1623, %v1494
    %1656 = vst.msk [vmem:[#allocation2 + $0x100] sm:$0xff] %vm1623, %v1496
    %1657 = vst.msk [vmem:[#allocation2 + $0x108] sm:$0xff] %vm1623, %v1498
    %1658 = vst.msk [vmem:[#allocation2 + $0x110] sm:$0xff] %vm1623, %v1500
    %1659 = vst.msk [vmem:[#allocation2 + $0x118] sm:$0xff] %vm1623, %v1502
    %1660 = vst.msk [vmem:[#allocation2 + $0x120] sm:$0xff] %vm1623, %v1504
    %1661 = vst.msk [vmem:[#allocation2 + $0x128] sm:$0xff] %vm1623, %v1506
    %1662 = vst.msk [vmem:[#allocation2 + $0x130] sm:$0xff] %vm1623, %v1508
    %1663 = vst.msk [vmem:[#allocation2 + $0x138] sm:$0xff] %vm1623, %v1510
    %1664 = vst.msk [vmem:[#allocation2 + $0x140] sm:$0xff] %vm1623, %v1512
    %1665 = vst.msk [vmem:[#allocation2 + $0x148] sm:$0xff] %vm1623, %v1514
    %1666 = vst.msk [vmem:[#allocation2 + $0x150] sm:$0xff] %vm1623, %v1516
    %1667 = vst.msk [vmem:[#allocation2 + $0x158] sm:$0xff] %vm1623, %v1518
    %1668 = vst.msk [vmem:[#allocation2 + $0x160] sm:$0xff] %vm1623, %v1520
    %1669 = vst.msk [vmem:[#allocation2 + $0x168] sm:$0xff] %vm1623, %v1522
    %1670 = vst.msk [vmem:[#allocation2 + $0x170] sm:$0xff] %vm1623, %v1524
    %1671 = vst.msk [vmem:[#allocation2 + $0x178] sm:$0xff] %vm1623, %v1526
    %1672 = vst.msk [vmem:[#allocation2 + $0x180] sm:$0xff] %vm1623, %v1528
    %1673 = vst.msk [vmem:[#allocation2 + $0x188] sm:$0xff] %vm1623, %v1530
    %1674 = vst.msk [vmem:[#allocation2 + $0x190] sm:$0xff] %vm1623, %v1532
    %1675 = vst.msk [vmem:[#allocation2 + $0x198] sm:$0xff] %vm1623, %v1534
    %1676 = vst.msk [vmem:[#allocation2 + $0x1a0] sm:$0xff] %vm1623, %v1536
    %1677 = vst.msk [vmem:[#allocation2 + $0x1a8] sm:$0xff] %vm1623, %v1538
    %1678 = vst.msk [vmem:[#allocation2 + $0x1b0] sm:$0xff] %vm1623, %v1540
    %1679 = vst.msk [vmem:[#allocation2 + $0x1b8] sm:$0xff] %vm1623, %v1542
    %1680 = vst.msk [vmem:[#allocation2 + $0x1c0] sm:$0xff] %vm1623, %v1544
    %1681 = vst.msk [vmem:[#allocation2 + $0x1c8] sm:$0xff] %vm1623, %v1546
    %1682 = vst.msk [vmem:[#allocation2 + $0x1d0] sm:$0xff] %vm1623, %v1548
    %1683 = vst.msk [vmem:[#allocation2 + $0x1d8] sm:$0xff] %vm1623, %v1550
    %1684 = vst.msk [vmem:[#allocation2 + $0x1e0] sm:$0xff] %vm1623, %v1552
    %1685 = vst.msk [vmem:[#allocation2 + $0x1e8] sm:$0xff] %vm1623, %v1554
    %1686 = vst.msk [vmem:[#allocation2 + $0x1f0] sm:$0xff] %vm1623, %v1556
    %1687 = vst.msk [vmem:[#allocation2 + $0x1f8] sm:$0xff] %vm1623, %v1558
    %v1688 = vld [vmem:[%s917 + $0x2] sm:$0xff]
    %v1689 = vld [vmem:[%s917 + $0xa] sm:$0xff]
    %v1690 = vld [vmem:[%s917 + $0x1a] sm:$0xff]
    %v1691 = vld [vmem:[%s917 + $0x22] sm:$0xff]
    %v1692 = vld [vmem:[%s917 + $0x32] sm:$0xff]
    %v1693 = vld [vmem:[%s917 + $0x3a] sm:$0xff]
    %v1694 = vld [vmem:[%s917 + $0x4a] sm:$0xff]
    %v1695 = vld [vmem:[%s917 + $0x52] sm:$0xff]
    %v1696 = vld [vmem:[%s917 + $0x62] sm:$0xff]
    %v1697 = vld [vmem:[%s917 + $0x6a] sm:$0xff]
    %v1698 = vld [vmem:[%s917 + $0x7a] sm:$0xff]
    %v1699 = vld [vmem:[%s917 + $0x82] sm:$0xff]
    %v1700 = vld [vmem:[%s917 + $0x92] sm:$0xff]
    %v1701 = vld [vmem:[%s917 + $0x9a] sm:$0xff]
    %v1702 = vld [vmem:[%s917 + $0xaa] sm:$0xff]
    %v1703 = vld [vmem:[%s917 + $0xb2] sm:$0xff]
    %v1704 = vld [vmem:[%s917 + $0xc2] sm:$0xff]
    %v1705 = vld [vmem:[%s917 + $0xca] sm:$0xff]
    %v1706 = vld [vmem:[%s917 + $0xda] sm:$0xff]
    %v1707 = vld [vmem:[%s917 + $0xe2] sm:$0xff]
    %v1708 = vld [vmem:[%s917 + $0xf2] sm:$0xff]
    %v1709 = vld [vmem:[%s917 + $0xfa] sm:$0xff]
    %v1710 = vld [vmem:[%s917 + $0x10a] sm:$0xff]
    %v1711 = vld [vmem:[%s917 + $0x112] sm:$0xff]
    %v1712 = vld [vmem:[%s917 + $0x122] sm:$0xff]
    %v1713 = vld [vmem:[%s917 + $0x12a] sm:$0xff]
    %v1714 = vld [vmem:[%s917 + $0x13a] sm:$0xff]
    %v1715 = vld [vmem:[%s917 + $0x142] sm:$0xff]
    %v1716 = vld [vmem:[%s917 + $0x152] sm:$0xff]
    %v1717 = vld [vmem:[%s917 + $0x15a] sm:$0xff]
    %v1718 = vld [vmem:[%s917 + $0x16a] sm:$0xff]
    %v1719 = vld [vmem:[%s917 + $0x172] sm:$0xff]
    %v1720 = vld [vmem:[%s917 + $0x1b2] sm:$0xff]
    %v1721 = vld [vmem:[%s917 + $0x1ba] sm:$0xff]
    %v1722 = vld [vmem:[%s917 + $0x1ca] sm:$0xff]
    %v1723 = vld [vmem:[%s917 + $0x1d2] sm:$0xff]
    %v1724 = vld [vmem:[%s917 + $0x1e2] sm:$0xff]
    %v1725 = vld [vmem:[%s917 + $0x1ea] sm:$0xff]
    %v1726 = vld [vmem:[%s917 + $0x1fa] sm:$0xff]
    %v1727 = vld [vmem:[%s917 + $0x202] sm:$0xff]
    %v1728 = vld [vmem:[%s917 + $0x212] sm:$0xff]
    %v1729 = vld [vmem:[%s917 + $0x21a] sm:$0xff]
    %v1730 = vld [vmem:[%s917 + $0x22a] sm:$0xff]
    %v1731 = vld [vmem:[%s917 + $0x232] sm:$0xff]
    %v1732 = vld [vmem:[%s917 + $0x242] sm:$0xff]
    %v1733 = vld [vmem:[%s917 + $0x24a] sm:$0xff]
    %v1734 = vld [vmem:[%s917 + $0x25a] sm:$0xff]
    %v1735 = vld [vmem:[%s917 + $0x262] sm:$0xff]
    %v1736 = vld [vmem:[%s917 + $0x272] sm:$0xff]
    %v1737 = vld [vmem:[%s917 + $0x27a] sm:$0xff]
    %v1738 = vld [vmem:[%s917 + $0x28a] sm:$0xff]
    %v1739 = vld [vmem:[%s917 + $0x292] sm:$0xff]
    %v1740 = vld [vmem:[%s917 + $0x2a2] sm:$0xff]
    %v1741 = vld [vmem:[%s917 + $0x2aa] sm:$0xff]
    %v1742 = vld [vmem:[%s917 + $0x2ba] sm:$0xff]
    %v1743 = vld [vmem:[%s917 + $0x2c2] sm:$0xff]
    %v1744 = vld [vmem:[%s917 + $0x2d2] sm:$0xff]
    %v1745 = vld [vmem:[%s917 + $0x2da] sm:$0xff]
    %v1746 = vld [vmem:[%s917 + $0x2ea] sm:$0xff]
    %v1747 = vld [vmem:[%s917 + $0x2f2] sm:$0xff]
    %v1748 = vld [vmem:[%s917 + $0x302] sm:$0xff]
    %v1749 = vld [vmem:[%s917 + $0x30a] sm:$0xff]
    %v1750 = vld [vmem:[%s917 + $0x31a] sm:$0xff]
    %v1751 = vld [vmem:[%s917 + $0x322] sm:$0xff]
    %1816 = vrot.lane.b32.xlu0 %v1688, 20
    %v1817 = vpop.permute.xlu0 %1816
    %1818 = vrot.lane.b32.xlu0 %v1689, 20
    %v1819 = vpop.permute.xlu0 %1818
    %1820 = vrot.lane.b32.xlu0 %v1690, 20
    %v1821 = vpop.permute.xlu0 %1820
    %1822 = vrot.lane.b32.xlu0 %v1691, 20
    %v1823 = vpop.permute.xlu0 %1822
    %1824 = vrot.lane.b32.xlu0 %v1692, 20
    %v1825 = vpop.permute.xlu0 %1824
    %1826 = vrot.lane.b32.xlu0 %v1693, 20
    %v1827 = vpop.permute.xlu0 %1826
    %1828 = vrot.lane.b32.xlu0 %v1694, 20
    %v1829 = vpop.permute.xlu0 %1828
    %1830 = vrot.lane.b32.xlu0 %v1695, 20
    %v1831 = vpop.permute.xlu0 %1830
    %1832 = vrot.lane.b32.xlu0 %v1696, 20
    %v1833 = vpop.permute.xlu0 %1832
    %1834 = vrot.lane.b32.xlu0 %v1697, 20
    %v1835 = vpop.permute.xlu0 %1834
    %1836 = vrot.lane.b32.xlu0 %v1698, 20
    %v1837 = vpop.permute.xlu0 %1836
    %1838 = vrot.lane.b32.xlu0 %v1699, 20
    %v1839 = vpop.permute.xlu0 %1838
    %1840 = vrot.lane.b32.xlu0 %v1700, 20
    %v1841 = vpop.permute.xlu0 %1840
    %1842 = vrot.lane.b32.xlu0 %v1701, 20
    %v1843 = vpop.permute.xlu0 %1842
    %1844 = vrot.lane.b32.xlu0 %v1702, 20
    %v1845 = vpop.permute.xlu0 %1844
    %1846 = vrot.lane.b32.xlu0 %v1703, 20
    %v1847 = vpop.permute.xlu0 %1846
    %1848 = vrot.lane.b32.xlu0 %v1704, 20
    %v1849 = vpop.permute.xlu0 %1848
    %1850 = vrot.lane.b32.xlu0 %v1705, 20
    %v1851 = vpop.permute.xlu0 %1850
    %1852 = vrot.lane.b32.xlu0 %v1706, 20
    %v1853 = vpop.permute.xlu0 %1852
    %1854 = vrot.lane.b32.xlu0 %v1707, 20
    %v1855 = vpop.permute.xlu0 %1854
    %1856 = vrot.lane.b32.xlu0 %v1708, 20
    %v1857 = vpop.permute.xlu0 %1856
    %1858 = vrot.lane.b32.xlu0 %v1709, 20
    %v1859 = vpop.permute.xlu0 %1858
    %1860 = vrot.lane.b32.xlu0 %v1710, 20
    %v1861 = vpop.permute.xlu0 %1860
    %1862 = vrot.lane.b32.xlu0 %v1711, 20
    %v1863 = vpop.permute.xlu0 %1862
    %1864 = vrot.lane.b32.xlu0 %v1712, 20
    %v1865 = vpop.permute.xlu0 %1864
    %1866 = vrot.lane.b32.xlu0 %v1713, 20
    %v1867 = vpop.permute.xlu0 %1866
    %1868 = vrot.lane.b32.xlu0 %v1714, 20
    %v1869 = vpop.permute.xlu0 %1868
    %1870 = vrot.lane.b32.xlu0 %v1715, 20
    %v1871 = vpop.permute.xlu0 %1870
    %1872 = vrot.lane.b32.xlu0 %v1716, 20
    %v1873 = vpop.permute.xlu0 %1872
    %1874 = vrot.lane.b32.xlu0 %v1717, 20
    %v1875 = vpop.permute.xlu0 %1874
    %1876 = vrot.lane.b32.xlu0 %v1718, 20
    %v1877 = vpop.permute.xlu0 %1876
    %1878 = vrot.lane.b32.xlu0 %v1719, 20
    %v1879 = vpop.permute.xlu0 %1878
    %1880 = vrot.lane.b32.xlu0 %v1720, 20
    %v1881 = vpop.permute.xlu0 %1880
    %1882 = vrot.lane.b32.xlu0 %v1721, 20
    %v1883 = vpop.permute.xlu0 %1882
    %1884 = vrot.lane.b32.xlu0 %v1722, 20
    %v1885 = vpop.permute.xlu0 %1884
    %1886 = vrot.lane.b32.xlu0 %v1723, 20
    %v1887 = vpop.permute.xlu0 %1886
    %1888 = vrot.lane.b32.xlu0 %v1724, 20
    %v1889 = vpop.permute.xlu0 %1888
    %1890 = vrot.lane.b32.xlu0 %v1725, 20
    %v1891 = vpop.permute.xlu0 %1890
    %1892 = vrot.lane.b32.xlu0 %v1726, 20
    %v1893 = vpop.permute.xlu0 %1892
    %1894 = vrot.lane.b32.xlu0 %v1727, 20
    %v1895 = vpop.permute.xlu0 %1894
    %1896 = vrot.lane.b32.xlu0 %v1728, 20
    %v1897 = vpop.permute.xlu0 %1896
    %1898 = vrot.lane.b32.xlu0 %v1729, 20
    %v1899 = vpop.permute.xlu0 %1898
    %1900 = vrot.lane.b32.xlu0 %v1730, 20
    %v1901 = vpop.permute.xlu0 %1900
    %1902 = vrot.lane.b32.xlu0 %v1731, 20
    %v1903 = vpop.permute.xlu0 %1902
    %1904 = vrot.lane.b32.xlu0 %v1732, 20
    %v1905 = vpop.permute.xlu0 %1904
    %1906 = vrot.lane.b32.xlu0 %v1733, 20
    %v1907 = vpop.permute.xlu0 %1906
    %1908 = vrot.lane.b32.xlu0 %v1734, 20
    %v1909 = vpop.permute.xlu0 %1908
    %1910 = vrot.lane.b32.xlu0 %v1735, 20
    %v1911 = vpop.permute.xlu0 %1910
    %1912 = vrot.lane.b32.xlu0 %v1736, 20
    %v1913 = vpop.permute.xlu0 %1912
    %1914 = vrot.lane.b32.xlu0 %v1737, 20
    %v1915 = vpop.permute.xlu0 %1914
    %1916 = vrot.lane.b32.xlu0 %v1738, 20
    %v1917 = vpop.permute.xlu0 %1916
    %1918 = vrot.lane.b32.xlu0 %v1739, 20
    %v1919 = vpop.permute.xlu0 %1918
    %1920 = vrot.lane.b32.xlu0 %v1740, 20
    %v1921 = vpop.permute.xlu0 %1920
    %1922 = vrot.lane.b32.xlu0 %v1741, 20
    %v1923 = vpop.permute.xlu0 %1922
    %1924 = vrot.lane.b32.xlu0 %v1742, 20
    %v1925 = vpop.permute.xlu0 %1924
    %1926 = vrot.lane.b32.xlu0 %v1743, 20
    %v1927 = vpop.permute.xlu0 %1926
    %1928 = vrot.lane.b32.xlu0 %v1744, 20
    %v1929 = vpop.permute.xlu0 %1928
    %1930 = vrot.lane.b32.xlu0 %v1745, 20
    %v1931 = vpop.permute.xlu0 %1930
    %1932 = vrot.lane.b32.xlu0 %v1746, 20
    %v1933 = vpop.permute.xlu0 %1932
    %1934 = vrot.lane.b32.xlu0 %v1747, 20
    %v1935 = vpop.permute.xlu0 %1934
    %1936 = vrot.lane.b32.xlu0 %v1748, 20
    %v1937 = vpop.permute.xlu0 %1936
    %1938 = vrot.lane.b32.xlu0 %v1749, 20
    %v1939 = vpop.permute.xlu0 %1938
    %1940 = vrot.lane.b32.xlu0 %v1750, 20
    %v1941 = vpop.permute.xlu0 %1940
    %1942 = vrot.lane.b32.xlu0 %v1751, 20
    %v1943 = vpop.permute.xlu0 %1942
    %vm2008 = vcmask 195744
    %2009 = vst.msk [vmem:[#allocation2] sm:$0xff] %vm2008, %v1817
    %2010 = vst.msk [vmem:[#allocation2 + $0x8] sm:$0xff] %vm2008, %v1819
    %2011 = vst.msk [vmem:[#allocation2 + $0x10] sm:$0xff] %vm2008, %v1821
    %2012 = vst.msk [vmem:[#allocation2 + $0x18] sm:$0xff] %vm2008, %v1823
    %2013 = vst.msk [vmem:[#allocation2 + $0x20] sm:$0xff] %vm2008, %v1825
    %2014 = vst.msk [vmem:[#allocation2 + $0x28] sm:$0xff] %vm2008, %v1827
    %2015 = vst.msk [vmem:[#allocation2 + $0x30] sm:$0xff] %vm2008, %v1829
    %2016 = vst.msk [vmem:[#allocation2 + $0x38] sm:$0xff] %vm2008, %v1831
    %2017 = vst.msk [vmem:[#allocation2 + $0x40] sm:$0xff] %vm2008, %v1833
    %2018 = vst.msk [vmem:[#allocation2 + $0x48] sm:$0xff] %vm2008, %v1835
    %2019 = vst.msk [vmem:[#allocation2 + $0x50] sm:$0xff] %vm2008, %v1837
    %2020 = vst.msk [vmem:[#allocation2 + $0x58] sm:$0xff] %vm2008, %v1839
    %2021 = vst.msk [vmem:[#allocation2 + $0x60] sm:$0xff] %vm2008, %v1841
    %2022 = vst.msk [vmem:[#allocation2 + $0x68] sm:$0xff] %vm2008, %v1843
    %2023 = vst.msk [vmem:[#allocation2 + $0x70] sm:$0xff] %vm2008, %v1845
    %2024 = vst.msk [vmem:[#allocation2 + $0x78] sm:$0xff] %vm2008, %v1847
    %2025 = vst.msk [vmem:[#allocation2 + $0x80] sm:$0xff] %vm2008, %v1849
    %2026 = vst.msk [vmem:[#allocation2 + $0x88] sm:$0xff] %vm2008, %v1851
    %2027 = vst.msk [vmem:[#allocation2 + $0x90] sm:$0xff] %vm2008, %v1853
    %2028 = vst.msk [vmem:[#allocation2 + $0x98] sm:$0xff] %vm2008, %v1855
    %2029 = vst.msk [vmem:[#allocation2 + $0xa0] sm:$0xff] %vm2008, %v1857
    %2030 = vst.msk [vmem:[#allocation2 + $0xa8] sm:$0xff] %vm2008, %v1859
    %2031 = vst.msk [vmem:[#allocation2 + $0xb0] sm:$0xff] %vm2008, %v1861
    %2032 = vst.msk [vmem:[#allocation2 + $0xb8] sm:$0xff] %vm2008, %v1863
    %2033 = vst.msk [vmem:[#allocation2 + $0xc0] sm:$0xff] %vm2008, %v1865
    %2034 = vst.msk [vmem:[#allocation2 + $0xc8] sm:$0xff] %vm2008, %v1867
    %2035 = vst.msk [vmem:[#allocation2 + $0xd0] sm:$0xff] %vm2008, %v1869
    %2036 = vst.msk [vmem:[#allocation2 + $0xd8] sm:$0xff] %vm2008, %v1871
    %2037 = vst.msk [vmem:[#allocation2 + $0xe0] sm:$0xff] %vm2008, %v1873
    %2038 = vst.msk [vmem:[#allocation2 + $0xe8] sm:$0xff] %vm2008, %v1875
    %2039 = vst.msk [vmem:[#allocation2 + $0xf0] sm:$0xff] %vm2008, %v1877
    %2040 = vst.msk [vmem:[#allocation2 + $0xf8] sm:$0xff] %vm2008, %v1879
    %2041 = vst.msk [vmem:[#allocation2 + $0x100] sm:$0xff] %vm2008, %v1881
    %2042 = vst.msk [vmem:[#allocation2 + $0x108] sm:$0xff] %vm2008, %v1883
    %2043 = vst.msk [vmem:[#allocation2 + $0x110] sm:$0xff] %vm2008, %v1885
    %2044 = vst.msk [vmem:[#allocation2 + $0x118] sm:$0xff] %vm2008, %v1887
    %2045 = vst.msk [vmem:[#allocation2 + $0x120] sm:$0xff] %vm2008, %v1889
    %2046 = vst.msk [vmem:[#allocation2 + $0x128] sm:$0xff] %vm2008, %v1891
    %2047 = vst.msk [vmem:[#allocation2 + $0x130] sm:$0xff] %vm2008, %v1893
    %2048 = vst.msk [vmem:[#allocation2 + $0x138] sm:$0xff] %vm2008, %v1895
    %2049 = vst.msk [vmem:[#allocation2 + $0x140] sm:$0xff] %vm2008, %v1897
    %2050 = vst.msk [vmem:[#allocation2 + $0x148] sm:$0xff] %vm2008, %v1899
    %2051 = vst.msk [vmem:[#allocation2 + $0x150] sm:$0xff] %vm2008, %v1901
    %2052 = vst.msk [vmem:[#allocation2 + $0x158] sm:$0xff] %vm2008, %v1903
    %2053 = vst.msk [vmem:[#allocation2 + $0x160] sm:$0xff] %vm2008, %v1905
    %2054 = vst.msk [vmem:[#allocation2 + $0x168] sm:$0xff] %vm2008, %v1907
    %2055 = vst.msk [vmem:[#allocation2 + $0x170] sm:$0xff] %vm2008, %v1909
    %2056 = vst.msk [vmem:[#allocation2 + $0x178] sm:$0xff] %vm2008, %v1911
    %2057 = vst.msk [vmem:[#allocation2 + $0x180] sm:$0xff] %vm2008, %v1913
    %2058 = vst.msk [vmem:[#allocation2 + $0x188] sm:$0xff] %vm2008, %v1915
    %2059 = vst.msk [vmem:[#allocation2 + $0x190] sm:$0xff] %vm2008, %v1917
    %2060 = vst.msk [vmem:[#allocation2 + $0x198] sm:$0xff] %vm2008, %v1919
    %2061 = vst.msk [vmem:[#allocation2 + $0x1a0] sm:$0xff] %vm2008, %v1921
    %2062 = vst.msk [vmem:[#allocation2 + $0x1a8] sm:$0xff] %vm2008, %v1923
    %2063 = vst.msk [vmem:[#allocation2 + $0x1b0] sm:$0xff] %vm2008, %v1925
    %2064 = vst.msk [vmem:[#allocation2 + $0x1b8] sm:$0xff] %vm2008, %v1927
    %2065 = vst.msk [vmem:[#allocation2 + $0x1c0] sm:$0xff] %vm2008, %v1929
    %2066 = vst.msk [vmem:[#allocation2 + $0x1c8] sm:$0xff] %vm2008, %v1931
    %2067 = vst.msk [vmem:[#allocation2 + $0x1d0] sm:$0xff] %vm2008, %v1933
    %2068 = vst.msk [vmem:[#allocation2 + $0x1d8] sm:$0xff] %vm2008, %v1935
    %2069 = vst.msk [vmem:[#allocation2 + $0x1e0] sm:$0xff] %vm2008, %v1937
    %2070 = vst.msk [vmem:[#allocation2 + $0x1e8] sm:$0xff] %vm2008, %v1939
    %2071 = vst.msk [vmem:[#allocation2 + $0x1f0] sm:$0xff] %vm2008, %v1941
    %2072 = vst.msk [vmem:[#allocation2 + $0x1f8] sm:$0xff] %vm2008, %v1943
    %s2073 = scalar_lea.vmem %s0, 48
    %v2074 = vld [vmem:[%s2073] sm:$0xff]
    %v2075 = vld [vmem:[%s2073 + $0x8] sm:$0xff]
    %v2076 = vld [vmem:[%s2073 + $0x18] sm:$0xff]
    %v2077 = vld [vmem:[%s2073 + $0x20] sm:$0xff]
    %v2078 = vld [vmem:[%s2073 + $0x30] sm:$0xff]
    %v2079 = vld [vmem:[%s2073 + $0x38] sm:$0xff]
    %v2080 = vld [vmem:[%s2073 + $0x48] sm:$0xff]
    %v2081 = vld [vmem:[%s2073 + $0x50] sm:$0xff]
    %v2082 = vld [vmem:[%s2073 + $0x60] sm:$0xff]
    %v2083 = vld [vmem:[%s2073 + $0x68] sm:$0xff]
    %v2084 = vld [vmem:[%s2073 + $0x78] sm:$0xff]
    %v2085 = vld [vmem:[%s2073 + $0x80] sm:$0xff]
    %v2086 = vld [vmem:[%s2073 + $0x90] sm:$0xff]
    %v2087 = vld [vmem:[%s2073 + $0x98] sm:$0xff]
    %v2088 = vld [vmem:[%s2073 + $0xa8] sm:$0xff]
    %v2089 = vld [vmem:[%s2073 + $0xb0] sm:$0xff]
    %v2090 = vld [vmem:[%s2073 + $0xc0] sm:$0xff]
    %v2091 = vld [vmem:[%s2073 + $0xc8] sm:$0xff]
    %v2092 = vld [vmem:[%s2073 + $0xd8] sm:$0xff]
    %v2093 = vld [vmem:[%s2073 + $0xe0] sm:$0xff]
    %v2094 = vld [vmem:[%s2073 + $0xf0] sm:$0xff]
    %v2095 = vld [vmem:[%s2073 + $0xf8] sm:$0xff]
    %v2096 = vld [vmem:[%s2073 + $0x108] sm:$0xff]
    %v2097 = vld [vmem:[%s2073 + $0x110] sm:$0xff]
    %v2098 = vld [vmem:[%s2073 + $0x120] sm:$0xff]
    %v2099 = vld [vmem:[%s2073 + $0x128] sm:$0xff]
    %v2100 = vld [vmem:[%s2073 + $0x138] sm:$0xff]
    %v2101 = vld [vmem:[%s2073 + $0x140] sm:$0xff]
    %v2102 = vld [vmem:[%s2073 + $0x150] sm:$0xff]
    %v2103 = vld [vmem:[%s2073 + $0x158] sm:$0xff]
    %v2104 = vld [vmem:[%s2073 + $0x168] sm:$0xff]
    %v2105 = vld [vmem:[%s2073 + $0x170] sm:$0xff]
    %v2106 = vld [vmem:[%s2073 + $0x1b0] sm:$0xff]
    %v2107 = vld [vmem:[%s2073 + $0x1b8] sm:$0xff]
    %v2108 = vld [vmem:[%s2073 + $0x1c8] sm:$0xff]
    %v2109 = vld [vmem:[%s2073 + $0x1d0] sm:$0xff]
    %v2110 = vld [vmem:[%s2073 + $0x1e0] sm:$0xff]
    %v2111 = vld [vmem:[%s2073 + $0x1e8] sm:$0xff]
    %v2112 = vld [vmem:[%s2073 + $0x1f8] sm:$0xff]
    %v2113 = vld [vmem:[%s2073 + $0x200] sm:$0xff]
    %v2114 = vld [vmem:[%s2073 + $0x210] sm:$0xff]
    %v2115 = vld [vmem:[%s2073 + $0x218] sm:$0xff]
    %v2116 = vld [vmem:[%s2073 + $0x228] sm:$0xff]
    %v2117 = vld [vmem:[%s2073 + $0x230] sm:$0xff]
    %v2118 = vld [vmem:[%s2073 + $0x240] sm:$0xff]
    %v2119 = vld [vmem:[%s2073 + $0x248] sm:$0xff]
    %v2120 = vld [vmem:[%s2073 + $0x258] sm:$0xff]
    %v2121 = vld [vmem:[%s2073 + $0x260] sm:$0xff]
    %v2122 = vld [vmem:[%s2073 + $0x270] sm:$0xff]
    %v2123 = vld [vmem:[%s2073 + $0x278] sm:$0xff]
    %v2124 = vld [vmem:[%s2073 + $0x288] sm:$0xff]
    %v2125 = vld [vmem:[%s2073 + $0x290] sm:$0xff]
    %v2126 = vld [vmem:[%s2073 + $0x2a0] sm:$0xff]
    %v2127 = vld [vmem:[%s2073 + $0x2a8] sm:$0xff]
    %v2128 = vld [vmem:[%s2073 + $0x2b8] sm:$0xff]
    %v2129 = vld [vmem:[%s2073 + $0x2c0] sm:$0xff]
    %v2130 = vld [vmem:[%s2073 + $0x2d0] sm:$0xff]
    %v2131 = vld [vmem:[%s2073 + $0x2d8] sm:$0xff]
    %v2132 = vld [vmem:[%s2073 + $0x2e8] sm:$0xff]
    %v2133 = vld [vmem:[%s2073 + $0x2f0] sm:$0xff]
    %v2134 = vld [vmem:[%s2073 + $0x300] sm:$0xff]
    %v2135 = vld [vmem:[%s2073 + $0x308] sm:$0xff]
    %v2136 = vld [vmem:[%s2073 + $0x318] sm:$0xff]
    %v2137 = vld [vmem:[%s2073 + $0x320] sm:$0xff]
    %2202 = vrot.lane.b32.xlu0 %v2074, 24
    %v2203 = vpop.permute.xlu0 %2202
    %2204 = vrot.lane.b32.xlu0 %v2075, 24
    %v2205 = vpop.permute.xlu0 %2204
    %2206 = vrot.lane.b32.xlu0 %v2076, 24
    %v2207 = vpop.permute.xlu0 %2206
    %2208 = vrot.lane.b32.xlu0 %v2077, 24
    %v2209 = vpop.permute.xlu0 %2208
    %2210 = vrot.lane.b32.xlu0 %v2078, 24
    %v2211 = vpop.permute.xlu0 %2210
    %2212 = vrot.lane.b32.xlu0 %v2079, 24
    %v2213 = vpop.permute.xlu0 %2212
    %2214 = vrot.lane.b32.xlu0 %v2080, 24
    %v2215 = vpop.permute.xlu0 %2214
    %2216 = vrot.lane.b32.xlu0 %v2081, 24
    %v2217 = vpop.permute.xlu0 %2216
    %2218 = vrot.lane.b32.xlu0 %v2082, 24
    %v2219 = vpop.permute.xlu0 %2218
    %2220 = vrot.lane.b32.xlu0 %v2083, 24
    %v2221 = vpop.permute.xlu0 %2220
    %2222 = vrot.lane.b32.xlu0 %v2084, 24
    %v2223 = vpop.permute.xlu0 %2222
    %2224 = vrot.lane.b32.xlu0 %v2085, 24
    %v2225 = vpop.permute.xlu0 %2224
    %2226 = vrot.lane.b32.xlu0 %v2086, 24
    %v2227 = vpop.permute.xlu0 %2226
    %2228 = vrot.lane.b32.xlu0 %v2087, 24
    %v2229 = vpop.permute.xlu0 %2228
    %2230 = vrot.lane.b32.xlu0 %v2088, 24
    %v2231 = vpop.permute.xlu0 %2230
    %2232 = vrot.lane.b32.xlu0 %v2089, 24
    %v2233 = vpop.permute.xlu0 %2232
    %2234 = vrot.lane.b32.xlu0 %v2090, 24
    %v2235 = vpop.permute.xlu0 %2234
    %2236 = vrot.lane.b32.xlu0 %v2091, 24
    %v2237 = vpop.permute.xlu0 %2236
    %2238 = vrot.lane.b32.xlu0 %v2092, 24
    %v2239 = vpop.permute.xlu0 %2238
    %2240 = vrot.lane.b32.xlu0 %v2093, 24
    %v2241 = vpop.permute.xlu0 %2240
    %2242 = vrot.lane.b32.xlu0 %v2094, 24
    %v2243 = vpop.permute.xlu0 %2242
    %2244 = vrot.lane.b32.xlu0 %v2095, 24
    %v2245 = vpop.permute.xlu0 %2244
    %2246 = vrot.lane.b32.xlu0 %v2096, 24
    %v2247 = vpop.permute.xlu0 %2246
    %2248 = vrot.lane.b32.xlu0 %v2097, 24
    %v2249 = vpop.permute.xlu0 %2248
    %2250 = vrot.lane.b32.xlu0 %v2098, 24
    %v2251 = vpop.permute.xlu0 %2250
    %2252 = vrot.lane.b32.xlu0 %v2099, 24
    %v2253 = vpop.permute.xlu0 %2252
    %2254 = vrot.lane.b32.xlu0 %v2100, 24
    %v2255 = vpop.permute.xlu0 %2254
    %2256 = vrot.lane.b32.xlu0 %v2101, 24
    %v2257 = vpop.permute.xlu0 %2256
    %2258 = vrot.lane.b32.xlu0 %v2102, 24
    %v2259 = vpop.permute.xlu0 %2258
    %2260 = vrot.lane.b32.xlu0 %v2103, 24
    %v2261 = vpop.permute.xlu0 %2260
    %2262 = vrot.lane.b32.xlu0 %v2104, 24
    %v2263 = vpop.permute.xlu0 %2262
    %2264 = vrot.lane.b32.xlu0 %v2105, 24
    %v2265 = vpop.permute.xlu0 %2264
    %2266 = vrot.lane.b32.xlu0 %v2106, 24
    %v2267 = vpop.permute.xlu0 %2266
    %2268 = vrot.lane.b32.xlu0 %v2107, 24
    %v2269 = vpop.permute.xlu0 %2268
    %2270 = vrot.lane.b32.xlu0 %v2108, 24
    %v2271 = vpop.permute.xlu0 %2270
    %2272 = vrot.lane.b32.xlu0 %v2109, 24
    %v2273 = vpop.permute.xlu0 %2272
    %2274 = vrot.lane.b32.xlu0 %v2110, 24
    %v2275 = vpop.permute.xlu0 %2274
    %2276 = vrot.lane.b32.xlu0 %v2111, 24
    %v2277 = vpop.permute.xlu0 %2276
    %2278 = vrot.lane.b32.xlu0 %v2112, 24
    %v2279 = vpop.permute.xlu0 %2278
    %2280 = vrot.lane.b32.xlu0 %v2113, 24
    %v2281 = vpop.permute.xlu0 %2280
    %2282 = vrot.lane.b32.xlu0 %v2114, 24
    %v2283 = vpop.permute.xlu0 %2282
    %2284 = vrot.lane.b32.xlu0 %v2115, 24
    %v2285 = vpop.permute.xlu0 %2284
    %2286 = vrot.lane.b32.xlu0 %v2116, 24
    %v2287 = vpop.permute.xlu0 %2286
    %2288 = vrot.lane.b32.xlu0 %v2117, 24
    %v2289 = vpop.permute.xlu0 %2288
    %2290 = vrot.lane.b32.xlu0 %v2118, 24
    %v2291 = vpop.permute.xlu0 %2290
    %2292 = vrot.lane.b32.xlu0 %v2119, 24
    %v2293 = vpop.permute.xlu0 %2292
    %2294 = vrot.lane.b32.xlu0 %v2120, 24
    %v2295 = vpop.permute.xlu0 %2294
    %2296 = vrot.lane.b32.xlu0 %v2121, 24
    %v2297 = vpop.permute.xlu0 %2296
    %2298 = vrot.lane.b32.xlu0 %v2122, 24
    %v2299 = vpop.permute.xlu0 %2298
    %2300 = vrot.lane.b32.xlu0 %v2123, 24
    %v2301 = vpop.permute.xlu0 %2300
    %2302 = vrot.lane.b32.xlu0 %v2124, 24
    %v2303 = vpop.permute.xlu0 %2302
    %2304 = vrot.lane.b32.xlu0 %v2125, 24
    %v2305 = vpop.permute.xlu0 %2304
    %2306 = vrot.lane.b32.xlu0 %v2126, 24
    %v2307 = vpop.permute.xlu0 %2306
    %2308 = vrot.lane.b32.xlu0 %v2127, 24
    %v2309 = vpop.permute.xlu0 %2308
    %2310 = vrot.lane.b32.xlu0 %v2128, 24
    %v2311 = vpop.permute.xlu0 %2310
    %2312 = vrot.lane.b32.xlu0 %v2129, 24
    %v2313 = vpop.permute.xlu0 %2312
    %2314 = vrot.lane.b32.xlu0 %v2130, 24
    %v2315 = vpop.permute.xlu0 %2314
    %2316 = vrot.lane.b32.xlu0 %v2131, 24
    %v2317 = vpop.permute.xlu0 %2316
    %2318 = vrot.lane.b32.xlu0 %v2132, 24
    %v2319 = vpop.permute.xlu0 %2318
    %2320 = vrot.lane.b32.xlu0 %v2133, 24
    %v2321 = vpop.permute.xlu0 %2320
    %2322 = vrot.lane.b32.xlu0 %v2134, 24
    %v2323 = vpop.permute.xlu0 %2322
    %2324 = vrot.lane.b32.xlu0 %v2135, 24
    %v2325 = vpop.permute.xlu0 %2324
    %2326 = vrot.lane.b32.xlu0 %v2136, 24
    %v2327 = vpop.permute.xlu0 %2326
    %2328 = vrot.lane.b32.xlu0 %v2137, 24
    %v2329 = vpop.permute.xlu0 %2328
    %vm2394 = vcmask 228544
    %2395 = vst.msk [vmem:[#allocation2] sm:$0xff] %vm2394, %v2203
    %2396 = vst.msk [vmem:[#allocation2 + $0x8] sm:$0xff] %vm2394, %v2205
    %2397 = vst.msk [vmem:[#allocation2 + $0x10] sm:$0xff] %vm2394, %v2207
    %2398 = vst.msk [vmem:[#allocation2 + $0x18] sm:$0xff] %vm2394, %v2209
    %2399 = vst.msk [vmem:[#allocation2 + $0x20] sm:$0xff] %vm2394, %v2211
    %2400 = vst.msk [vmem:[#allocation2 + $0x28] sm:$0xff] %vm2394, %v2213
    %2401 = vst.msk [vmem:[#allocation2 + $0x30] sm:$0xff] %vm2394, %v2215
    %2402 = vst.msk [vmem:[#allocation2 + $0x38] sm:$0xff] %vm2394, %v2217
    %2403 = vst.msk [vmem:[#allocation2 + $0x40] sm:$0xff] %vm2394, %v2219
    %2404 = vst.msk [vmem:[#allocation2 + $0x48] sm:$0xff] %vm2394, %v2221
    %2405 = vst.msk [vmem:[#allocation2 + $0x50] sm:$0xff] %vm2394, %v2223
    %2406 = vst.msk [vmem:[#allocation2 + $0x58] sm:$0xff] %vm2394, %v2225
    %2407 = vst.msk [vmem:[#allocation2 + $0x60] sm:$0xff] %vm2394, %v2227
    %2408 = vst.msk [vmem:[#allocation2 + $0x68] sm:$0xff] %vm2394, %v2229
    %2409 = vst.msk [vmem:[#allocation2 + $0x70] sm:$0xff] %vm2394, %v2231
    %2410 = vst.msk [vmem:[#allocation2 + $0x78] sm:$0xff] %vm2394, %v2233
    %2411 = vst.msk [vmem:[#allocation2 + $0x80] sm:$0xff] %vm2394, %v2235
    %2412 = vst.msk [vmem:[#allocation2 + $0x88] sm:$0xff] %vm2394, %v2237
    %2413 = vst.msk [vmem:[#allocation2 + $0x90] sm:$0xff] %vm2394, %v2239
    %2414 = vst.msk [vmem:[#allocation2 + $0x98] sm:$0xff] %vm2394, %v2241
    %2415 = vst.msk [vmem:[#allocation2 + $0xa0] sm:$0xff] %vm2394, %v2243
    %2416 = vst.msk [vmem:[#allocation2 + $0xa8] sm:$0xff] %vm2394, %v2245
    %2417 = vst.msk [vmem:[#allocation2 + $0xb0] sm:$0xff] %vm2394, %v2247
    %2418 = vst.msk [vmem:[#allocation2 + $0xb8] sm:$0xff] %vm2394, %v2249
    %2419 = vst.msk [vmem:[#allocation2 + $0xc0] sm:$0xff] %vm2394, %v2251
    %2420 = vst.msk [vmem:[#allocation2 + $0xc8] sm:$0xff] %vm2394, %v2253
    %2421 = vst.msk [vmem:[#allocation2 + $0xd0] sm:$0xff] %vm2394, %v2255
    %2422 = vst.msk [vmem:[#allocation2 + $0xd8] sm:$0xff] %vm2394, %v2257
    %2423 = vst.msk [vmem:[#allocation2 + $0xe0] sm:$0xff] %vm2394, %v2259
    %2424 = vst.msk [vmem:[#allocation2 + $0xe8] sm:$0xff] %vm2394, %v2261
    %2425 = vst.msk [vmem:[#allocation2 + $0xf0] sm:$0xff] %vm2394, %v2263
    %2426 = vst.msk [vmem:[#allocation2 + $0xf8] sm:$0xff] %vm2394, %v2265
    %2427 = vst.msk [vmem:[#allocation2 + $0x100] sm:$0xff] %vm2394, %v2267
    %2428 = vst.msk [vmem:[#allocation2 + $0x108] sm:$0xff] %vm2394, %v2269
    %2429 = vst.msk [vmem:[#allocation2 + $0x110] sm:$0xff] %vm2394, %v2271
    %2430 = vst.msk [vmem:[#allocation2 + $0x118] sm:$0xff] %vm2394, %v2273
    %2431 = vst.msk [vmem:[#allocation2 + $0x120] sm:$0xff] %vm2394, %v2275
    %2432 = vst.msk [vmem:[#allocation2 + $0x128] sm:$0xff] %vm2394, %v2277
    %2433 = vst.msk [vmem:[#allocation2 + $0x130] sm:$0xff] %vm2394, %v2279
    %2434 = vst.msk [vmem:[#allocation2 + $0x138] sm:$0xff] %vm2394, %v2281
    %2435 = vst.msk [vmem:[#allocation2 + $0x140] sm:$0xff] %vm2394, %v2283
    %2436 = vst.msk [vmem:[#allocation2 + $0x148] sm:$0xff] %vm2394, %v2285
    %2437 = vst.msk [vmem:[#allocation2 + $0x150] sm:$0xff] %vm2394, %v2287
    %2438 = vst.msk [vmem:[#allocation2 + $0x158] sm:$0xff] %vm2394, %v2289
    %2439 = vst.msk [vmem:[#allocation2 + $0x160] sm:$0xff] %vm2394, %v2291
    %2440 = vst.msk [vmem:[#allocation2 + $0x168] sm:$0xff] %vm2394, %v2293
    %2441 = vst.msk [vmem:[#allocation2 + $0x170] sm:$0xff] %vm2394, %v2295
    %2442 = vst.msk [vmem:[#allocation2 + $0x178] sm:$0xff] %vm2394, %v2297
    %2443 = vst.msk [vmem:[#allocation2 + $0x180] sm:$0xff] %vm2394, %v2299
    %2444 = vst.msk [vmem:[#allocation2 + $0x188] sm:$0xff] %vm2394, %v2301
    %2445 = vst.msk [vmem:[#allocation2 + $0x190] sm:$0xff] %vm2394, %v2303
    %2446 = vst.msk [vmem:[#allocation2 + $0x198] sm:$0xff] %vm2394, %v2305
    %2447 = vst.msk [vmem:[#allocation2 + $0x1a0] sm:$0xff] %vm2394, %v2307
    %2448 = vst.msk [vmem:[#allocation2 + $0x1a8] sm:$0xff] %vm2394, %v2309
    %2449 = vst.msk [vmem:[#allocation2 + $0x1b0] sm:$0xff] %vm2394, %v2311
    %2450 = vst.msk [vmem:[#allocation2 + $0x1b8] sm:$0xff] %vm2394, %v2313
    %2451 = vst.msk [vmem:[#allocation2 + $0x1c0] sm:$0xff] %vm2394, %v2315
    %2452 = vst.msk [vmem:[#allocation2 + $0x1c8] sm:$0xff] %vm2394, %v2317
    %2453 = vst.msk [vmem:[#allocation2 + $0x1d0] sm:$0xff] %vm2394, %v2319
    %2454 = vst.msk [vmem:[#allocation2 + $0x1d8] sm:$0xff] %vm2394, %v2321
    %2455 = vst.msk [vmem:[#allocation2 + $0x1e0] sm:$0xff] %vm2394, %v2323
    %2456 = vst.msk [vmem:[#allocation2 + $0x1e8] sm:$0xff] %vm2394, %v2325
    %2457 = vst.msk [vmem:[#allocation2 + $0x1f0] sm:$0xff] %vm2394, %v2327
    %2458 = vst.msk [vmem:[#allocation2 + $0x1f8] sm:$0xff] %vm2394, %v2329
    %v2459 = vld [vmem:[%s2073 + $0x1] sm:$0xff]
    %v2460 = vld [vmem:[%s2073 + $0x9] sm:$0xff]
    %v2461 = vld [vmem:[%s2073 + $0x19] sm:$0xff]
    %v2462 = vld [vmem:[%s2073 + $0x21] sm:$0xff]
    %v2463 = vld [vmem:[%s2073 + $0x31] sm:$0xff]
    %v2464 = vld [vmem:[%s2073 + $0x39] sm:$0xff]
    %v2465 = vld [vmem:[%s2073 + $0x49] sm:$0xff]
    %v2466 = vld [vmem:[%s2073 + $0x51] sm:$0xff]
    %v2467 = vld [vmem:[%s2073 + $0x61] sm:$0xff]
    %v2468 = vld [vmem:[%s2073 + $0x69] sm:$0xff]
    %v2469 = vld [vmem:[%s2073 + $0x79] sm:$0xff]
    %v2470 = vld [vmem:[%s2073 + $0x81] sm:$0xff]
    %v2471 = vld [vmem:[%s2073 + $0x91] sm:$0xff]
    %v2472 = vld [vmem:[%s2073 + $0x99] sm:$0xff]
    %v2473 = vld [vmem:[%s2073 + $0xa9] sm:$0xff]
    %v2474 = vld [vmem:[%s2073 + $0xb1] sm:$0xff]
    %v2475 = vld [vmem:[%s2073 + $0xc1] sm:$0xff]
    %v2476 = vld [vmem:[%s2073 + $0xc9] sm:$0xff]
    %v2477 = vld [vmem:[%s2073 + $0xd9] sm:$0xff]
    %v2478 = vld [vmem:[%s2073 + $0xe1] sm:$0xff]
    %v2479 = vld [vmem:[%s2073 + $0xf1] sm:$0xff]
    %v2480 = vld [vmem:[%s2073 + $0xf9] sm:$0xff]
    %v2481 = vld [vmem:[%s2073 + $0x109] sm:$0xff]
    %v2482 = vld [vmem:[%s2073 + $0x111] sm:$0xff]
    %v2483 = vld [vmem:[%s2073 + $0x121] sm:$0xff]
    %v2484 = vld [vmem:[%s2073 + $0x129] sm:$0xff]
    %v2485 = vld [vmem:[%s2073 + $0x139] sm:$0xff]
    %v2486 = vld [vmem:[%s2073 + $0x141] sm:$0xff]
    %v2487 = vld [vmem:[%s2073 + $0x151] sm:$0xff]
    %v2488 = vld [vmem:[%s2073 + $0x159] sm:$0xff]
    %v2489 = vld [vmem:[%s2073 + $0x169] sm:$0xff]
    %v2490 = vld [vmem:[%s2073 + $0x171] sm:$0xff]
    %v2491 = vld [vmem:[%s2073 + $0x1b1] sm:$0xff]
    %v2492 = vld [vmem:[%s2073 + $0x1b9] sm:$0xff]
    %v2493 = vld [vmem:[%s2073 + $0x1c9] sm:$0xff]
    %v2494 = vld [vmem:[%s2073 + $0x1d1] sm:$0xff]
    %v2495 = vld [vmem:[%s2073 + $0x1e1] sm:$0xff]
    %v2496 = vld [vmem:[%s2073 + $0x1e9] sm:$0xff]
    %v2497 = vld [vmem:[%s2073 + $0x1f9] sm:$0xff]
    %v2498 = vld [vmem:[%s2073 + $0x201] sm:$0xff]
    %v2499 = vld [vmem:[%s2073 + $0x211] sm:$0xff]
    %v2500 = vld [vmem:[%s2073 + $0x219] sm:$0xff]
    %v2501 = vld [vmem:[%s2073 + $0x229] sm:$0xff]
    %v2502 = vld [vmem:[%s2073 + $0x231] sm:$0xff]
    %v2503 = vld [vmem:[%s2073 + $0x241] sm:$0xff]
    %v2504 = vld [vmem:[%s2073 + $0x249] sm:$0xff]
    %v2505 = vld [vmem:[%s2073 + $0x259] sm:$0xff]
    %v2506 = vld [vmem:[%s2073 + $0x261] sm:$0xff]
    %v2507 = vld [vmem:[%s2073 + $0x271] sm:$0xff]
    %v2508 = vld [vmem:[%s2073 + $0x279] sm:$0xff]
    %v2509 = vld [vmem:[%s2073 + $0x289] sm:$0xff]
    %v2510 = vld [vmem:[%s2073 + $0x291] sm:$0xff]
    %v2511 = vld [vmem:[%s2073 + $0x2a1] sm:$0xff]
    %v2512 = vld [vmem:[%s2073 + $0x2a9] sm:$0xff]
    %v2513 = vld [vmem:[%s2073 + $0x2b9] sm:$0xff]
    %v2514 = vld [vmem:[%s2073 + $0x2c1] sm:$0xff]
    %v2515 = vld [vmem:[%s2073 + $0x2d1] sm:$0xff]
    %v2516 = vld [vmem:[%s2073 + $0x2d9] sm:$0xff]
    %v2517 = vld [vmem:[%s2073 + $0x2e9] sm:$0xff]
    %v2518 = vld [vmem:[%s2073 + $0x2f1] sm:$0xff]
    %v2519 = vld [vmem:[%s2073 + $0x301] sm:$0xff]
    %v2520 = vld [vmem:[%s2073 + $0x309] sm:$0xff]
    %v2521 = vld [vmem:[%s2073 + $0x319] sm:$0xff]
    %v2522 = vld [vmem:[%s2073 + $0x321] sm:$0xff]
    %2587 = vrot.lane.b32.xlu0 %v2459, 28
    %v2588 = vpop.permute.xlu0 %2587
    %2589 = vrot.lane.b32.xlu0 %v2460, 28
    %v2590 = vpop.permute.xlu0 %2589
    %2591 = vrot.lane.b32.xlu0 %v2461, 28
    %v2592 = vpop.permute.xlu0 %2591
    %2593 = vrot.lane.b32.xlu0 %v2462, 28
    %v2594 = vpop.permute.xlu0 %2593
    %2595 = vrot.lane.b32.xlu0 %v2463, 28
    %v2596 = vpop.permute.xlu0 %2595
    %2597 = vrot.lane.b32.xlu0 %v2464, 28
    %v2598 = vpop.permute.xlu0 %2597
    %2599 = vrot.lane.b32.xlu0 %v2465, 28
    %v2600 = vpop.permute.xlu0 %2599
    %2601 = vrot.lane.b32.xlu0 %v2466, 28
    %v2602 = vpop.permute.xlu0 %2601
    %2603 = vrot.lane.b32.xlu0 %v2467, 28
    %v2604 = vpop.permute.xlu0 %2603
    %2605 = vrot.lane.b32.xlu0 %v2468, 28
    %v2606 = vpop.permute.xlu0 %2605
    %2607 = vrot.lane.b32.xlu0 %v2469, 28
    %v2608 = vpop.permute.xlu0 %2607
    %2609 = vrot.lane.b32.xlu0 %v2470, 28
    %v2610 = vpop.permute.xlu0 %2609
    %2611 = vrot.lane.b32.xlu0 %v2471, 28
    %v2612 = vpop.permute.xlu0 %2611
    %2613 = vrot.lane.b32.xlu0 %v2472, 28
    %v2614 = vpop.permute.xlu0 %2613
    %2615 = vrot.lane.b32.xlu0 %v2473, 28
    %v2616 = vpop.permute.xlu0 %2615
    %2617 = vrot.lane.b32.xlu0 %v2474, 28
    %v2618 = vpop.permute.xlu0 %2617
    %2619 = vrot.lane.b32.xlu0 %v2475, 28
    %v2620 = vpop.permute.xlu0 %2619
    %2621 = vrot.lane.b32.xlu0 %v2476, 28
    %v2622 = vpop.permute.xlu0 %2621
    %2623 = vrot.lane.b32.xlu0 %v2477, 28
    %v2624 = vpop.permute.xlu0 %2623
    %2625 = vrot.lane.b32.xlu0 %v2478, 28
    %v2626 = vpop.permute.xlu0 %2625
    %2627 = vrot.lane.b32.xlu0 %v2479, 28
    %v2628 = vpop.permute.xlu0 %2627
    %2629 = vrot.lane.b32.xlu0 %v2480, 28
    %v2630 = vpop.permute.xlu0 %2629
    %2631 = vrot.lane.b32.xlu0 %v2481, 28
    %v2632 = vpop.permute.xlu0 %2631
    %2633 = vrot.lane.b32.xlu0 %v2482, 28
    %v2634 = vpop.permute.xlu0 %2633
    %2635 = vrot.lane.b32.xlu0 %v2483, 28
    %v2636 = vpop.permute.xlu0 %2635
    %2637 = vrot.lane.b32.xlu0 %v2484, 28
    %v2638 = vpop.permute.xlu0 %2637
    %2639 = vrot.lane.b32.xlu0 %v2485, 28
    %v2640 = vpop.permute.xlu0 %2639
    %2641 = vrot.lane.b32.xlu0 %v2486, 28
    %v2642 = vpop.permute.xlu0 %2641
    %2643 = vrot.lane.b32.xlu0 %v2487, 28
    %v2644 = vpop.permute.xlu0 %2643
    %2645 = vrot.lane.b32.xlu0 %v2488, 28
    %v2646 = vpop.permute.xlu0 %2645
    %2647 = vrot.lane.b32.xlu0 %v2489, 28
    %v2648 = vpop.permute.xlu0 %2647
    %2649 = vrot.lane.b32.xlu0 %v2490, 28
    %v2650 = vpop.permute.xlu0 %2649
    %2651 = vrot.lane.b32.xlu0 %v2491, 28
    %v2652 = vpop.permute.xlu0 %2651
    %2653 = vrot.lane.b32.xlu0 %v2492, 28
    %v2654 = vpop.permute.xlu0 %2653
    %2655 = vrot.lane.b32.xlu0 %v2493, 28
    %v2656 = vpop.permute.xlu0 %2655
    %2657 = vrot.lane.b32.xlu0 %v2494, 28
    %v2658 = vpop.permute.xlu0 %2657
    %2659 = vrot.lane.b32.xlu0 %v2495, 28
    %v2660 = vpop.permute.xlu0 %2659
    %2661 = vrot.lane.b32.xlu0 %v2496, 28
    %v2662 = vpop.permute.xlu0 %2661
    %2663 = vrot.lane.b32.xlu0 %v2497, 28
    %v2664 = vpop.permute.xlu0 %2663
    %2665 = vrot.lane.b32.xlu0 %v2498, 28
    %v2666 = vpop.permute.xlu0 %2665
    %2667 = vrot.lane.b32.xlu0 %v2499, 28
    %v2668 = vpop.permute.xlu0 %2667
    %2669 = vrot.lane.b32.xlu0 %v2500, 28
    %v2670 = vpop.permute.xlu0 %2669
    %2671 = vrot.lane.b32.xlu0 %v2501, 28
    %v2672 = vpop.permute.xlu0 %2671
    %2673 = vrot.lane.b32.xlu0 %v2502, 28
    %v2674 = vpop.permute.xlu0 %2673
    %2675 = vrot.lane.b32.xlu0 %v2503, 28
    %v2676 = vpop.permute.xlu0 %2675
    %2677 = vrot.lane.b32.xlu0 %v2504, 28
    %v2678 = vpop.permute.xlu0 %2677
    %2679 = vrot.lane.b32.xlu0 %v2505, 28
    %v2680 = vpop.permute.xlu0 %2679
    %2681 = vrot.lane.b32.xlu0 %v2506, 28
    %v2682 = vpop.permute.xlu0 %2681
    %2683 = vrot.lane.b32.xlu0 %v2507, 28
    %v2684 = vpop.permute.xlu0 %2683
    %2685 = vrot.lane.b32.xlu0 %v2508, 28
    %v2686 = vpop.permute.xlu0 %2685
    %2687 = vrot.lane.b32.xlu0 %v2509, 28
    %v2688 = vpop.permute.xlu0 %2687
    %2689 = vrot.lane.b32.xlu0 %v2510, 28
    %v2690 = vpop.permute.xlu0 %2689
    %2691 = vrot.lane.b32.xlu0 %v2511, 28
    %v2692 = vpop.permute.xlu0 %2691
    %2693 = vrot.lane.b32.xlu0 %v2512, 28
    %v2694 = vpop.permute.xlu0 %2693
    %2695 = vrot.lane.b32.xlu0 %v2513, 28
    %v2696 = vpop.permute.xlu0 %2695
    %2697 = vrot.lane.b32.xlu0 %v2514, 28
    %v2698 = vpop.permute.xlu0 %2697
    %2699 = vrot.lane.b32.xlu0 %v2515, 28
    %v2700 = vpop.permute.xlu0 %2699
    %2701 = vrot.lane.b32.xlu0 %v2516, 28
    %v2702 = vpop.permute.xlu0 %2701
    %2703 = vrot.lane.b32.xlu0 %v2517, 28
    %v2704 = vpop.permute.xlu0 %2703
    %2705 = vrot.lane.b32.xlu0 %v2518, 28
    %v2706 = vpop.permute.xlu0 %2705
    %2707 = vrot.lane.b32.xlu0 %v2519, 28
    %v2708 = vpop.permute.xlu0 %2707
    %2709 = vrot.lane.b32.xlu0 %v2520, 28
    %v2710 = vpop.permute.xlu0 %2709
    %2711 = vrot.lane.b32.xlu0 %v2521, 28
    %v2712 = vpop.permute.xlu0 %2711
    %2713 = vrot.lane.b32.xlu0 %v2522, 28
    %v2714 = vpop.permute.xlu0 %2713
    %vm2779 = vcmask 261344
    %2780 = vst.msk [vmem:[#allocation2] sm:$0xff] %vm2779, %v2588
    %2781 = vst.msk [vmem:[#allocation2 + $0x8] sm:$0xff] %vm2779, %v2590
    %2782 = vst.msk [vmem:[#allocation2 + $0x10] sm:$0xff] %vm2779, %v2592
    %2783 = vst.msk [vmem:[#allocation2 + $0x18] sm:$0xff] %vm2779, %v2594
    %2784 = vst.msk [vmem:[#allocation2 + $0x20] sm:$0xff] %vm2779, %v2596
    %2785 = vst.msk [vmem:[#allocation2 + $0x28] sm:$0xff] %vm2779, %v2598
    %2786 = vst.msk [vmem:[#allocation2 + $0x30] sm:$0xff] %vm2779, %v2600
    %2787 = vst.msk [vmem:[#allocation2 + $0x38] sm:$0xff] %vm2779, %v2602
    %2788 = vst.msk [vmem:[#allocation2 + $0x40] sm:$0xff] %vm2779, %v2604
    %2789 = vst.msk [vmem:[#allocation2 + $0x48] sm:$0xff] %vm2779, %v2606
    %2790 = vst.msk [vmem:[#allocation2 + $0x50] sm:$0xff] %vm2779, %v2608
    %2791 = vst.msk [vmem:[#allocation2 + $0x58] sm:$0xff] %vm2779, %v2610
    %2792 = vst.msk [vmem:[#allocation2 + $0x60] sm:$0xff] %vm2779, %v2612
    %2793 = vst.msk [vmem:[#allocation2 + $0x68] sm:$0xff] %vm2779, %v2614
    %2794 = vst.msk [vmem:[#allocation2 + $0x70] sm:$0xff] %vm2779, %v2616
    %2795 = vst.msk [vmem:[#allocation2 + $0x78] sm:$0xff] %vm2779, %v2618
    %2796 = vst.msk [vmem:[#allocation2 + $0x80] sm:$0xff] %vm2779, %v2620
    %2797 = vst.msk [vmem:[#allocation2 + $0x88] sm:$0xff] %vm2779, %v2622
    %2798 = vst.msk [vmem:[#allocation2 + $0x90] sm:$0xff] %vm2779, %v2624
    %2799 = vst.msk [vmem:[#allocation2 + $0x98] sm:$0xff] %vm2779, %v2626
    %2800 = vst.msk [vmem:[#allocation2 + $0xa0] sm:$0xff] %vm2779, %v2628
    %2801 = vst.msk [vmem:[#allocation2 + $0xa8] sm:$0xff] %vm2779, %v2630
    %2802 = vst.msk [vmem:[#allocation2 + $0xb0] sm:$0xff] %vm2779, %v2632
    %2803 = vst.msk [vmem:[#allocation2 + $0xb8] sm:$0xff] %vm2779, %v2634
    %2804 = vst.msk [vmem:[#allocation2 + $0xc0] sm:$0xff] %vm2779, %v2636
    %2805 = vst.msk [vmem:[#allocation2 + $0xc8] sm:$0xff] %vm2779, %v2638
    %2806 = vst.msk [vmem:[#allocation2 + $0xd0] sm:$0xff] %vm2779, %v2640
    %2807 = vst.msk [vmem:[#allocation2 + $0xd8] sm:$0xff] %vm2779, %v2642
    %2808 = vst.msk [vmem:[#allocation2 + $0xe0] sm:$0xff] %vm2779, %v2644
    %2809 = vst.msk [vmem:[#allocation2 + $0xe8] sm:$0xff] %vm2779, %v2646
    %2810 = vst.msk [vmem:[#allocation2 + $0xf0] sm:$0xff] %vm2779, %v2648
    %2811 = vst.msk [vmem:[#allocation2 + $0xf8] sm:$0xff] %vm2779, %v2650
    %2812 = vst.msk [vmem:[#allocation2 + $0x100] sm:$0xff] %vm2779, %v2652
    %2813 = vst.msk [vmem:[#allocation2 + $0x108] sm:$0xff] %vm2779, %v2654
    %2814 = vst.msk [vmem:[#allocation2 + $0x110] sm:$0xff] %vm2779, %v2656
    %2815 = vst.msk [vmem:[#allocation2 + $0x118] sm:$0xff] %vm2779, %v2658
    %2816 = vst.msk [vmem:[#allocation2 + $0x120] sm:$0xff] %vm2779, %v2660
    %2817 = vst.msk [vmem:[#allocation2 + $0x128] sm:$0xff] %vm2779, %v2662
    %2818 = vst.msk [vmem:[#allocation2 + $0x130] sm:$0xff] %vm2779, %v2664
    %2819 = vst.msk [vmem:[#allocation2 + $0x138] sm:$0xff] %vm2779, %v2666
    %2820 = vst.msk [vmem:[#allocation2 + $0x140] sm:$0xff] %vm2779, %v2668
    %2821 = vst.msk [vmem:[#allocation2 + $0x148] sm:$0xff] %vm2779, %v2670
    %2822 = vst.msk [vmem:[#allocation2 + $0x150] sm:$0xff] %vm2779, %v2672
    %2823 = vst.msk [vmem:[#allocation2 + $0x158] sm:$0xff] %vm2779, %v2674
    %2824 = vst.msk [vmem:[#allocation2 + $0x160] sm:$0xff] %vm2779, %v2676
    %2825 = vst.msk [vmem:[#allocation2 + $0x168] sm:$0xff] %vm2779, %v2678
    %2826 = vst.msk [vmem:[#allocation2 + $0x170] sm:$0xff] %vm2779, %v2680
    %2827 = vst.msk [vmem:[#allocation2 + $0x178] sm:$0xff] %vm2779, %v2682
    %2828 = vst.msk [vmem:[#allocation2 + $0x180] sm:$0xff] %vm2779, %v2684
    %2829 = vst.msk [vmem:[#allocation2 + $0x188] sm:$0xff] %vm2779, %v2686
    %2830 = vst.msk [vmem:[#allocation2 + $0x190] sm:$0xff] %vm2779, %v2688
    %2831 = vst.msk [vmem:[#allocation2 + $0x198] sm:$0xff] %vm2779, %v2690
    %2832 = vst.msk [vmem:[#allocation2 + $0x1a0] sm:$0xff] %vm2779, %v2692
    %2833 = vst.msk [vmem:[#allocation2 + $0x1a8] sm:$0xff] %vm2779, %v2694
    %2834 = vst.msk [vmem:[#allocation2 + $0x1b0] sm:$0xff] %vm2779, %v2696
    %2835 = vst.msk [vmem:[#allocation2 + $0x1b8] sm:$0xff] %vm2779, %v2698
    %2836 = vst.msk [vmem:[#allocation2 + $0x1c0] sm:$0xff] %vm2779, %v2700
    %2837 = vst.msk [vmem:[#allocation2 + $0x1c8] sm:$0xff] %vm2779, %v2702
    %2838 = vst.msk [vmem:[#allocation2 + $0x1d0] sm:$0xff] %vm2779, %v2704
    %2839 = vst.msk [vmem:[#allocation2 + $0x1d8] sm:$0xff] %vm2779, %v2706
    %2840 = vst.msk [vmem:[#allocation2 + $0x1e0] sm:$0xff] %vm2779, %v2708
    %2841 = vst.msk [vmem:[#allocation2 + $0x1e8] sm:$0xff] %vm2779, %v2710
    %2842 = vst.msk [vmem:[#allocation2 + $0x1f0] sm:$0xff] %vm2779, %v2712
    %2843 = vst.msk [vmem:[#allocation2 + $0x1f8] sm:$0xff] %vm2779, %v2714
    %v2844 = vld [vmem:[%s2073 + $0x2] sm:$0xff]
    %v2845 = vld [vmem:[%s2073 + $0xa] sm:$0xff]
    %v2846 = vld [vmem:[%s2073 + $0x1a] sm:$0xff]
    %v2847 = vld [vmem:[%s2073 + $0x22] sm:$0xff]
    %v2848 = vld [vmem:[%s2073 + $0x32] sm:$0xff]
    %v2849 = vld [vmem:[%s2073 + $0x3a] sm:$0xff]
    %v2850 = vld [vmem:[%s2073 + $0x4a] sm:$0xff]
    %v2851 = vld [vmem:[%s2073 + $0x52] sm:$0xff]
    %v2852 = vld [vmem:[%s2073 + $0x62] sm:$0xff]
    %v2853 = vld [vmem:[%s2073 + $0x6a] sm:$0xff]
    %v2854 = vld [vmem:[%s2073 + $0x7a] sm:$0xff]
    %v2855 = vld [vmem:[%s2073 + $0x82] sm:$0xff]
    %v2856 = vld [vmem:[%s2073 + $0x92] sm:$0xff]
    %v2857 = vld [vmem:[%s2073 + $0x9a] sm:$0xff]
    %v2858 = vld [vmem:[%s2073 + $0xaa] sm:$0xff]
    %v2859 = vld [vmem:[%s2073 + $0xb2] sm:$0xff]
    %v2860 = vld [vmem:[%s2073 + $0xc2] sm:$0xff]
    %v2861 = vld [vmem:[%s2073 + $0xca] sm:$0xff]
    %v2862 = vld [vmem:[%s2073 + $0xda] sm:$0xff]
    %v2863 = vld [vmem:[%s2073 + $0xe2] sm:$0xff]
    %v2864 = vld [vmem:[%s2073 + $0xf2] sm:$0xff]
    %v2865 = vld [vmem:[%s2073 + $0xfa] sm:$0xff]
    %v2866 = vld [vmem:[%s2073 + $0x10a] sm:$0xff]
    %v2867 = vld [vmem:[%s2073 + $0x112] sm:$0xff]
    %v2868 = vld [vmem:[%s2073 + $0x122] sm:$0xff]
    %v2869 = vld [vmem:[%s2073 + $0x12a] sm:$0xff]
    %v2870 = vld [vmem:[%s2073 + $0x13a] sm:$0xff]
    %v2871 = vld [vmem:[%s2073 + $0x142] sm:$0xff]
    %v2872 = vld [vmem:[%s2073 + $0x152] sm:$0xff]
    %v2873 = vld [vmem:[%s2073 + $0x15a] sm:$0xff]
    %v2874 = vld [vmem:[%s2073 + $0x16a] sm:$0xff]
    %v2875 = vld [vmem:[%s2073 + $0x172] sm:$0xff]
    %v2876 = vld [vmem:[%s2073 + $0x1b2] sm:$0xff]
    %v2877 = vld [vmem:[%s2073 + $0x1ba] sm:$0xff]
    %v2878 = vld [vmem:[%s2073 + $0x1ca] sm:$0xff]
    %v2879 = vld [vmem:[%s2073 + $0x1d2] sm:$0xff]
    %v2880 = vld [vmem:[%s2073 + $0x1e2] sm:$0xff]
    %v2881 = vld [vmem:[%s2073 + $0x1ea] sm:$0xff]
    %v2882 = vld [vmem:[%s2073 + $0x1fa] sm:$0xff]
    %v2883 = vld [vmem:[%s2073 + $0x202] sm:$0xff]
    %v2884 = vld [vmem:[%s2073 + $0x212] sm:$0xff]
    %v2885 = vld [vmem:[%s2073 + $0x21a] sm:$0xff]
    %v2886 = vld [vmem:[%s2073 + $0x22a] sm:$0xff]
    %v2887 = vld [vmem:[%s2073 + $0x232] sm:$0xff]
    %v2888 = vld [vmem:[%s2073 + $0x242] sm:$0xff]
    %v2889 = vld [vmem:[%s2073 + $0x24a] sm:$0xff]
    %v2890 = vld [vmem:[%s2073 + $0x25a] sm:$0xff]
    %v2891 = vld [vmem:[%s2073 + $0x262] sm:$0xff]
    %v2892 = vld [vmem:[%s2073 + $0x272] sm:$0xff]
    %v2893 = vld [vmem:[%s2073 + $0x27a] sm:$0xff]
    %v2894 = vld [vmem:[%s2073 + $0x28a] sm:$0xff]
    %v2895 = vld [vmem:[%s2073 + $0x292] sm:$0xff]
    %v2896 = vld [vmem:[%s2073 + $0x2a2] sm:$0xff]
    %v2897 = vld [vmem:[%s2073 + $0x2aa] sm:$0xff]
    %v2898 = vld [vmem:[%s2073 + $0x2ba] sm:$0xff]
    %v2899 = vld [vmem:[%s2073 + $0x2c2] sm:$0xff]
    %v2900 = vld [vmem:[%s2073 + $0x2d2] sm:$0xff]
    %v2901 = vld [vmem:[%s2073 + $0x2da] sm:$0xff]
    %v2902 = vld [vmem:[%s2073 + $0x2ea] sm:$0xff]
    %v2903 = vld [vmem:[%s2073 + $0x2f2] sm:$0xff]
    %v2904 = vld [vmem:[%s2073 + $0x302] sm:$0xff]
    %v2905 = vld [vmem:[%s2073 + $0x30a] sm:$0xff]
    %v2906 = vld [vmem:[%s2073 + $0x31a] sm:$0xff]
    %v2907 = vld [vmem:[%s2073 + $0x322] sm:$0xff]
    %2972 = vrot.lane.b32.xlu0 %v2844, 32
    %v2973 = vpop.permute.xlu0 %2972
    %2974 = vrot.lane.b32.xlu0 %v2845, 32
    %v2975 = vpop.permute.xlu0 %2974
    %2976 = vrot.lane.b32.xlu0 %v2846, 32
    %v2977 = vpop.permute.xlu0 %2976
    %2978 = vrot.lane.b32.xlu0 %v2847, 32
    %v2979 = vpop.permute.xlu0 %2978
    %2980 = vrot.lane.b32.xlu0 %v2848, 32
    %v2981 = vpop.permute.xlu0 %2980
    %2982 = vrot.lane.b32.xlu0 %v2849, 32
    %v2983 = vpop.permute.xlu0 %2982
    %2984 = vrot.lane.b32.xlu0 %v2850, 32
    %v2985 = vpop.permute.xlu0 %2984
    %2986 = vrot.lane.b32.xlu0 %v2851, 32
    %v2987 = vpop.permute.xlu0 %2986
    %2988 = vrot.lane.b32.xlu0 %v2852, 32
    %v2989 = vpop.permute.xlu0 %2988
    %2990 = vrot.lane.b32.xlu0 %v2853, 32
    %v2991 = vpop.permute.xlu0 %2990
    %2992 = vrot.lane.b32.xlu0 %v2854, 32
    %v2993 = vpop.permute.xlu0 %2992
    %2994 = vrot.lane.b32.xlu0 %v2855, 32
    %v2995 = vpop.permute.xlu0 %2994
    %2996 = vrot.lane.b32.xlu0 %v2856, 32
    %v2997 = vpop.permute.xlu0 %2996
    %2998 = vrot.lane.b32.xlu0 %v2857, 32
    %v2999 = vpop.permute.xlu0 %2998
    %3000 = vrot.lane.b32.xlu0 %v2858, 32
    %v3001 = vpop.permute.xlu0 %3000
    %3002 = vrot.lane.b32.xlu0 %v2859, 32
    %v3003 = vpop.permute.xlu0 %3002
    %3004 = vrot.lane.b32.xlu0 %v2860, 32
    %v3005 = vpop.permute.xlu0 %3004
    %3006 = vrot.lane.b32.xlu0 %v2861, 32
    %v3007 = vpop.permute.xlu0 %3006
    %3008 = vrot.lane.b32.xlu0 %v2862, 32
    %v3009 = vpop.permute.xlu0 %3008
    %3010 = vrot.lane.b32.xlu0 %v2863, 32
    %v3011 = vpop.permute.xlu0 %3010
    %3012 = vrot.lane.b32.xlu0 %v2864, 32
    %v3013 = vpop.permute.xlu0 %3012
    %3014 = vrot.lane.b32.xlu0 %v2865, 32
    %v3015 = vpop.permute.xlu0 %3014
    %3016 = vrot.lane.b32.xlu0 %v2866, 32
    %v3017 = vpop.permute.xlu0 %3016
    %3018 = vrot.lane.b32.xlu0 %v2867, 32
    %v3019 = vpop.permute.xlu0 %3018
    %3020 = vrot.lane.b32.xlu0 %v2868, 32
    %v3021 = vpop.permute.xlu0 %3020
    %3022 = vrot.lane.b32.xlu0 %v2869, 32
    %v3023 = vpop.permute.xlu0 %3022
    %3024 = vrot.lane.b32.xlu0 %v2870, 32
    %v3025 = vpop.permute.xlu0 %3024
    %3026 = vrot.lane.b32.xlu0 %v2871, 32
    %v3027 = vpop.permute.xlu0 %3026
    %3028 = vrot.lane.b32.xlu0 %v2872, 32
    %v3029 = vpop.permute.xlu0 %3028
    %3030 = vrot.lane.b32.xlu0 %v2873, 32
    %v3031 = vpop.permute.xlu0 %3030
    %3032 = vrot.lane.b32.xlu0 %v2874, 32
    %v3033 = vpop.permute.xlu0 %3032
    %3034 = vrot.lane.b32.xlu0 %v2875, 32
    %v3035 = vpop.permute.xlu0 %3034
    %3036 = vrot.lane.b32.xlu0 %v2876, 32
    %v3037 = vpop.permute.xlu0 %3036
    %3038 = vrot.lane.b32.xlu0 %v2877, 32
    %v3039 = vpop.permute.xlu0 %3038
    %3040 = vrot.lane.b32.xlu0 %v2878, 32
    %v3041 = vpop.permute.xlu0 %3040
    %3042 = vrot.lane.b32.xlu0 %v2879, 32
    %v3043 = vpop.permute.xlu0 %3042
    %3044 = vrot.lane.b32.xlu0 %v2880, 32
    %v3045 = vpop.permute.xlu0 %3044
    %3046 = vrot.lane.b32.xlu0 %v2881, 32
    %v3047 = vpop.permute.xlu0 %3046
    %3048 = vrot.lane.b32.xlu0 %v2882, 32
    %v3049 = vpop.permute.xlu0 %3048
    %3050 = vrot.lane.b32.xlu0 %v2883, 32
    %v3051 = vpop.permute.xlu0 %3050
    %3052 = vrot.lane.b32.xlu0 %v2884, 32
    %v3053 = vpop.permute.xlu0 %3052
    %3054 = vrot.lane.b32.xlu0 %v2885, 32
    %v3055 = vpop.permute.xlu0 %3054
    %3056 = vrot.lane.b32.xlu0 %v2886, 32
    %v3057 = vpop.permute.xlu0 %3056
    %3058 = vrot.lane.b32.xlu0 %v2887, 32
    %v3059 = vpop.permute.xlu0 %3058
    %3060 = vrot.lane.b32.xlu0 %v2888, 32
    %v3061 = vpop.permute.xlu0 %3060
    %3062 = vrot.lane.b32.xlu0 %v2889, 32
    %v3063 = vpop.permute.xlu0 %3062
    %3064 = vrot.lane.b32.xlu0 %v2890, 32
    %v3065 = vpop.permute.xlu0 %3064
    %3066 = vrot.lane.b32.xlu0 %v2891, 32
    %v3067 = vpop.permute.xlu0 %3066
    %3068 = vrot.lane.b32.xlu0 %v2892, 32
    %v3069 = vpop.permute.xlu0 %3068
    %3070 = vrot.lane.b32.xlu0 %v2893, 32
    %v3071 = vpop.permute.xlu0 %3070
    %3072 = vrot.lane.b32.xlu0 %v2894, 32
    %v3073 = vpop.permute.xlu0 %3072
    %3074 = vrot.lane.b32.xlu0 %v2895, 32
    %v3075 = vpop.permute.xlu0 %3074
    %3076 = vrot.lane.b32.xlu0 %v2896, 32
    %v3077 = vpop.permute.xlu0 %3076
    %3078 = vrot.lane.b32.xlu0 %v2897, 32
    %v3079 = vpop.permute.xlu0 %3078
    %3080 = vrot.lane.b32.xlu0 %v2898, 32
    %v3081 = vpop.permute.xlu0 %3080
    %3082 = vrot.lane.b32.xlu0 %v2899, 32
    %v3083 = vpop.permute.xlu0 %3082
    %3084 = vrot.lane.b32.xlu0 %v2900, 32
    %v3085 = vpop.permute.xlu0 %3084
    %3086 = vrot.lane.b32.xlu0 %v2901, 32
    %v3087 = vpop.permute.xlu0 %3086
    %3088 = vrot.lane.b32.xlu0 %v2902, 32
    %v3089 = vpop.permute.xlu0 %3088
    %3090 = vrot.lane.b32.xlu0 %v2903, 32
    %v3091 = vpop.permute.xlu0 %3090
    %3092 = vrot.lane.b32.xlu0 %v2904, 32
    %v3093 = vpop.permute.xlu0 %3092
    %3094 = vrot.lane.b32.xlu0 %v2905, 32
    %v3095 = vpop.permute.xlu0 %3094
    %3096 = vrot.lane.b32.xlu0 %v2906, 32
    %v3097 = vpop.permute.xlu0 %3096
    %3098 = vrot.lane.b32.xlu0 %v2907, 32
    %v3099 = vpop.permute.xlu0 %3098
    %vm3164 = vcmask 294144
    %3165 = vst.msk [vmem:[#allocation2] sm:$0xff] %vm3164, %v2973
    %3166 = vst.msk [vmem:[#allocation2 + $0x8] sm:$0xff] %vm3164, %v2975
    %3167 = vst.msk [vmem:[#allocation2 + $0x10] sm:$0xff] %vm3164, %v2977
    %3168 = vst.msk [vmem:[#allocation2 + $0x18] sm:$0xff] %vm3164, %v2979
    %3169 = vst.msk [vmem:[#allocation2 + $0x20] sm:$0xff] %vm3164, %v2981
    %3170 = vst.msk [vmem:[#allocation2 + $0x28] sm:$0xff] %vm3164, %v2983
    %3171 = vst.msk [vmem:[#allocation2 + $0x30] sm:$0xff] %vm3164, %v2985
    %3172 = vst.msk [vmem:[#allocation2 + $0x38] sm:$0xff] %vm3164, %v2987
    %3173 = vst.msk [vmem:[#allocation2 + $0x40] sm:$0xff] %vm3164, %v2989
    %3174 = vst.msk [vmem:[#allocation2 + $0x48] sm:$0xff] %vm3164, %v2991
    %3175 = vst.msk [vmem:[#allocation2 + $0x50] sm:$0xff] %vm3164, %v2993
    %3176 = vst.msk [vmem:[#allocation2 + $0x58] sm:$0xff] %vm3164, %v2995
    %3177 = vst.msk [vmem:[#allocation2 + $0x60] sm:$0xff] %vm3164, %v2997
    %3178 = vst.msk [vmem:[#allocation2 + $0x68] sm:$0xff] %vm3164, %v2999
    %3179 = vst.msk [vmem:[#allocation2 + $0x70] sm:$0xff] %vm3164, %v3001
    %3180 = vst.msk [vmem:[#allocation2 + $0x78] sm:$0xff] %vm3164, %v3003
    %3181 = vst.msk [vmem:[#allocation2 + $0x80] sm:$0xff] %vm3164, %v3005
    %3182 = vst.msk [vmem:[#allocation2 + $0x88] sm:$0xff] %vm3164, %v3007
    %3183 = vst.msk [vmem:[#allocation2 + $0x90] sm:$0xff] %vm3164, %v3009
    %3184 = vst.msk [vmem:[#allocation2 + $0x98] sm:$0xff] %vm3164, %v3011
    %3185 = vst.msk [vmem:[#allocation2 + $0xa0] sm:$0xff] %vm3164, %v3013
    %3186 = vst.msk [vmem:[#allocation2 + $0xa8] sm:$0xff] %vm3164, %v3015
    %3187 = vst.msk [vmem:[#allocation2 + $0xb0] sm:$0xff] %vm3164, %v3017
    %3188 = vst.msk [vmem:[#allocation2 + $0xb8] sm:$0xff] %vm3164, %v3019
    %3189 = vst.msk [vmem:[#allocation2 + $0xc0] sm:$0xff] %vm3164, %v3021
    %3190 = vst.msk [vmem:[#allocation2 + $0xc8] sm:$0xff] %vm3164, %v3023
    %3191 = vst.msk [vmem:[#allocation2 + $0xd0] sm:$0xff] %vm3164, %v3025
    %3192 = vst.msk [vmem:[#allocation2 + $0xd8] sm:$0xff] %vm3164, %v3027
    %3193 = vst.msk [vmem:[#allocation2 + $0xe0] sm:$0xff] %vm3164, %v3029
    %3194 = vst.msk [vmem:[#allocation2 + $0xe8] sm:$0xff] %vm3164, %v3031
    %3195 = vst.msk [vmem:[#allocation2 + $0xf0] sm:$0xff] %vm3164, %v3033
    %3196 = vst.msk [vmem:[#allocation2 + $0xf8] sm:$0xff] %vm3164, %v3035
    %3197 = vst.msk [vmem:[#allocation2 + $0x100] sm:$0xff] %vm3164, %v3037
    %3198 = vst.msk [vmem:[#allocation2 + $0x108] sm:$0xff] %vm3164, %v3039
    %3199 = vst.msk [vmem:[#allocation2 + $0x110] sm:$0xff] %vm3164, %v3041
    %3200 = vst.msk [vmem:[#allocation2 + $0x118] sm:$0xff] %vm3164, %v3043
    %3201 = vst.msk [vmem:[#allocation2 + $0x120] sm:$0xff] %vm3164, %v3045
    %3202 = vst.msk [vmem:[#allocation2 + $0x128] sm:$0xff] %vm3164, %v3047
    %3203 = vst.msk [vmem:[#allocation2 + $0x130] sm:$0xff] %vm3164, %v3049
    %3204 = vst.msk [vmem:[#allocation2 + $0x138] sm:$0xff] %vm3164, %v3051
    %3205 = vst.msk [vmem:[#allocation2 + $0x140] sm:$0xff] %vm3164, %v3053
    %3206 = vst.msk [vmem:[#allocation2 + $0x148] sm:$0xff] %vm3164, %v3055
    %3207 = vst.msk [vmem:[#allocation2 + $0x150] sm:$0xff] %vm3164, %v3057
    %3208 = vst.msk [vmem:[#allocation2 + $0x158] sm:$0xff] %vm3164, %v3059
    %3209 = vst.msk [vmem:[#allocation2 + $0x160] sm:$0xff] %vm3164, %v3061
    %3210 = vst.msk [vmem:[#allocation2 + $0x168] sm:$0xff] %vm3164, %v3063
    %3211 = vst.msk [vmem:[#allocation2 + $0x170] sm:$0xff] %vm3164, %v3065
    %3212 = vst.msk [vmem:[#allocation2 + $0x178] sm:$0xff] %vm3164, %v3067
    %3213 = vst.msk [vmem:[#allocation2 + $0x180] sm:$0xff] %vm3164, %v3069
    %3214 = vst.msk [vmem:[#allocation2 + $0x188] sm:$0xff] %vm3164, %v3071
    %3215 = vst.msk [vmem:[#allocation2 + $0x190] sm:$0xff] %vm3164, %v3073
    %3216 = vst.msk [vmem:[#allocation2 + $0x198] sm:$0xff] %vm3164, %v3075
    %3217 = vst.msk [vmem:[#allocation2 + $0x1a0] sm:$0xff] %vm3164, %v3077
    %3218 = vst.msk [vmem:[#allocation2 + $0x1a8] sm:$0xff] %vm3164, %v3079
    %3219 = vst.msk [vmem:[#allocation2 + $0x1b0] sm:$0xff] %vm3164, %v3081
    %3220 = vst.msk [vmem:[#allocation2 + $0x1b8] sm:$0xff] %vm3164, %v3083
    %3221 = vst.msk [vmem:[#allocation2 + $0x1c0] sm:$0xff] %vm3164, %v3085
    %3222 = vst.msk [vmem:[#allocation2 + $0x1c8] sm:$0xff] %vm3164, %v3087
    %3223 = vst.msk [vmem:[#allocation2 + $0x1d0] sm:$0xff] %vm3164, %v3089
    %3224 = vst.msk [vmem:[#allocation2 + $0x1d8] sm:$0xff] %vm3164, %v3091
    %3225 = vst.msk [vmem:[#allocation2 + $0x1e0] sm:$0xff] %vm3164, %v3093
    %3226 = vst.msk [vmem:[#allocation2 + $0x1e8] sm:$0xff] %vm3164, %v3095
    %3227 = vst.msk [vmem:[#allocation2 + $0x1f0] sm:$0xff] %vm3164, %v3097
    %3228 = vst.msk [vmem:[#allocation2 + $0x1f8] sm:$0xff] %vm3164, %v3099
    %v3229 = vld [vmem:[#allocation2] sm:$0xff]
    %v3230 = vld [vmem:[#allocation2 + $0x8] sm:$0xff]
    %v3231 = vld [vmem:[#allocation2 + $0x10] sm:$0xff]
    %v3232 = vld [vmem:[#allocation2 + $0x18] sm:$0xff]
    %v3233 = vld [vmem:[#allocation2 + $0x20] sm:$0xff]
    %v3234 = vld [vmem:[#allocation2 + $0x28] sm:$0xff]
    %v3235 = vld [vmem:[#allocation2 + $0x30] sm:$0xff]
    %v3236 = vld [vmem:[#allocation2 + $0x38] sm:$0xff]
    %v3237 = vld [vmem:[#allocation2 + $0x40] sm:$0xff]
    %v3238 = vld [vmem:[#allocation2 + $0x48] sm:$0xff]
    %v3239 = vld [vmem:[#allocation2 + $0x50] sm:$0xff]
    %v3240 = vld [vmem:[#allocation2 + $0x58] sm:$0xff]
    %v3241 = vld [vmem:[#allocation2 + $0x60] sm:$0xff]
    %v3242 = vld [vmem:[#allocation2 + $0x68] sm:$0xff]
    %v3243 = vld [vmem:[#allocation2 + $0x70] sm:$0xff]
    %v3244 = vld [vmem:[#allocation2 + $0x78] sm:$0xff]
    %v3245 = vld [vmem:[#allocation2 + $0x80] sm:$0xff]
    %v3246 = vld [vmem:[#allocation2 + $0x88] sm:$0xff]
    %v3247 = vld [vmem:[#allocation2 + $0x90] sm:$0xff]
    %v3248 = vld [vmem:[#allocation2 + $0x98] sm:$0xff]
    %v3249 = vld [vmem:[#allocation2 + $0xa0] sm:$0xff]
    %v3250 = vld [vmem:[#allocation2 + $0xa8] sm:$0xff]
    %v3251 = vld [vmem:[#allocation2 + $0xb0] sm:$0xff]
    %v3252 = vld [vmem:[#allocation2 + $0xb8] sm:$0xff]
    %v3253 = vld [vmem:[#allocation2 + $0xc0] sm:$0xff]
    %v3254 = vld [vmem:[#allocation2 + $0xc8] sm:$0xff]
    %v3255 = vld [vmem:[#allocation2 + $0xd0] sm:$0xff]
    %v3256 = vld [vmem:[#allocation2 + $0xd8] sm:$0xff]
    %v3257 = vld [vmem:[#allocation2 + $0xe0] sm:$0xff]
    %v3258 = vld [vmem:[#allocation2 + $0xe8] sm:$0xff]
    %v3259 = vld [vmem:[#allocation2 + $0xf0] sm:$0xff]
    %v3260 = vld [vmem:[#allocation2 + $0xf8] sm:$0xff]
    %v3261 = vld [vmem:[#allocation2 + $0x100] sm:$0xff]
    %v3262 = vld [vmem:[#allocation2 + $0x108] sm:$0xff]
    %v3263 = vld [vmem:[#allocation2 + $0x110] sm:$0xff]
    %v3264 = vld [vmem:[#allocation2 + $0x118] sm:$0xff]
    %v3265 = vld [vmem:[#allocation2 + $0x120] sm:$0xff]
    %v3266 = vld [vmem:[#allocation2 + $0x128] sm:$0xff]
    %v3267 = vld [vmem:[#allocation2 + $0x130] sm:$0xff]
    %v3268 = vld [vmem:[#allocation2 + $0x138] sm:$0xff]
    %v3269 = vld [vmem:[#allocation2 + $0x140] sm:$0xff]
    %v3270 = vld [vmem:[#allocation2 + $0x148] sm:$0xff]
    %v3271 = vld [vmem:[#allocation2 + $0x150] sm:$0xff]
    %v3272 = vld [vmem:[#allocation2 + $0x158] sm:$0xff]
    %v3273 = vld [vmem:[#allocation2 + $0x160] sm:$0xff]
    %v3274 = vld [vmem:[#allocation2 + $0x168] sm:$0xff]
    %v3275 = vld [vmem:[#allocation2 + $0x170] sm:$0xff]
    %v3276 = vld [vmem:[#allocation2 + $0x178] sm:$0xff]
    %v3277 = vld [vmem:[#allocation2 + $0x180] sm:$0xff]
    %v3278 = vld [vmem:[#allocation2 + $0x188] sm:$0xff]
    %v3279 = vld [vmem:[#allocation2 + $0x190] sm:$0xff]
    %v3280 = vld [vmem:[#allocation2 + $0x198] sm:$0xff]
    %v3281 = vld [vmem:[#allocation2 + $0x1a0] sm:$0xff]
    %v3282 = vld [vmem:[#allocation2 + $0x1a8] sm:$0xff]
    %v3283 = vld [vmem:[#allocation2 + $0x1b0] sm:$0xff]
    %v3284 = vld [vmem:[#allocation2 + $0x1b8] sm:$0xff]
    %v3285 = vld [vmem:[#allocation2 + $0x1c0] sm:$0xff]
    %v3286 = vld [vmem:[#allocation2 + $0x1c8] sm:$0xff]
    %v3287 = vld [vmem:[#allocation2 + $0x1d0] sm:$0xff]
    %v3288 = vld [vmem:[#allocation2 + $0x1d8] sm:$0xff]
    %v3289 = vld [vmem:[#allocation2 + $0x1e0] sm:$0xff]
    %v3290 = vld [vmem:[#allocation2 + $0x1e8] sm:$0xff]
    %v3291 = vld [vmem:[#allocation2 + $0x1f0] sm:$0xff]
    %v3292 = vld [vmem:[#allocation2 + $0x1f8] sm:$0xff]
    %v3293 = vld [vmem:[%s1] sm:$0xff]
    %v3294 = vld [vmem:[%s2] sm:$0xff]
    %3296 = vset.pattern.permute.xlu0 0
    %3297 = vperm.xlu0 %3296, %v3294
    %v3298 = vpop.permute.xlu0 %3297
    %vm3300 = vcmask 293888
    %v3302 = vsel %vm3300, %v3293, 0
    %v3305 = vsel %vm3300, %v3229, 0
    %v3308 = vsel %vm3300, %v3230, 0
    %v3311 = vsel %vm3300, %v3231, 0
    %v3314 = vsel %vm3300, %v3232, 0
    %v3317 = vsel %vm3300, %v3233, 0
    %v3320 = vsel %vm3300, %v3234, 0
    %v3323 = vsel %vm3300, %v3235, 0
    %v3326 = vsel %vm3300, %v3236, 0
    %v3329 = vsel %vm3300, %v3237, 0
    %v3332 = vsel %vm3300, %v3238, 0
    %v3335 = vsel %vm3300, %v3239, 0
    %v3338 = vsel %vm3300, %v3240, 0
    %v3341 = vsel %vm3300, %v3241, 0
    %v3344 = vsel %vm3300, %v3242, 0
    %v3347 = vsel %vm3300, %v3243, 0
    %v3350 = vsel %vm3300, %v3244, 0
    %v3353 = vsel %vm3300, %v3245, 0
    %v3356 = vsel %vm3300, %v3246, 0
    %v3359 = vsel %vm3300, %v3247, 0
    %v3362 = vsel %vm3300, %v3248, 0
    %v3365 = vsel %vm3300, %v3249, 0
    %v3368 = vsel %vm3300, %v3250, 0
    %v3371 = vsel %vm3300, %v3251, 0
    %v3374 = vsel %vm3300, %v3252, 0
    %v3377 = vsel %vm3300, %v3253, 0
    %v3380 = vsel %vm3300, %v3254, 0
    %v3383 = vsel %vm3300, %v3255, 0
    %v3386 = vsel %vm3300, %v3256, 0
    %v3389 = vsel %vm3300, %v3257, 0
    %v3392 = vsel %vm3300, %v3258, 0
    %v3395 = vsel %vm3300, %v3259, 0
    %v3398 = vsel %vm3300, %v3260, 0
    %v3401 = vsel %vm3300, %v3261, 0
    %v3404 = vsel %vm3300, %v3262, 0
    %v3407 = vsel %vm3300, %v3263, 0
    %v3410 = vsel %vm3300, %v3264, 0
    %v3413 = vsel %vm3300, %v3265, 0
    %v3416 = vsel %vm3300, %v3266, 0
    %v3419 = vsel %vm3300, %v3267, 0
    %v3422 = vsel %vm3300, %v3268, 0
    %v3425 = vsel %vm3300, %v3269, 0
    %v3428 = vsel %vm3300, %v3270, 0
    %v3431 = vsel %vm3300, %v3271, 0
    %v3434 = vsel %vm3300, %v3272, 0
    %v3437 = vsel %vm3300, %v3273, 0
    %v3440 = vsel %vm3300, %v3274, 0
    %v3443 = vsel %vm3300, %v3275, 0
    %v3446 = vsel %vm3300, %v3276, 0
    %v3449 = vsel %vm3300, %v3277, 0
    %v3452 = vsel %vm3300, %v3278, 0
    %v3455 = vsel %vm3300, %v3279, 0
    %v3458 = vsel %vm3300, %v3280, 0
    %v3461 = vsel %vm3300, %v3281, 0
    %v3464 = vsel %vm3300, %v3282, 0
    %v3467 = vsel %vm3300, %v3283, 0
    %v3470 = vsel %vm3300, %v3284, 0
    %v3473 = vsel %vm3300, %v3285, 0
    %v3476 = vsel %vm3300, %v3286, 0
    %v3479 = vsel %vm3300, %v3287, 0
    %v3482 = vsel %vm3300, %v3288, 0
    %v3485 = vsel %vm3300, %v3289, 0
    %v3488 = vsel %vm3300, %v3290, 0
    %v3491 = vsel %vm3300, %v3291, 0
    %v3494 = vsel %vm3300, %v3292, 0
    %3496 = vmatprep.subr.mxu0 0.0
    %3497 = vmatpush1.xpose.msra.mxu0 %v3305
    %3498 = vmatprep.subr.mxu0 0.0
    %3499 = vmatpush1.xpose.msra.mxu0 %v3308
    %3500 = vmatprep.subr.mxu0 0.0
    %3501 = vmatpush1.xpose.msra.mxu0 %v3311
    %3502 = vmatprep.subr.mxu0 0.0
    %3503 = vmatpush1.xpose.msra.mxu0 %v3314
    %3504 = vmatprep.subr.mxu0 0.0
    %3505 = vmatpush1.xpose.msra.mxu0 %v3317
    %3506 = vmatprep.subr.mxu0 0.0
    %3507 = vmatpush1.xpose.msra.mxu0 %v3320
    %3508 = vmatprep.subr.mxu0 0.0
    %3509 = vmatpush1.xpose.msra.mxu0 %v3323
    %3510 = vmatprep.subr.mxu0 0.0
    %3511 = vmatpush1.xpose.msra.mxu0 %v3326
    %3512 = vmatprep.subr.mxu0 0.0
    %3513 = vmatpush1.xpose.msra.mxu0 %v3329
    %3514 = vmatprep.subr.mxu0 0.0
    %3515 = vmatpush1.xpose.msra.mxu0 %v3332
    %3516 = vmatprep.subr.mxu0 0.0
    %3517 = vmatpush1.xpose.msra.mxu0 %v3335
    %3518 = vmatprep.subr.mxu0 0.0
    %3519 = vmatpush1.xpose.msra.mxu0 %v3338
    %3520 = vmatprep.subr.mxu0 0.0
    %3521 = vmatpush1.xpose.msra.mxu0 %v3341
    %3522 = vmatprep.subr.mxu0 0.0
    %3523 = vmatpush1.xpose.msra.mxu0 %v3344
    %3524 = vmatprep.subr.mxu0 0.0
    %3525 = vmatpush1.xpose.msra.mxu0 %v3347
    %3526 = vmatprep.subr.mxu0 0.0
    %3527 = vmatpush1.xpose.msra.mxu0 %v3350
    %3528 = vmatprep.subr.mxu0 0.0
    %3529 = vmatpush1.xpose.msra.mxu0 %v3353
    %3530 = vmatprep.subr.mxu0 0.0
    %3531 = vmatpush1.xpose.msra.mxu0 %v3356
    %3532 = vmatprep.subr.mxu0 0.0
    %3533 = vmatpush1.xpose.msra.mxu0 %v3359
    %3534 = vmatprep.subr.mxu0 0.0
    %3535 = vmatpush1.xpose.msra.mxu0 %v3362
    %3536 = vmatprep.subr.mxu0 0.0
    %3537 = vmatpush1.xpose.msra.mxu0 %v3365
    %3538 = vmatprep.subr.mxu0 0.0
    %3539 = vmatpush1.xpose.msra.mxu0 %v3368
    %3540 = vmatprep.subr.mxu0 0.0
    %3541 = vmatpush1.xpose.msra.mxu0 %v3371
    %3542 = vmatprep.subr.mxu0 0.0
    %3543 = vmatpush1.xpose.msra.mxu0 %v3374
    %3544 = vmatprep.subr.mxu0 0.0
    %3545 = vmatpush1.xpose.msra.mxu0 %v3377
    %3546 = vmatprep.subr.mxu0 0.0
    %3547 = vmatpush1.xpose.msra.mxu0 %v3380
    %3548 = vmatprep.subr.mxu0 0.0
    %3549 = vmatpush1.xpose.msra.mxu0 %v3383
    %3550 = vmatprep.subr.mxu0 0.0
    %3551 = vmatpush1.xpose.msra.mxu0 %v3386
    %3552 = vmatprep.subr.mxu0 0.0
    %3553 = vmatpush1.xpose.msra.mxu0 %v3389
    %3554 = vmatprep.subr.mxu0 0.0
    %3555 = vmatpush1.xpose.msra.mxu0 %v3392
    %3556 = vmatprep.subr.mxu0 0.0
    %3557 = vmatpush1.xpose.msra.mxu0 %v3395
    %3558 = vmatprep.subr.mxu0 0.0
    %3559 = vmatpush1.xpose.msra.mxu0 %v3398
    %3560 = vmatprep.mubr.f32.mxu0 0.0
    %3561 = vmatmul.mubr.f32.gmra.mrb[0].mxu0 %v3302
    %v3562 = vpop.f32.mrb[0].mxu0
    %v3563 = vadd.f32 %v3298, %v3562
    %v3564 = vpop.f32.mrb[0].mxu0
    %v3565 = vadd.f32 %v3298, %v3564
    %3566 = vdwg.mxu0
    %3567 = vmatprep.subr.mxu0 0.0
    %3568 = vmatpush1.xpose.msra.mxu0 %v3401
    %3569 = vmatprep.subr.mxu0 0.0
    %3570 = vmatpush1.xpose.msra.mxu0 %v3404
    %3571 = vmatprep.subr.mxu0 0.0
    %3572 = vmatpush1.xpose.msra.mxu0 %v3407
    %3573 = vmatprep.subr.mxu0 0.0
    %3574 = vmatpush1.xpose.msra.mxu0 %v3410
    %3575 = vmatprep.subr.mxu0 0.0
    %3576 = vmatpush1.xpose.msra.mxu0 %v3413
    %3577 = vmatprep.subr.mxu0 0.0
    %3578 = vmatpush1.xpose.msra.mxu0 %v3416
    %3579 = vmatprep.subr.mxu0 0.0
    %3580 = vmatpush1.xpose.msra.mxu0 %v3419
    %3581 = vmatprep.subr.mxu0 0.0
    %3582 = vmatpush1.xpose.msra.mxu0 %v3422
    %3583 = vmatprep.subr.mxu0 0.0
    %3584 = vmatpush1.xpose.msra.mxu0 %v3425
    %3585 = vmatprep.subr.mxu0 0.0
    %3586 = vmatpush1.xpose.msra.mxu0 %v3428
    %3587 = vmatprep.subr.mxu0 0.0
    %3588 = vmatpush1.xpose.msra.mxu0 %v3431
    %3589 = vmatprep.subr.mxu0 0.0
    %3590 = vmatpush1.xpose.msra.mxu0 %v3434
    %3591 = vmatprep.subr.mxu0 0.0
    %3592 = vmatpush1.xpose.msra.mxu0 %v3437
    %3593 = vmatprep.subr.mxu0 0.0
    %3594 = vmatpush1.xpose.msra.mxu0 %v3440
    %3595 = vmatprep.subr.mxu0 0.0
    %3596 = vmatpush1.xpose.msra.mxu0 %v3443
    %3597 = vmatprep.subr.mxu0 0.0
    %3598 = vmatpush1.xpose.msra.mxu0 %v3446
    %3599 = vmatprep.subr.mxu0 0.0
    %3600 = vmatpush1.xpose.msra.mxu0 %v3449
    %3601 = vmatprep.subr.mxu0 0.0
    %3602 = vmatpush1.xpose.msra.mxu0 %v3452
    %3603 = vmatprep.subr.mxu0 0.0
    %3604 = vmatpush1.xpose.msra.mxu0 %v3455
    %3605 = vmatprep.subr.mxu0 0.0
    %3606 = vmatpush1.xpose.msra.mxu0 %v3458
    %3607 = vmatprep.subr.mxu0 0.0
    %3608 = vmatpush1.xpose.msra.mxu0 %v3461
    %3609 = vmatprep.subr.mxu0 0.0
    %3610 = vmatpush1.xpose.msra.mxu0 %v3464
    %3611 = vmatprep.subr.mxu0 0.0
    %3612 = vmatpush1.xpose.msra.mxu0 %v3467
    %3613 = vmatprep.subr.mxu0 0.0
    %3614 = vmatpush1.xpose.msra.mxu0 %v3470
    %3615 = vmatprep.subr.mxu0 0.0
    %3616 = vmatpush1.xpose.msra.mxu0 %v3473
    %3617 = vmatprep.subr.mxu0 0.0
    %3618 = vmatpush1.xpose.msra.mxu0 %v3476
    %3619 = vmatprep.subr.mxu0 0.0
    %3620 = vmatpush1.xpose.msra.mxu0 %v3479
    %3621 = vmatprep.subr.mxu0 0.0
    %3622 = vmatpush1.xpose.msra.mxu0 %v3482
    %3623 = vmatprep.subr.mxu0 0.0
    %3624 = vmatpush1.xpose.msra.mxu0 %v3485
    %3625 = vmatprep.subr.mxu0 0.0
    %3626 = vmatpush1.xpose.msra.mxu0 %v3488
    %3627 = vmatprep.subr.mxu0 0.0
    %3628 = vmatpush1.xpose.msra.mxu0 %v3491
    %3629 = vmatprep.subr.mxu0 0.0
    %3630 = vmatpush1.xpose.msra.mxu0 %v3494
    %3631 = vmatprep.mubr.f32.mxu0 0.0
    %3632 = vmatmul.mubr.f32.gmra.mrb[0].mxu0 %v3302
    %v3633 = vpop.f32.mrb[0].mxu0
    %v3634 = vadd.f32 %v3298, %v3633
    %v3635 = vpop.f32.mrb[0].mxu0
    %v3636 = vadd.f32 %v3298, %v3635
    %3637 = vdwg.mxu0
    %v3638 = vmax.f32 %v3563, 0.0
    %v3639 = vmax.f32 %v3565, 0.0
    %v3640 = vmax.f32 %v3634, 0.0
    %v3641 = vmax.f32 %v3636, 0.0
    %v3642 = vld [vmem:[%s3] sm:$0xff]
    %v3644 = vcombine.high %v3642, %v3642
    %v3646 = vunpack.c.l.s4 1983009808
    %v3647 = vunpack.c.0.s8 %v3646
    %v3648 = vlaneseq
    %v3649 = vshrl.u32 %v3648, 7
    %v3650 = vsub.s32 %v3647, %v3649
    %v3651 = vrot.slane %v3642, %v3650
    %v3653 = vunpack.c.l.s4 1983009808
    %v3654 = vunpack.c.0.s8 %v3653
    %v3655 = vlaneseq
    %v3656 = vshrl.u32 %v3655, 7
    %v3657 = vsub.s32 %v3654, %v3656
    %v3658 = vrot.slane %v3644, %v3657
    %v3659 = vcombine.high %v3651, %v3651
    %v3660 = vcombine.high %v3658, %v3658
    %3665 = vmatprep.subr.mxu0 %v3639
    %3666 = vmatpush1.xpose.msra.mxu0 %v3638
    %3667 = vmatprep.subr.mxu0 0.0
    %3668 = vmatpush1.xpose.msra.mxu0 0.0
    %3669 = vmatprep.subr.mxu0 0.0
    %3670 = vmatpush1.xpose.msra.mxu0 0.0
    %3671 = vmatprep.subr.mxu0 0.0
    %3672 = vmatpush1.xpose.msra.mxu0 0.0
    %3673 = vmatprep.subr.mxu0 0.0
    %3674 = vmatpush1.xpose.msra.mxu0 0.0
    %3675 = vmatprep.subr.mxu0 0.0
    %3676 = vmatpush1.xpose.msra.mxu0 0.0
    %3677 = vmatprep.subr.mxu0 0.0
    %3678 = vmatpush1.xpose.msra.mxu0 0.0
    %3679 = vmatprep.subr.mxu0 0.0
    %3680 = vmatpush1.xpose.msra.mxu0 0.0
    %3681 = vmatprep.subr.mxu0 0.0
    %3682 = vmatpush1.xpose.msra.mxu0 0.0
    %3683 = vmatprep.subr.mxu0 0.0
    %3684 = vmatpush1.xpose.msra.mxu0 0.0
    %3685 = vmatprep.subr.mxu0 0.0
    %3686 = vmatpush1.xpose.msra.mxu0 0.0
    %3687 = vmatprep.subr.mxu0 0.0
    %3688 = vmatpush1.xpose.msra.mxu0 0.0
    %3689 = vmatprep.subr.mxu0 0.0
    %3690 = vmatpush1.xpose.msra.mxu0 0.0
    %3691 = vmatprep.subr.mxu0 0.0
    %3692 = vmatpush1.xpose.msra.mxu0 0.0
    %3693 = vmatprep.subr.mxu0 0.0
    %3694 = vmatpush1.xpose.msra.mxu0 0.0
    %3695 = vmatprep.subr.mxu0 0.0
    %3696 = vmatpush1.xpose.msra.mxu0 0.0
    %3697 = vmatprep.subr.mxu0 0.0
    %3698 = vmatpush1.xpose.msra.mxu0 0.0
    %3699 = vmatprep.subr.mxu0 0.0
    %3700 = vmatpush1.xpose.msra.mxu0 0.0
    %3701 = vmatprep.subr.mxu0 0.0
    %3702 = vmatpush1.xpose.msra.mxu0 0.0
    %3703 = vmatprep.subr.mxu0 0.0
    %3704 = vmatpush1.xpose.msra.mxu0 0.0
    %3705 = vmatprep.subr.mxu0 0.0
    %3706 = vmatpush1.xpose.msra.mxu0 0.0
    %3707 = vmatprep.subr.mxu0 0.0
    %3708 = vmatpush1.xpose.msra.mxu0 0.0
    %3709 = vmatprep.subr.mxu0 0.0
    %3710 = vmatpush1.xpose.msra.mxu0 0.0
    %3711 = vmatprep.subr.mxu0 0.0
    %3712 = vmatpush1.xpose.msra.mxu0 0.0
    %3713 = vmatprep.subr.mxu0 0.0
    %3714 = vmatpush1.xpose.msra.mxu0 0.0
    %3715 = vmatprep.subr.mxu0 0.0
    %3716 = vmatpush1.xpose.msra.mxu0 0.0
    %3717 = vmatprep.subr.mxu0 0.0
    %3718 = vmatpush1.xpose.msra.mxu0 0.0
    %3719 = vmatprep.subr.mxu0 0.0
    %3720 = vmatpush1.xpose.msra.mxu0 0.0
    %3721 = vmatprep.subr.mxu0 0.0
    %3722 = vmatpush1.xpose.msra.mxu0 0.0
    %3723 = vmatprep.subr.mxu0 0.0
    %3724 = vmatpush1.xpose.msra.mxu0 0.0
    %3725 = vmatprep.subr.mxu0 0.0
    %3726 = vmatpush1.xpose.msra.mxu0 0.0
    %3727 = vmatprep.subr.mxu0 0.0
    %3728 = vmatpush1.xpose.msra.mxu0 0.0
    %3729 = vmatprep.mubr.f32.mxu0 %v3659
    %3730 = vmatmul.mubr.f32.gmra.mrb[0].mxu0 %v3651
    %v3731 = vpop.f32.mrb[0].mxu0
    %v3732 = vadd.f32 0.0, %v3731
    %v3733 = vpop.f32.mrb[0].mxu0
    %3734 = vdwg.mxu0
    %3735 = vmatprep.subr.mxu0 %v3641
    %3736 = vmatpush1.xpose.msra.mxu0 %v3640
    %3737 = vmatprep.subr.mxu0 0.0
    %3738 = vmatpush1.xpose.msra.mxu0 0.0
    %3739 = vmatprep.subr.mxu0 0.0
    %3740 = vmatpush1.xpose.msra.mxu0 0.0
    %3741 = vmatprep.subr.mxu0 0.0
    %3742 = vmatpush1.xpose.msra.mxu0 0.0
    %3743 = vmatprep.subr.mxu0 0.0
    %3744 = vmatpush1.xpose.msra.mxu0 0.0
    %3745 = vmatprep.subr.mxu0 0.0
    %3746 = vmatpush1.xpose.msra.mxu0 0.0
    %3747 = vmatprep.subr.mxu0 0.0
    %3748 = vmatpush1.xpose.msra.mxu0 0.0
    %3749 = vmatprep.subr.mxu0 0.0
    %3750 = vmatpush1.xpose.msra.mxu0 0.0
    %3751 = vmatprep.subr.mxu0 0.0
    %3752 = vmatpush1.xpose.msra.mxu0 0.0
    %3753 = vmatprep.subr.mxu0 0.0
    %3754 = vmatpush1.xpose.msra.mxu0 0.0
    %3755 = vmatprep.subr.mxu0 0.0
    %3756 = vmatpush1.xpose.msra.mxu0 0.0
    %3757 = vmatprep.subr.mxu0 0.0
    %3758 = vmatpush1.xpose.msra.mxu0 0.0
    %3759 = vmatprep.subr.mxu0 0.0
    %3760 = vmatpush1.xpose.msra.mxu0 0.0
    %3761 = vmatprep.subr.mxu0 0.0
    %3762 = vmatpush1.xpose.msra.mxu0 0.0
    %3763 = vmatprep.subr.mxu0 0.0
    %3764 = vmatpush1.xpose.msra.mxu0 0.0
    %3765 = vmatprep.subr.mxu0 0.0
    %3766 = vmatpush1.xpose.msra.mxu0 0.0
    %3767 = vmatprep.subr.mxu0 0.0
    %3768 = vmatpush1.xpose.msra.mxu0 0.0
    %3769 = vmatprep.subr.mxu0 0.0
    %3770 = vmatpush1.xpose.msra.mxu0 0.0
    %3771 = vmatprep.subr.mxu0 0.0
    %3772 = vmatpush1.xpose.msra.mxu0 0.0
    %3773 = vmatprep.subr.mxu0 0.0
    %3774 = vmatpush1.xpose.msra.mxu0 0.0
    %3775 = vmatprep.subr.mxu0 0.0
    %3776 = vmatpush1.xpose.msra.mxu0 0.0
    %3777 = vmatprep.subr.mxu0 0.0
    %3778 = vmatpush1.xpose.msra.mxu0 0.0
    %3779 = vmatprep.subr.mxu0 0.0
    %3780 = vmatpush1.xpose.msra.mxu0 0.0
    %3781 = vmatprep.subr.mxu0 0.0
    %3782 = vmatpush1.xpose.msra.mxu0 0.0
    %3783 = vmatprep.subr.mxu0 0.0
    %3784 = vmatpush1.xpose.msra.mxu0 0.0
    %3785 = vmatprep.subr.mxu0 0.0
    %3786 = vmatpush1.xpose.msra.mxu0 0.0
    %3787 = vmatprep.subr.mxu0 0.0
    %3788 = vmatpush1.xpose.msra.mxu0 0.0
    %3789 = vmatprep.subr.mxu0 0.0
    %3790 = vmatpush1.xpose.msra.mxu0 0.0
    %3791 = vmatprep.subr.mxu0 0.0
    %3792 = vmatpush1.xpose.msra.mxu0 0.0
    %3793 = vmatprep.subr.mxu0 0.0
    %3794 = vmatpush1.xpose.msra.mxu0 0.0
    %3795 = vmatprep.subr.mxu0 0.0
    %3796 = vmatpush1.xpose.msra.mxu0 0.0
    %3797 = vmatprep.subr.mxu0 0.0
    %3798 = vmatpush1.xpose.msra.mxu0 0.0
    %3799 = vmatprep.mubr.f32.mxu0 %v3660
    %3800 = vmatmul.mubr.f32.gmra.mrb[0].mxu0 %v3658
    %v3801 = vpop.f32.mrb[0].mxu0
    %v3802 = vadd.f32 %v3732, %v3801
    %v3803 = vpop.f32.mrb[0].mxu0
    %3804 = vdwg.mxu0
    %vm3805 = vcmask 58368
    %3806 = vst.msk [vmem:[#allocation3] sm:$0x3] %vm3805, %v3802
    // Predicated region
    $region18: #{feature_extractor.1} parent=1 // pred_check
      _
    $region19: #{feature_extractor.1} parent=1 // pred_check_branch
      %3808 = sbr.rel (0) target = $region21
    $region20: #{feature_extractor.1} parent=1 // pred_region
      %s3810 = ssub.s32 32, 32
      %3811 = vsyncadd [#allocation4], %s3810
      %s3813 = sshll.u32 [#allocation3], 4
      %s3814 = int_to_ptr.vmem [resolvable:$true] %s3813
      %3816 = dma.vmem_to_hbm [thread:$0]  %s3814, 32, %s4, [#allocation4]
    $region21: #{feature_extractor.1} parent=1 // pred_fallthru
      _
    // Predicated region
    $region22: #{feature_extractor.1} parent=1 // pred_check
      _
    $region23: #{feature_extractor.1} parent=1 // pred_check_branch
      %3818 = sbr.rel (0) target = $region25
    $region24: #{feature_extractor.1} parent=1 // pred_region
      %3819 = dma.done [#allocation4], 32
    $region25: #{feature_extractor.1} parent=1 // pred_fallthru
      _
    %3820 = vsyncpa [#allocation4], 1

</llo_original>
